<compile_context>
chip_gen: v6e
topology: v6e:2x2x1
jax: 0.10.0
libtpu: 0.0.40
codegen_flags: <defaults>
</compile_context>

<pallas_src>
import math

import jax
import jax.numpy as jnp
from jax import lax
from jax.experimental import pallas as pl
from jax.experimental.pallas import tpu as pltpu  # noqa: F401  (default whole-array VMEM placement needs no TPU-specific params)

# ---- small, module-consistent sizes ----
BATCH = 2
SEQ = 8
D_MODEL = 32
HEADS = 4
D_K = D_MODEL // HEADS
D_FF = 64
NX = 2          # number of encoder blocks (nx)
VOCAB = 50
MAX_LEN = 16
EPS = 1e-5      # nn.LayerNorm default
NEG_INF = -1e9  # matches torch masked_fill value

# positions of the matmul weights inside a layer parameter tuple
# (wq, bq, wk, bk, wv, bv, wo, bo, g1, be1, w1, b1, w2, b2, g2, be2)
_WEIGHT_IDX = (0, 2, 4, 6, 10, 12)


# ----------------------------------------------------------------------------
# Fused kernel: embeddings -> [all NX encoder blocks] in one invocation.
# ----------------------------------------------------------------------------
def encoder_stack_kernel(x_ref, madd_ref,
                         wq_ref, bq_ref, wk_ref, bk_ref, wv_ref, bv_ref,
                         wo_ref, bo_ref, g1_ref, be1_ref,
                         w1_ref, b1_ref, w2_ref, b2_ref, g2_ref, be2_ref,
                         out_ref):
    """Whole encoder stack (all layers, whole batch) in a single invocation.

    x_ref    : (B*S, D)   f32  token + positional embeddings, batch flattened
    madd_ref : (B*S, B*S) f32  additive attention mask: 0 where query row
               b*S+i may attend key row b*S+j (same batch AND non-pad key),
               -1e9 otherwise (padding keys and cross-batch pairs).
    w*_ref   : (NX, ...)  bf16 layer-stacked matmul weights (VMEM resident)
    b*/g*/be*: (NX, 1, .) f32  biases / LayerNorm affine parameters
    out_ref  : (B*S, D)   f32
    """
    f32 = jnp.float32
    bf16 = jnp.bfloat16

    x = x_ref[...]                       # (N, D) f32, N = B*S
    madd = madd_ref[...]                 # (N, N) f32, hoisted out of layer loop
    inv_sqrt_dk = f32(1.0 / math.sqrt(D_K))

    for l in range(NX):                  # static unroll; weights stay resident
        # ---------------- SelfAttention ----------------
        xb = x.astype(bf16)              # cast once per layer
        q = jnp.dot(xb, wq_ref[l], preferred_element_type=f32) + bq_ref[l]
        k = jnp.dot(xb, wk_ref[l], preferred_element_type=f32) + bk_ref[l]
        v = jnp.dot(xb, wv_ref[l], preferred_element_type=f32) + bv_ref[l]
        qb = q.astype(bf16)
        kb = k.astype(bf16)
        vb = v.astype(bf16)
        wo = wo_ref[l]                   # (D, D) bf16

        mha = None
        for h in range(HEADS):           # static head loop, no concat needed
            sl = slice(h * D_K, (h + 1) * D_K)
            # scores[n, m] = q[n, sl] . k[m, sl]   (contract d_k, no transpose)
            scores = lax.dot_general(qb[:, sl], kb[:, sl],
                                     (((1,), (1,)), ((), ())),
                                     preferred_element_type=f32)   # (N, N)
            # additive mask (equivalent to masked_fill(mask==0, -1e9)), then
            # scale by 1/sqrt(d_k) -- same order as the torch reference.
            scores = (scores + madd) * inv_sqrt_dk
            m = jnp.max(scores, axis=-1, keepdims=True)
            p = jnp.exp(scores - m)
            denom = jnp.sum(p, axis=-1, keepdims=True)
            p = p * pl.reciprocal(denom, approx=True)              # EUP slot
            ctx = jnp.dot(p.astype(bf16), vb[:, sl],
                          preferred_element_type=f32)              # (N, dk)
            # accumulate straight into the output projection (no concat):
            part = jnp.dot(ctx.astype(bf16), wo[sl, :],
                           preferred_element_type=f32)             # (N, D)
            mha = part if mha is None else mha + part
        mha = mha + bo_ref[l]

        # ------------- residual + LayerNorm1 (dropout = identity) -------------
        y = x + mha
        mu = jnp.mean(y, axis=-1, keepdims=True)
        var = jnp.mean((y - mu) * (y - mu), axis=-1, keepdims=True)
        y = (y - mu) * lax.rsqrt(var + EPS) * g1_ref[l] + be1_ref[l]

        # ------------- feed-forward: Linear -> (Dropout) -> ReLU -> Linear ----
        h1 = jnp.dot(y.astype(bf16), w1_ref[l], preferred_element_type=f32) + b1_ref[l]
        h1 = jnp.maximum(h1, f32(0.0))
        ff = jnp.dot(h1.astype(bf16), w2_ref[l], preferred_element_type=f32) + b2_ref[l]

        # ------------- residual + LayerNorm2 ----------------------------------
        z = y + ff
        mu2 = jnp.mean(z, axis=-1, keepdims=True)
        var2 = jnp.mean((z - mu2) * (z - mu2), axis=-1, keepdims=True)
        x = (z - mu2) * lax.rsqrt(var2 + EPS) * g2_ref[l] + be2_ref[l]

    out_ref[...] = x


# ----------------------------------------------------------------------------
# Wrapper: embedding gather + mask prep (plain-JAX glue) + one pallas_call.
# ----------------------------------------------------------------------------
def encoder_forward_pallas(token_ids, mask, word_emb, pos_emb, stacked_params):
    n, s = token_ids.shape
    # Embedding lookup (gather) + positional embedding; dropout = identity.
    # TODO(synk): dropout layers are treated as identity (eval mode); no in-kernel RNG dropout.
    x = word_emb[token_ids] + pos_emb[jnp.arange(s)][None, :, :]      # (n, S, D)

    # Block-diagonal additive mask over the flattened (batch*seq) token axis:
    # 0 where (same batch) AND (key not padded), -1e9 elsewhere.  This lets the
    # whole batch share one dense 2-D score matrix inside the kernel.
    same_batch = (jnp.arange(n)[:, None, None, None] ==
                  jnp.arange(n)[None, None, :, None])                 # (n,1,n,1)
    valid = jnp.logical_and(same_batch, (mask != 0)[:, :, None, :])   # (n,S,n,S)
    mask_add = jnp.where(valid, 0.0, NEG_INF).astype(jnp.float32)
    mask_add = mask_add.reshape(n * s, n * s)

    x2 = x.reshape(n * s, D_MODEL).astype(jnp.float32)

    out2 = pl.pallas_call(
        encoder_stack_kernel,
        out_shape=jax.ShapeDtypeStruct((n * s, D_MODEL), jnp.float32),
        # no grid: whole batch + all layers in one invocation; every operand is
        # a single whole-array VMEM block (< 100 KiB total).
    )(x2, mask_add, *stacked_params)

    return out2.reshape(n, s, D_MODEL)


# ----------------------------------------------------------------------------
# Parameter init (deterministic, synthetic) and layer stacking.
# ----------------------------------------------------------------------------
def init_params(key):
    kemb, kpos, klayers = jax.random.split(key, 3)
    word_emb = 0.02 * jax.random.normal(kemb, (VOCAB, D_MODEL), jnp.float32)
    pos_emb = 0.02 * jax.random.normal(kpos, (MAX_LEN, D_MODEL), jnp.float32)

    def lin(k, fan_in, fan_out):
        kw, kb = jax.random.split(k)
        w = jax.random.normal(kw, (fan_in, fan_out), jnp.float32) / math.sqrt(fan_in)
        b = 0.05 * jax.random.normal(kb, (1, fan_out), jnp.float32)
        return w, b

    layers = []
    for l in range(NX):
        ks = jax.random.split(jax.random.fold_in(klayers, l), 10)
        wq, bq = lin(ks[0], D_MODEL, D_MODEL)
        wk, bk = lin(ks[1], D_MODEL, D_MODEL)
        wv, bv = lin(ks[2], D_MODEL, D_MODEL)
        wo, bo = lin(ks[3], D_MODEL, D_MODEL)
        w1, b1 = lin(ks[4], D_MODEL, D_FF)
        w2, b2 = lin(ks[5], D_FF, D_MODEL)
        g1 = 1.0 + 0.1 * jax.random.normal(ks[6], (1, D_MODEL), jnp.float32)
        be1 = 0.05 * jax.random.normal(ks[7], (1, D_MODEL), jnp.float32)
        g2 = 1.0 + 0.1 * jax.random.normal(ks[8], (1, D_MODEL), jnp.float32)
        be2 = 0.05 * jax.random.normal(ks[9], (1, D_MODEL), jnp.float32)
        layers.append((wq, bq, wk, bk, wv, bv, wo, bo,
                       g1, be1, w1, b1, w2, b2, g2, be2))
    return word_emb, pos_emb, layers


def stack_layers(layers):
    """Stack per-layer params along a leading (NX, ...) axis; weights -> bf16."""
    stacked = []
    for i in range(len(layers[0])):
        arr = jnp.stack([layer[i] for layer in layers], axis=0)
        if i in _WEIGHT_IDX:
            arr = arr.astype(jnp.bfloat16)     # MXU-native weight storage
        stacked.append(arr)
    return stacked


# ----------------------------------------------------------------------------
# Pure-JAX reference (eval-mode torch semantics; matmuls mirror the kernel's
# bf16-input / f32-accumulate precision so the check is tight and stable).
# ----------------------------------------------------------------------------
def encoder_block_ref(x, mask, p):
    wq, bq, wk, bk, wv, bv, wo, bo, g1, be1, w1, b1, w2, b2, g2, be2 = p
    n, s, d = x.shape
    bf16 = jnp.bfloat16

    def mm(a, b):
        return jnp.dot(a.astype(bf16), b.astype(bf16),
                       preferred_element_type=jnp.float32)

    q = mm(x, wq) + bq
    k = mm(x, wk) + bk
    v = mm(x, wv) + bv
    qh = q.reshape(n, s, HEADS, D_K).transpose(0, 2, 1, 3)
    kh = k.reshape(n, s, HEADS, D_K).transpose(0, 2, 1, 3)
    vh = v.reshape(n, s, HEADS, D_K).transpose(0, 2, 1, 3)
    scores = jnp.einsum('nhqd,nhkd->nhqk', qh.astype(bf16), kh.astype(bf16),
                        preferred_element_type=jnp.float32)
    scores = jnp.where(mask[:, None, :, :] == 0, NEG_INF, scores)
    scores = scores / math.sqrt(D_K)
    p_att = jax.nn.softmax(scores, axis=-1)
    ctx = jnp.einsum('nhqk,nhkd->nhqd', p_att.astype(bf16), vh.astype(bf16),
                     preferred_element_type=jnp.float32)
    attn = ctx.transpose(0, 2, 1, 3).reshape(n, s, d)
    mha = mm(attn, wo) + bo

    def ln(t, g, b):
        mu = jnp.mean(t, axis=-1, keepdims=True)
        var = jnp.mean((t - mu) ** 2, axis=-1, keepdims=True)
        return (t - mu) / jnp.sqrt(var + EPS) * g + b

    y = ln(x + mha, g1, be1)
    ff = mm(jnp.maximum(mm(y, w1) + b1, 0.0), w2) + b2
    return ln(y + ff, g2, be2)


def encoder_forward_ref(token_ids, mask, word_emb, pos_emb, layers):
    n, s = token_ids.shape
    x = word_emb[token_ids] + pos_emb[jnp.arange(s)][None, :, :]
    for p in layers:
        x = encoder_block_ref(x, mask, p)
    return x


# ----------------------------------------------------------------------------
if __name__ == "__main__":
    key = jax.random.PRNGKey(0)
    pkey, dkey = jax.random.split(key)
    word_emb, pos_emb, layers = init_params(pkey)
    stacked = stack_layers(layers)

    token_ids = jax.random.randint(dkey, (BATCH, SEQ), 0, VOCAB, dtype=jnp.int32)
    # key-padding mask: first sequence full length, second padded after 6 tokens
    lengths = jnp.array([SEQ, 6], dtype=jnp.int32)
    key_valid = jnp.arange(SEQ)[None, :] < lengths[:, None]            # (n, S)
    mask = jnp.broadcast_to(key_valid[:, None, :], (BATCH, SEQ, SEQ)).astype(jnp.int32)

    fwd = jax.jit(lambda t, m: encoder_forward_pallas(t, m, word_emb, pos_emb, stacked))
    out = jax.block_until_ready(fwd(token_ids, mask))

    ref = encoder_forward_ref(token_ids, mask, word_emb, pos_emb, layers)

    assert out.shape == (BATCH, SEQ, D_MODEL)
    max_err = float(jnp.max(jnp.abs(out - ref)))
    assert bool(jnp.allclose(out, ref, atol=1e-2, rtol=1e-2)), max_err

    print("KERNEL_OK")
</pallas_src>

<mosaic_0001>
module attributes {stable_mosaic.version = 11 : i64} {
  func.func @encoder_stack_kernel(%arg0: memref<16x32xf32, #tpu.memory_space<vmem>>, %arg1: memref<16x16xf32, #tpu.memory_space<vmem>>, %arg2: memref<2x32x32xbf16, #tpu.memory_space<vmem>>, %arg3: memref<2x1x32xf32, #tpu.memory_space<vmem>>, %arg4: memref<2x32x32xbf16, #tpu.memory_space<vmem>>, %arg5: memref<2x1x32xf32, #tpu.memory_space<vmem>>, %arg6: memref<2x32x32xbf16, #tpu.memory_space<vmem>>, %arg7: memref<2x1x32xf32, #tpu.memory_space<vmem>>, %arg8: memref<2x32x32xbf16, #tpu.memory_space<vmem>>, %arg9: memref<2x1x32xf32, #tpu.memory_space<vmem>>, %arg10: memref<2x1x32xf32, #tpu.memory_space<vmem>>, %arg11: memref<2x1x32xf32, #tpu.memory_space<vmem>>, %arg12: memref<2x32x64xbf16, #tpu.memory_space<vmem>>, %arg13: memref<2x1x64xf32, #tpu.memory_space<vmem>>, %arg14: memref<2x64x32xbf16, #tpu.memory_space<vmem>>, %arg15: memref<2x1x32xf32, #tpu.memory_space<vmem>>, %arg16: memref<2x1x32xf32, #tpu.memory_space<vmem>>, %arg17: memref<2x1x32xf32, #tpu.memory_space<vmem>>, %arg18: memref<16x32xf32, #tpu.memory_space<vmem>>) attributes {dimension_semantics = [], scalar_prefetch = 0 : i64, scratch_operands = 0 : i64, tpu.core_type = #tpu.core_type<tc>} {
    %c0 = arith.constant 0 : index
    %c0_0 = arith.constant 0 : index
    %0 = vector.load %arg0[%c0, %c0_0] : memref<16x32xf32, #tpu.memory_space<vmem>>, vector<16x32xf32>
    %c0_1 = arith.constant 0 : index
    %c0_2 = arith.constant 0 : index
    %1 = vector.load %arg1[%c0_1, %c0_2] : memref<16x16xf32, #tpu.memory_space<vmem>>, vector<16x16xf32>
    %2 = arith.truncf %0 : vector<16x32xf32> to vector<16x32xbf16>
    %c0_3 = arith.constant 0 : index
    %c0_4 = arith.constant 0 : index
    %c0_5 = arith.constant 0 : index
    %3 = vector.load %arg2[%c0_3, %c0_4, %c0_5] : memref<2x32x32xbf16, #tpu.memory_space<vmem>>, vector<1x32x32xbf16>
    %4 = vector.shape_cast %3 : vector<1x32x32xbf16> to vector<32x32xbf16>
    %cst = arith.constant dense<0.000000e+00> : vector<16x32xf32>
    %5 = tpu.matmul %2, %4, %cst {dimension_numbers = #tpu.dot_dimension_numbers<[1], [0], [0], [1], [0, 0, 1, 1], [], []>} : vector<16x32xbf16>, vector<32x32xbf16>, vector<16x32xf32> -> vector<16x32xf32>
    %c0_6 = arith.constant 0 : index
    %c0_7 = arith.constant 0 : index
    %c0_8 = arith.constant 0 : index
    %6 = vector.load %arg3[%c0_6, %c0_7, %c0_8] : memref<2x1x32xf32, #tpu.memory_space<vmem>>, vector<1x1x32xf32>
    %7 = vector.shape_cast %6 : vector<1x1x32xf32> to vector<1x32xf32>
    %8 = vector.broadcast %7 : vector<1x32xf32> to vector<16x32xf32>
    %9 = arith.addf %5, %8 : vector<16x32xf32>
    %c0_9 = arith.constant 0 : index
    %c0_10 = arith.constant 0 : index
    %c0_11 = arith.constant 0 : index
    %10 = vector.load %arg4[%c0_9, %c0_10, %c0_11] : memref<2x32x32xbf16, #tpu.memory_space<vmem>>, vector<1x32x32xbf16>
    %11 = vector.shape_cast %10 : vector<1x32x32xbf16> to vector<32x32xbf16>
    %cst_12 = arith.constant dense<0.000000e+00> : vector<16x32xf32>
    %12 = tpu.matmul %2, %11, %cst_12 {dimension_numbers = #tpu.dot_dimension_numbers<[1], [0], [0], [1], [0, 0, 1, 1], [], []>} : vector<16x32xbf16>, vector<32x32xbf16>, vector<16x32xf32> -> vector<16x32xf32>
    %c0_13 = arith.constant 0 : index
    %c0_14 = arith.constant 0 : index
    %c0_15 = arith.constant 0 : index
    %13 = vector.load %arg5[%c0_13, %c0_14, %c0_15] : memref<2x1x32xf32, #tpu.memory_space<vmem>>, vector<1x1x32xf32>
    %14 = vector.shape_cast %13 : vector<1x1x32xf32> to vector<1x32xf32>
    %15 = vector.broadcast %14 : vector<1x32xf32> to vector<16x32xf32>
    %16 = arith.addf %12, %15 : vector<16x32xf32>
    %c0_16 = arith.constant 0 : index
    %c0_17 = arith.constant 0 : index
    %c0_18 = arith.constant 0 : index
    %17 = vector.load %arg6[%c0_16, %c0_17, %c0_18] : memref<2x32x32xbf16, #tpu.memory_space<vmem>>, vector<1x32x32xbf16>
    %18 = vector.shape_cast %17 : vector<1x32x32xbf16> to vector<32x32xbf16>
    %cst_19 = arith.constant dense<0.000000e+00> : vector<16x32xf32>
    %19 = tpu.matmul %2, %18, %cst_19 {dimension_numbers = #tpu.dot_dimension_numbers<[1], [0], [0], [1], [0, 0, 1, 1], [], []>} : vector<16x32xbf16>, vector<32x32xbf16>, vector<16x32xf32> -> vector<16x32xf32>
    %c0_20 = arith.constant 0 : index
    %c0_21 = arith.constant 0 : index
    %c0_22 = arith.constant 0 : index
    %20 = vector.load %arg7[%c0_20, %c0_21, %c0_22] : memref<2x1x32xf32, #tpu.memory_space<vmem>>, vector<1x1x32xf32>
    %21 = vector.shape_cast %20 : vector<1x1x32xf32> to vector<1x32xf32>
    %22 = vector.broadcast %21 : vector<1x32xf32> to vector<16x32xf32>
    %23 = arith.addf %19, %22 : vector<16x32xf32>
    %24 = arith.truncf %9 : vector<16x32xf32> to vector<16x32xbf16>
    %25 = arith.truncf %16 : vector<16x32xf32> to vector<16x32xbf16>
    %26 = arith.truncf %23 : vector<16x32xf32> to vector<16x32xbf16>
    %c0_23 = arith.constant 0 : index
    %c0_24 = arith.constant 0 : index
    %c0_25 = arith.constant 0 : index
    %27 = vector.load %arg8[%c0_23, %c0_24, %c0_25] : memref<2x32x32xbf16, #tpu.memory_space<vmem>>, vector<1x32x32xbf16>
    %28 = vector.shape_cast %27 : vector<1x32x32xbf16> to vector<32x32xbf16>
    %29 = vector.extract_strided_slice %24 {offsets = [0, 0], sizes = [16, 8], strides = [1, 1]} : vector<16x32xbf16> to vector<16x8xbf16>
    %30 = vector.extract_strided_slice %25 {offsets = [0, 0], sizes = [16, 8], strides = [1, 1]} : vector<16x32xbf16> to vector<16x8xbf16>
    %cst_26 = arith.constant dense<0.000000e+00> : vector<16x16xf32>
    %31 = tpu.matmul %29, %30, %cst_26 {dimension_numbers = #tpu.dot_dimension_numbers<[1], [1], [0], [0], [0, 0, 1, 0], [], []>} : vector<16x8xbf16>, vector<16x8xbf16>, vector<16x16xf32> -> vector<16x16xf32>
    %32 = arith.addf %31, %1 : vector<16x16xf32>
    %cst_27 = arith.constant 0.353553385 : f32
    %33 = vector.broadcast %cst_27 : f32 to vector<16x16xf32>
    %34 = arith.mulf %32, %33 : vector<16x16xf32>
    %cst_28 = arith.constant dense<0xFF800000> : vector<16xf32>
    %35 = vector.multi_reduction <maximumf>, %34, %cst_28 [1] : vector<16x16xf32> to vector<16xf32>
    %36 = vector.shape_cast %35 : vector<16xf32> to vector<16x1xf32>
    %37 = vector.broadcast %36 : vector<16x1xf32> to vector<16x16xf32>
    %38 = arith.subf %34, %37 : vector<16x16xf32>
    %39 = math.exp %38 : vector<16x16xf32>
    %cst_29 = arith.constant dense<0.000000e+00> : vector<16xf32>
    %40 = vector.multi_reduction <add>, %39, %cst_29 [1] : vector<16x16xf32> to vector<16xf32>
    %41 = vector.shape_cast %40 : vector<16xf32> to vector<16x1xf32>
    %42 = tpu.reciprocal %41 {approx = true} : vector<16x1xf32> -> vector<16x1xf32>
    %43 = vector.broadcast %42 : vector<16x1xf32> to vector<16x16xf32>
    %44 = arith.mulf %39, %43 : vector<16x16xf32>
    %45 = arith.truncf %44 : vector<16x16xf32> to vector<16x16xbf16>
    %46 = vector.extract_strided_slice %26 {offsets = [0, 0], sizes = [16, 8], strides = [1, 1]} : vector<16x32xbf16> to vector<16x8xbf16>
    %cst_30 = arith.constant dense<0.000000e+00> : vector<16x8xf32>
    %47 = tpu.matmul %45, %46, %cst_30 {dimension_numbers = #tpu.dot_dimension_numbers<[1], [0], [0], [1], [0, 0, 1, 1], [], []>} : vector<16x16xbf16>, vector<16x8xbf16>, vector<16x8xf32> -> vector<16x8xf32>
    %48 = arith.truncf %47 : vector<16x8xf32> to vector<16x8xbf16>
    %49 = vector.extract_strided_slice %28 {offsets = [0, 0], sizes = [8, 32], strides = [1, 1]} : vector<32x32xbf16> to vector<8x32xbf16>
    %cst_31 = arith.constant dense<0.000000e+00> : vector<16x32xf32>
    %50 = tpu.matmul %48, %49, %cst_31 {dimension_numbers = #tpu.dot_dimension_numbers<[1], [0], [0], [1], [0, 0, 1, 1], [], []>} : vector<16x8xbf16>, vector<8x32xbf16>, vector<16x32xf32> -> vector<16x32xf32>
    %51 = vector.extract_strided_slice %24 {offsets = [0, 8], sizes = [16, 8], strides = [1, 1]} : vector<16x32xbf16> to vector<16x8xbf16>
    %52 = vector.extract_strided_slice %25 {offsets = [0, 8], sizes = [16, 8], strides = [1, 1]} : vector<16x32xbf16> to vector<16x8xbf16>
    %cst_32 = arith.constant dense<0.000000e+00> : vector<16x16xf32>
    %53 = tpu.matmul %51, %52, %cst_32 {dimension_numbers = #tpu.dot_dimension_numbers<[1], [1], [0], [0], [0, 0, 1, 0], [], []>} : vector<16x8xbf16>, vector<16x8xbf16>, vector<16x16xf32> -> vector<16x16xf32>
    %54 = arith.addf %53, %1 : vector<16x16xf32>
    %cst_33 = arith.constant 0.353553385 : f32
    %55 = vector.broadcast %cst_33 : f32 to vector<16x16xf32>
    %56 = arith.mulf %54, %55 : vector<16x16xf32>
    %cst_34 = arith.constant dense<0xFF800000> : vector<16xf32>
    %57 = vector.multi_reduction <maximumf>, %56, %cst_34 [1] : vector<16x16xf32> to vector<16xf32>
    %58 = vector.shape_cast %57 : vector<16xf32> to vector<16x1xf32>
    %59 = vector.broadcast %58 : vector<16x1xf32> to vector<16x16xf32>
    %60 = arith.subf %56, %59 : vector<16x16xf32>
    %61 = math.exp %60 : vector<16x16xf32>
    %cst_35 = arith.constant dense<0.000000e+00> : vector<16xf32>
    %62 = vector.multi_reduction <add>, %61, %cst_35 [1] : vector<16x16xf32> to vector<16xf32>
    %63 = vector.shape_cast %62 : vector<16xf32> to vector<16x1xf32>
    %64 = tpu.reciprocal %63 {approx = true} : vector<16x1xf32> -> vector<16x1xf32>
    %65 = vector.broadcast %64 : vector<16x1xf32> to vector<16x16xf32>
    %66 = arith.mulf %61, %65 : vector<16x16xf32>
    %67 = arith.truncf %66 : vector<16x16xf32> to vector<16x16xbf16>
    %68 = vector.extract_strided_slice %26 {offsets = [0, 8], sizes = [16, 8], strides = [1, 1]} : vector<16x32xbf16> to vector<16x8xbf16>
    %cst_36 = arith.constant dense<0.000000e+00> : vector<16x8xf32>
    %69 = tpu.matmul %67, %68, %cst_36 {dimension_numbers = #tpu.dot_dimension_numbers<[1], [0], [0], [1], [0, 0, 1, 1], [], []>} : vector<16x16xbf16>, vector<16x8xbf16>, vector<16x8xf32> -> vector<16x8xf32>
    %70 = arith.truncf %69 : vector<16x8xf32> to vector<16x8xbf16>
    %71 = vector.extract_strided_slice %28 {offsets = [8, 0], sizes = [8, 32], strides = [1, 1]} : vector<32x32xbf16> to vector<8x32xbf16>
    %cst_37 = arith.constant dense<0.000000e+00> : vector<16x32xf32>
    %72 = tpu.matmul %70, %71, %cst_37 {dimension_numbers = #tpu.dot_dimension_numbers<[1], [0], [0], [1], [0, 0, 1, 1], [], []>} : vector<16x8xbf16>, vector<8x32xbf16>, vector<16x32xf32> -> vector<16x32xf32>
    %73 = arith.addf %50, %72 : vector<16x32xf32>
    %74 = vector.extract_strided_slice %24 {offsets = [0, 16], sizes = [16, 8], strides = [1, 1]} : vector<16x32xbf16> to vector<16x8xbf16>
    %75 = vector.extract_strided_slice %25 {offsets = [0, 16], sizes = [16, 8], strides = [1, 1]} : vector<16x32xbf16> to vector<16x8xbf16>
    %cst_38 = arith.constant dense<0.000000e+00> : vector<16x16xf32>
    %76 = tpu.matmul %74, %75, %cst_38 {dimension_numbers = #tpu.dot_dimension_numbers<[1], [1], [0], [0], [0, 0, 1, 0], [], []>} : vector<16x8xbf16>, vector<16x8xbf16>, vector<16x16xf32> -> vector<16x16xf32>
    %77 = arith.addf %76, %1 : vector<16x16xf32>
    %cst_39 = arith.constant 0.353553385 : f32
    %78 = vector.broadcast %cst_39 : f32 to vector<16x16xf32>
    %79 = arith.mulf %77, %78 : vector<16x16xf32>
    %cst_40 = arith.constant dense<0xFF800000> : vector<16xf32>
    %80 = vector.multi_reduction <maximumf>, %79, %cst_40 [1] : vector<16x16xf32> to vector<16xf32>
    %81 = vector.shape_cast %80 : vector<16xf32> to vector<16x1xf32>
    %82 = vector.broadcast %81 : vector<16x1xf32> to vector<16x16xf32>
    %83 = arith.subf %79, %82 : vector<16x16xf32>
    %84 = math.exp %83 : vector<16x16xf32>
    %cst_41 = arith.constant dense<0.000000e+00> : vector<16xf32>
    %85 = vector.multi_reduction <add>, %84, %cst_41 [1] : vector<16x16xf32> to vector<16xf32>
    %86 = vector.shape_cast %85 : vector<16xf32> to vector<16x1xf32>
    %87 = tpu.reciprocal %86 {approx = true} : vector<16x1xf32> -> vector<16x1xf32>
    %88 = vector.broadcast %87 : vector<16x1xf32> to vector<16x16xf32>
    %89 = arith.mulf %84, %88 : vector<16x16xf32>
    %90 = arith.truncf %89 : vector<16x16xf32> to vector<16x16xbf16>
    %91 = vector.extract_strided_slice %26 {offsets = [0, 16], sizes = [16, 8], strides = [1, 1]} : vector<16x32xbf16> to vector<16x8xbf16>
    %cst_42 = arith.constant dense<0.000000e+00> : vector<16x8xf32>
    %92 = tpu.matmul %90, %91, %cst_42 {dimension_numbers = #tpu.dot_dimension_numbers<[1], [0], [0], [1], [0, 0, 1, 1], [], []>} : vector<16x16xbf16>, vector<16x8xbf16>, vector<16x8xf32> -> vector<16x8xf32>
    %93 = arith.truncf %92 : vector<16x8xf32> to vector<16x8xbf16>
    %94 = vector.extract_strided_slice %28 {offsets = [16, 0], sizes = [8, 32], strides = [1, 1]} : vector<32x32xbf16> to vector<8x32xbf16>
    %cst_43 = arith.constant dense<0.000000e+00> : vector<16x32xf32>
    %95 = tpu.matmul %93, %94, %cst_43 {dimension_numbers = #tpu.dot_dimension_numbers<[1], [0], [0], [1], [0, 0, 1, 1], [], []>} : vector<16x8xbf16>, vector<8x32xbf16>, vector<16x32xf32> -> vector<16x32xf32>
    %96 = arith.addf %73, %95 : vector<16x32xf32>
    %97 = vector.extract_strided_slice %24 {offsets = [0, 24], sizes = [16, 8], strides = [1, 1]} : vector<16x32xbf16> to vector<16x8xbf16>
    %98 = vector.extract_strided_slice %25 {offsets = [0, 24], sizes = [16, 8], strides = [1, 1]} : vector<16x32xbf16> to vector<16x8xbf16>
    %cst_44 = arith.constant dense<0.000000e+00> : vector<16x16xf32>
    %99 = tpu.matmul %97, %98, %cst_44 {dimension_numbers = #tpu.dot_dimension_numbers<[1], [1], [0], [0], [0, 0, 1, 0], [], []>} : vector<16x8xbf16>, vector<16x8xbf16>, vector<16x16xf32> -> vector<16x16xf32>
    %100 = arith.addf %99, %1 : vector<16x16xf32>
    %cst_45 = arith.constant 0.353553385 : f32
    %101 = vector.broadcast %cst_45 : f32 to vector<16x16xf32>
    %102 = arith.mulf %100, %101 : vector<16x16xf32>
    %cst_46 = arith.constant dense<0xFF800000> : vector<16xf32>
    %103 = vector.multi_reduction <maximumf>, %102, %cst_46 [1] : vector<16x16xf32> to vector<16xf32>
    %104 = vector.shape_cast %103 : vector<16xf32> to vector<16x1xf32>
    %105 = vector.broadcast %104 : vector<16x1xf32> to vector<16x16xf32>
    %106 = arith.subf %102, %105 : vector<16x16xf32>
    %107 = math.exp %106 : vector<16x16xf32>
    %cst_47 = arith.constant dense<0.000000e+00> : vector<16xf32>
    %108 = vector.multi_reduction <add>, %107, %cst_47 [1] : vector<16x16xf32> to vector<16xf32>
    %109 = vector.shape_cast %108 : vector<16xf32> to vector<16x1xf32>
    %110 = tpu.reciprocal %109 {approx = true} : vector<16x1xf32> -> vector<16x1xf32>
    %111 = vector.broadcast %110 : vector<16x1xf32> to vector<16x16xf32>
    %112 = arith.mulf %107, %111 : vector<16x16xf32>
    %113 = arith.truncf %112 : vector<16x16xf32> to vector<16x16xbf16>
    %114 = vector.extract_strided_slice %26 {offsets = [0, 24], sizes = [16, 8], strides = [1, 1]} : vector<16x32xbf16> to vector<16x8xbf16>
    %cst_48 = arith.constant dense<0.000000e+00> : vector<16x8xf32>
    %115 = tpu.matmul %113, %114, %cst_48 {dimension_numbers = #tpu.dot_dimension_numbers<[1], [0], [0], [1], [0, 0, 1, 1], [], []>} : vector<16x16xbf16>, vector<16x8xbf16>, vector<16x8xf32> -> vector<16x8xf32>
    %116 = arith.truncf %115 : vector<16x8xf32> to vector<16x8xbf16>
    %117 = vector.extract_strided_slice %28 {offsets = [24, 0], sizes = [8, 32], strides = [1, 1]} : vector<32x32xbf16> to vector<8x32xbf16>
    %cst_49 = arith.constant dense<0.000000e+00> : vector<16x32xf32>
    %118 = tpu.matmul %116, %117, %cst_49 {dimension_numbers = #tpu.dot_dimension_numbers<[1], [0], [0], [1], [0, 0, 1, 1], [], []>} : vector<16x8xbf16>, vector<8x32xbf16>, vector<16x32xf32> -> vector<16x32xf32>
    %119 = arith.addf %96, %118 : vector<16x32xf32>
    %c0_50 = arith.constant 0 : index
    %c0_51 = arith.constant 0 : index
    %c0_52 = arith.constant 0 : index
    %120 = vector.load %arg9[%c0_50, %c0_51, %c0_52] : memref<2x1x32xf32, #tpu.memory_space<vmem>>, vector<1x1x32xf32>
    %121 = vector.shape_cast %120 : vector<1x1x32xf32> to vector<1x32xf32>
    %122 = vector.broadcast %121 : vector<1x32xf32> to vector<16x32xf32>
    %123 = arith.addf %119, %122 : vector<16x32xf32>
    %124 = arith.addf %0, %123 : vector<16x32xf32>
    %cst_53 = arith.constant dense<0.000000e+00> : vector<16xf32>
    %125 = vector.multi_reduction <add>, %124, %cst_53 [1] : vector<16x32xf32> to vector<16xf32>
    %126 = vector.shape_cast %125 : vector<16xf32> to vector<16x1xf32>
    %cst_54 = arith.constant 3.200000e+01 : f32
    %127 = vector.broadcast %cst_54 : f32 to vector<16x1xf32>
    %128 = arith.divf %126, %127 : vector<16x1xf32>
    %129 = vector.broadcast %128 : vector<16x1xf32> to vector<16x32xf32>
    %130 = arith.subf %124, %129 : vector<16x32xf32>
    %131 = vector.broadcast %128 : vector<16x1xf32> to vector<16x32xf32>
    %132 = arith.subf %124, %131 : vector<16x32xf32>
    %133 = arith.mulf %130, %132 : vector<16x32xf32>
    %cst_55 = arith.constant dense<0.000000e+00> : vector<16xf32>
    %134 = vector.multi_reduction <add>, %133, %cst_55 [1] : vector<16x32xf32> to vector<16xf32>
    %135 = vector.shape_cast %134 : vector<16xf32> to vector<16x1xf32>
    %cst_56 = arith.constant 3.200000e+01 : f32
    %136 = vector.broadcast %cst_56 : f32 to vector<16x1xf32>
    %137 = arith.divf %135, %136 : vector<16x1xf32>
    %138 = vector.broadcast %128 : vector<16x1xf32> to vector<16x32xf32>
    %139 = arith.subf %124, %138 : vector<16x32xf32>
    %cst_57 = arith.constant 9.99999974E-6 : f32
    %140 = vector.broadcast %cst_57 : f32 to vector<16x1xf32>
    %141 = arith.addf %137, %140 : vector<16x1xf32>
    %142 = math.rsqrt %141 : vector<16x1xf32>
    %143 = vector.broadcast %142 : vector<16x1xf32> to vector<16x32xf32>
    %144 = arith.mulf %139, %143 : vector<16x32xf32>
    %c0_58 = arith.constant 0 : index
    %c0_59 = arith.constant 0 : index
    %c0_60 = arith.constant 0 : index
    %145 = vector.load %arg10[%c0_58, %c0_59, %c0_60] : memref<2x1x32xf32, #tpu.memory_space<vmem>>, vector<1x1x32xf32>
    %146 = vector.shape_cast %145 : vector<1x1x32xf32> to vector<1x32xf32>
    %147 = vector.broadcast %146 : vector<1x32xf32> to vector<16x32xf32>
    %148 = arith.mulf %144, %147 : vector<16x32xf32>
    %c0_61 = arith.constant 0 : index
    %c0_62 = arith.constant 0 : index
    %c0_63 = arith.constant 0 : index
    %149 = vector.load %arg11[%c0_61, %c0_62, %c0_63] : memref<2x1x32xf32, #tpu.memory_space<vmem>>, vector<1x1x32xf32>
    %150 = vector.shape_cast %149 : vector<1x1x32xf32> to vector<1x32xf32>
    %151 = vector.broadcast %150 : vector<1x32xf32> to vector<16x32xf32>
    %152 = arith.addf %148, %151 : vector<16x32xf32>
    %153 = arith.truncf %152 : vector<16x32xf32> to vector<16x32xbf16>
    %c0_64 = arith.constant 0 : index
    %c0_65 = arith.constant 0 : index
    %c0_66 = arith.constant 0 : index
    %154 = vector.load %arg12[%c0_64, %c0_65, %c0_66] : memref<2x32x64xbf16, #tpu.memory_space<vmem>>, vector<1x32x64xbf16>
    %155 = vector.shape_cast %154 : vector<1x32x64xbf16> to vector<32x64xbf16>
    %cst_67 = arith.constant dense<0.000000e+00> : vector<16x64xf32>
    %156 = tpu.matmul %153, %155, %cst_67 {dimension_numbers = #tpu.dot_dimension_numbers<[1], [0], [0], [1], [0, 0, 1, 1], [], []>} : vector<16x32xbf16>, vector<32x64xbf16>, vector<16x64xf32> -> vector<16x64xf32>
    %c0_68 = arith.constant 0 : index
    %c0_69 = arith.constant 0 : index
    %c0_70 = arith.constant 0 : index
    %157 = vector.load %arg13[%c0_68, %c0_69, %c0_70] : memref<2x1x64xf32, #tpu.memory_space<vmem>>, vector<1x1x64xf32>
    %158 = vector.shape_cast %157 : vector<1x1x64xf32> to vector<1x64xf32>
    %159 = vector.broadcast %158 : vector<1x64xf32> to vector<16x64xf32>
    %160 = arith.addf %156, %159 : vector<16x64xf32>
    %cst_71 = arith.constant 0.000000e+00 : f32
    %161 = vector.broadcast %cst_71 : f32 to vector<16x64xf32>
    %162 = arith.maximumf %160, %161 : vector<16x64xf32>
    %163 = arith.truncf %162 : vector<16x64xf32> to vector<16x64xbf16>
    %c0_72 = arith.constant 0 : index
    %c0_73 = arith.constant 0 : index
    %c0_74 = arith.constant 0 : index
    %164 = vector.load %arg14[%c0_72, %c0_73, %c0_74] : memref<2x64x32xbf16, #tpu.memory_space<vmem>>, vector<1x64x32xbf16>
    %165 = vector.shape_cast %164 : vector<1x64x32xbf16> to vector<64x32xbf16>
    %cst_75 = arith.constant dense<0.000000e+00> : vector<16x32xf32>
    %166 = tpu.matmul %163, %165, %cst_75 {dimension_numbers = #tpu.dot_dimension_numbers<[1], [0], [0], [1], [0, 0, 1, 1], [], []>} : vector<16x64xbf16>, vector<64x32xbf16>, vector<16x32xf32> -> vector<16x32xf32>
    %c0_76 = arith.constant 0 : index
    %c0_77 = arith.constant 0 : index
    %c0_78 = arith.constant 0 : index
    %167 = vector.load %arg15[%c0_76, %c0_77, %c0_78] : memref<2x1x32xf32, #tpu.memory_space<vmem>>, vector<1x1x32xf32>
    %168 = vector.shape_cast %167 : vector<1x1x32xf32> to vector<1x32xf32>
    %169 = vector.broadcast %168 : vector<1x32xf32> to vector<16x32xf32>
    %170 = arith.addf %166, %169 : vector<16x32xf32>
    %171 = arith.addf %152, %170 : vector<16x32xf32>
    %cst_79 = arith.constant dense<0.000000e+00> : vector<16xf32>
    %172 = vector.multi_reduction <add>, %171, %cst_79 [1] : vector<16x32xf32> to vector<16xf32>
    %173 = vector.shape_cast %172 : vector<16xf32> to vector<16x1xf32>
    %cst_80 = arith.constant 3.200000e+01 : f32
    %174 = vector.broadcast %cst_80 : f32 to vector<16x1xf32>
    %175 = arith.divf %173, %174 : vector<16x1xf32>
    %176 = vector.broadcast %175 : vector<16x1xf32> to vector<16x32xf32>
    %177 = arith.subf %171, %176 : vector<16x32xf32>
    %178 = vector.broadcast %175 : vector<16x1xf32> to vector<16x32xf32>
    %179 = arith.subf %171, %178 : vector<16x32xf32>
    %180 = arith.mulf %177, %179 : vector<16x32xf32>
    %cst_81 = arith.constant dense<0.000000e+00> : vector<16xf32>
    %181 = vector.multi_reduction <add>, %180, %cst_81 [1] : vector<16x32xf32> to vector<16xf32>
    %182 = vector.shape_cast %181 : vector<16xf32> to vector<16x1xf32>
    %cst_82 = arith.constant 3.200000e+01 : f32
    %183 = vector.broadcast %cst_82 : f32 to vector<16x1xf32>
    %184 = arith.divf %182, %183 : vector<16x1xf32>
    %185 = vector.broadcast %175 : vector<16x1xf32> to vector<16x32xf32>
    %186 = arith.subf %171, %185 : vector<16x32xf32>
    %cst_83 = arith.constant 9.99999974E-6 : f32
    %187 = vector.broadcast %cst_83 : f32 to vector<16x1xf32>
    %188 = arith.addf %184, %187 : vector<16x1xf32>
    %189 = math.rsqrt %188 : vector<16x1xf32>
    %190 = vector.broadcast %189 : vector<16x1xf32> to vector<16x32xf32>
    %191 = arith.mulf %186, %190 : vector<16x32xf32>
    %c0_84 = arith.constant 0 : index
    %c0_85 = arith.constant 0 : index
    %c0_86 = arith.constant 0 : index
    %192 = vector.load %arg16[%c0_84, %c0_85, %c0_86] : memref<2x1x32xf32, #tpu.memory_space<vmem>>, vector<1x1x32xf32>
    %193 = vector.shape_cast %192 : vector<1x1x32xf32> to vector<1x32xf32>
    %194 = vector.broadcast %193 : vector<1x32xf32> to vector<16x32xf32>
    %195 = arith.mulf %191, %194 : vector<16x32xf32>
    %c0_87 = arith.constant 0 : index
    %c0_88 = arith.constant 0 : index
    %c0_89 = arith.constant 0 : index
    %196 = vector.load %arg17[%c0_87, %c0_88, %c0_89] : memref<2x1x32xf32, #tpu.memory_space<vmem>>, vector<1x1x32xf32>
    %197 = vector.shape_cast %196 : vector<1x1x32xf32> to vector<1x32xf32>
    %198 = vector.broadcast %197 : vector<1x32xf32> to vector<16x32xf32>
    %199 = arith.addf %195, %198 : vector<16x32xf32>
    %200 = arith.truncf %199 : vector<16x32xf32> to vector<16x32xbf16>
    %c1 = arith.constant 1 : index
    %c0_90 = arith.constant 0 : index
    %c0_91 = arith.constant 0 : index
    %201 = vector.load %arg2[%c1, %c0_90, %c0_91] : memref<2x32x32xbf16, #tpu.memory_space<vmem>>, vector<1x32x32xbf16>
    %202 = vector.shape_cast %201 : vector<1x32x32xbf16> to vector<32x32xbf16>
    %cst_92 = arith.constant dense<0.000000e+00> : vector<16x32xf32>
    %203 = tpu.matmul %200, %202, %cst_92 {dimension_numbers = #tpu.dot_dimension_numbers<[1], [0], [0], [1], [0, 0, 1, 1], [], []>} : vector<16x32xbf16>, vector<32x32xbf16>, vector<16x32xf32> -> vector<16x32xf32>
    %c1_93 = arith.constant 1 : index
    %c0_94 = arith.constant 0 : index
    %c0_95 = arith.constant 0 : index
    %204 = vector.load %arg3[%c1_93, %c0_94, %c0_95] : memref<2x1x32xf32, #tpu.memory_space<vmem>>, vector<1x1x32xf32>
    %205 = vector.shape_cast %204 : vector<1x1x32xf32> to vector<1x32xf32>
    %206 = vector.broadcast %205 : vector<1x32xf32> to vector<16x32xf32>
    %207 = arith.addf %203, %206 : vector<16x32xf32>
    %c1_96 = arith.constant 1 : index
    %c0_97 = arith.constant 0 : index
    %c0_98 = arith.constant 0 : index
    %208 = vector.load %arg4[%c1_96, %c0_97, %c0_98] : memref<2x32x32xbf16, #tpu.memory_space<vmem>>, vector<1x32x32xbf16>
    %209 = vector.shape_cast %208 : vector<1x32x32xbf16> to vector<32x32xbf16>
    %cst_99 = arith.constant dense<0.000000e+00> : vector<16x32xf32>
    %210 = tpu.matmul %200, %209, %cst_99 {dimension_numbers = #tpu.dot_dimension_numbers<[1], [0], [0], [1], [0, 0, 1, 1], [], []>} : vector<16x32xbf16>, vector<32x32xbf16>, vector<16x32xf32> -> vector<16x32xf32>
    %c1_100 = arith.constant 1 : index
    %c0_101 = arith.constant 0 : index
    %c0_102 = arith.constant 0 : index
    %211 = vector.load %arg5[%c1_100, %c0_101, %c0_102] : memref<2x1x32xf32, #tpu.memory_space<vmem>>, vector<1x1x32xf32>
    %212 = vector.shape_cast %211 : vector<1x1x32xf32> to vector<1x32xf32>
    %213 = vector.broadcast %212 : vector<1x32xf32> to vector<16x32xf32>
    %214 = arith.addf %210, %213 : vector<16x32xf32>
    %c1_103 = arith.constant 1 : index
    %c0_104 = arith.constant 0 : index
    %c0_105 = arith.constant 0 : index
    %215 = vector.load %arg6[%c1_103, %c0_104, %c0_105] : memref<2x32x32xbf16, #tpu.memory_space<vmem>>, vector<1x32x32xbf16>
    %216 = vector.shape_cast %215 : vector<1x32x32xbf16> to vector<32x32xbf16>
    %cst_106 = arith.constant dense<0.000000e+00> : vector<16x32xf32>
    %217 = tpu.matmul %200, %216, %cst_106 {dimension_numbers = #tpu.dot_dimension_numbers<[1], [0], [0], [1], [0, 0, 1, 1], [], []>} : vector<16x32xbf16>, vector<32x32xbf16>, vector<16x32xf32> -> vector<16x32xf32>
    %c1_107 = arith.constant 1 : index
    %c0_108 = arith.constant 0 : index
    %c0_109 = arith.constant 0 : index
    %218 = vector.load %arg7[%c1_107, %c0_108, %c0_109] : memref<2x1x32xf32, #tpu.memory_space<vmem>>, vector<1x1x32xf32>
    %219 = vector.shape_cast %218 : vector<1x1x32xf32> to vector<1x32xf32>
    %220 = vector.broadcast %219 : vector<1x32xf32> to vector<16x32xf32>
    %221 = arith.addf %217, %220 : vector<16x32xf32>
    %222 = arith.truncf %207 : vector<16x32xf32> to vector<16x32xbf16>
    %223 = arith.truncf %214 : vector<16x32xf32> to vector<16x32xbf16>
    %224 = arith.truncf %221 : vector<16x32xf32> to vector<16x32xbf16>
    %c1_110 = arith.constant 1 : index
    %c0_111 = arith.constant 0 : index
    %c0_112 = arith.constant 0 : index
    %225 = vector.load %arg8[%c1_110, %c0_111, %c0_112] : memref<2x32x32xbf16, #tpu.memory_space<vmem>>, vector<1x32x32xbf16>
    %226 = vector.shape_cast %225 : vector<1x32x32xbf16> to vector<32x32xbf16>
    %227 = vector.extract_strided_slice %222 {offsets = [0, 0], sizes = [16, 8], strides = [1, 1]} : vector<16x32xbf16> to vector<16x8xbf16>
    %228 = vector.extract_strided_slice %223 {offsets = [0, 0], sizes = [16, 8], strides = [1, 1]} : vector<16x32xbf16> to vector<16x8xbf16>
    %cst_113 = arith.constant dense<0.000000e+00> : vector<16x16xf32>
    %229 = tpu.matmul %227, %228, %cst_113 {dimension_numbers = #tpu.dot_dimension_numbers<[1], [1], [0], [0], [0, 0, 1, 0], [], []>} : vector<16x8xbf16>, vector<16x8xbf16>, vector<16x16xf32> -> vector<16x16xf32>
    %230 = arith.addf %229, %1 : vector<16x16xf32>
    %cst_114 = arith.constant 0.353553385 : f32
    %231 = vector.broadcast %cst_114 : f32 to vector<16x16xf32>
    %232 = arith.mulf %230, %231 : vector<16x16xf32>
    %cst_115 = arith.constant dense<0xFF800000> : vector<16xf32>
    %233 = vector.multi_reduction <maximumf>, %232, %cst_115 [1] : vector<16x16xf32> to vector<16xf32>
    %234 = vector.shape_cast %233 : vector<16xf32> to vector<16x1xf32>
    %235 = vector.broadcast %234 : vector<16x1xf32> to vector<16x16xf32>
    %236 = arith.subf %232, %235 : vector<16x16xf32>
    %237 = math.exp %236 : vector<16x16xf32>
    %cst_116 = arith.constant dense<0.000000e+00> : vector<16xf32>
    %238 = vector.multi_reduction <add>, %237, %cst_116 [1] : vector<16x16xf32> to vector<16xf32>
    %239 = vector.shape_cast %238 : vector<16xf32> to vector<16x1xf32>
    %240 = tpu.reciprocal %239 {approx = true} : vector<16x1xf32> -> vector<16x1xf32>
    %241 = vector.broadcast %240 : vector<16x1xf32> to vector<16x16xf32>
    %242 = arith.mulf %237, %241 : vector<16x16xf32>
    %243 = arith.truncf %242 : vector<16x16xf32> to vector<16x16xbf16>
    %244 = vector.extract_strided_slice %224 {offsets = [0, 0], sizes = [16, 8], strides = [1, 1]} : vector<16x32xbf16> to vector<16x8xbf16>
    %cst_117 = arith.constant dense<0.000000e+00> : vector<16x8xf32>
    %245 = tpu.matmul %243, %244, %cst_117 {dimension_numbers = #tpu.dot_dimension_numbers<[1], [0], [0], [1], [0, 0, 1, 1], [], []>} : vector<16x16xbf16>, vector<16x8xbf16>, vector<16x8xf32> -> vector<16x8xf32>
    %246 = arith.truncf %245 : vector<16x8xf32> to vector<16x8xbf16>
    %247 = vector.extract_strided_slice %226 {offsets = [0, 0], sizes = [8, 32], strides = [1, 1]} : vector<32x32xbf16> to vector<8x32xbf16>
    %cst_118 = arith.constant dense<0.000000e+00> : vector<16x32xf32>
    %248 = tpu.matmul %246, %247, %cst_118 {dimension_numbers = #tpu.dot_dimension_numbers<[1], [0], [0], [1], [0, 0, 1, 1], [], []>} : vector<16x8xbf16>, vector<8x32xbf16>, vector<16x32xf32> -> vector<16x32xf32>
    %249 = vector.extract_strided_slice %222 {offsets = [0, 8], sizes = [16, 8], strides = [1, 1]} : vector<16x32xbf16> to vector<16x8xbf16>
    %250 = vector.extract_strided_slice %223 {offsets = [0, 8], sizes = [16, 8], strides = [1, 1]} : vector<16x32xbf16> to vector<16x8xbf16>
    %cst_119 = arith.constant dense<0.000000e+00> : vector<16x16xf32>
    %251 = tpu.matmul %249, %250, %cst_119 {dimension_numbers = #tpu.dot_dimension_numbers<[1], [1], [0], [0], [0, 0, 1, 0], [], []>} : vector<16x8xbf16>, vector<16x8xbf16>, vector<16x16xf32> -> vector<16x16xf32>
    %252 = arith.addf %251, %1 : vector<16x16xf32>
    %cst_120 = arith.constant 0.353553385 : f32
    %253 = vector.broadcast %cst_120 : f32 to vector<16x16xf32>
    %254 = arith.mulf %252, %253 : vector<16x16xf32>
    %cst_121 = arith.constant dense<0xFF800000> : vector<16xf32>
    %255 = vector.multi_reduction <maximumf>, %254, %cst_121 [1] : vector<16x16xf32> to vector<16xf32>
    %256 = vector.shape_cast %255 : vector<16xf32> to vector<16x1xf32>
    %257 = vector.broadcast %256 : vector<16x1xf32> to vector<16x16xf32>
    %258 = arith.subf %254, %257 : vector<16x16xf32>
    %259 = math.exp %258 : vector<16x16xf32>
    %cst_122 = arith.constant dense<0.000000e+00> : vector<16xf32>
    %260 = vector.multi_reduction <add>, %259, %cst_122 [1] : vector<16x16xf32> to vector<16xf32>
    %261 = vector.shape_cast %260 : vector<16xf32> to vector<16x1xf32>
    %262 = tpu.reciprocal %261 {approx = true} : vector<16x1xf32> -> vector<16x1xf32>
    %263 = vector.broadcast %262 : vector<16x1xf32> to vector<16x16xf32>
    %264 = arith.mulf %259, %263 : vector<16x16xf32>
    %265 = arith.truncf %264 : vector<16x16xf32> to vector<16x16xbf16>
    %266 = vector.extract_strided_slice %224 {offsets = [0, 8], sizes = [16, 8], strides = [1, 1]} : vector<16x32xbf16> to vector<16x8xbf16>
    %cst_123 = arith.constant dense<0.000000e+00> : vector<16x8xf32>
    %267 = tpu.matmul %265, %266, %cst_123 {dimension_numbers = #tpu.dot_dimension_numbers<[1], [0], [0], [1], [0, 0, 1, 1], [], []>} : vector<16x16xbf16>, vector<16x8xbf16>, vector<16x8xf32> -> vector<16x8xf32>
    %268 = arith.truncf %267 : vector<16x8xf32> to vector<16x8xbf16>
    %269 = vector.extract_strided_slice %226 {offsets = [8, 0], sizes = [8, 32], strides = [1, 1]} : vector<32x32xbf16> to vector<8x32xbf16>
    %cst_124 = arith.constant dense<0.000000e+00> : vector<16x32xf32>
    %270 = tpu.matmul %268, %269, %cst_124 {dimension_numbers = #tpu.dot_dimension_numbers<[1], [0], [0], [1], [0, 0, 1, 1], [], []>} : vector<16x8xbf16>, vector<8x32xbf16>, vector<16x32xf32> -> vector<16x32xf32>
    %271 = arith.addf %248, %270 : vector<16x32xf32>
    %272 = vector.extract_strided_slice %222 {offsets = [0, 16], sizes = [16, 8], strides = [1, 1]} : vector<16x32xbf16> to vector<16x8xbf16>
    %273 = vector.extract_strided_slice %223 {offsets = [0, 16], sizes = [16, 8], strides = [1, 1]} : vector<16x32xbf16> to vector<16x8xbf16>
    %cst_125 = arith.constant dense<0.000000e+00> : vector<16x16xf32>
    %274 = tpu.matmul %272, %273, %cst_125 {dimension_numbers = #tpu.dot_dimension_numbers<[1], [1], [0], [0], [0, 0, 1, 0], [], []>} : vector<16x8xbf16>, vector<16x8xbf16>, vector<16x16xf32> -> vector<16x16xf32>
    %275 = arith.addf %274, %1 : vector<16x16xf32>
    %cst_126 = arith.constant 0.353553385 : f32
    %276 = vector.broadcast %cst_126 : f32 to vector<16x16xf32>
    %277 = arith.mulf %275, %276 : vector<16x16xf32>
    %cst_127 = arith.constant dense<0xFF800000> : vector<16xf32>
    %278 = vector.multi_reduction <maximumf>, %277, %cst_127 [1] : vector<16x16xf32> to vector<16xf32>
    %279 = vector.shape_cast %278 : vector<16xf32> to vector<16x1xf32>
    %280 = vector.broadcast %279 : vector<16x1xf32> to vector<16x16xf32>
    %281 = arith.subf %277, %280 : vector<16x16xf32>
    %282 = math.exp %281 : vector<16x16xf32>
    %cst_128 = arith.constant dense<0.000000e+00> : vector<16xf32>
    %283 = vector.multi_reduction <add>, %282, %cst_128 [1] : vector<16x16xf32> to vector<16xf32>
    %284 = vector.shape_cast %283 : vector<16xf32> to vector<16x1xf32>
    %285 = tpu.reciprocal %284 {approx = true} : vector<16x1xf32> -> vector<16x1xf32>
    %286 = vector.broadcast %285 : vector<16x1xf32> to vector<16x16xf32>
    %287 = arith.mulf %282, %286 : vector<16x16xf32>
    %288 = arith.truncf %287 : vector<16x16xf32> to vector<16x16xbf16>
    %289 = vector.extract_strided_slice %224 {offsets = [0, 16], sizes = [16, 8], strides = [1, 1]} : vector<16x32xbf16> to vector<16x8xbf16>
    %cst_129 = arith.constant dense<0.000000e+00> : vector<16x8xf32>
    %290 = tpu.matmul %288, %289, %cst_129 {dimension_numbers = #tpu.dot_dimension_numbers<[1], [0], [0], [1], [0, 0, 1, 1], [], []>} : vector<16x16xbf16>, vector<16x8xbf16>, vector<16x8xf32> -> vector<16x8xf32>
    %291 = arith.truncf %290 : vector<16x8xf32> to vector<16x8xbf16>
    %292 = vector.extract_strided_slice %226 {offsets = [16, 0], sizes = [8, 32], strides = [1, 1]} : vector<32x32xbf16> to vector<8x32xbf16>
    %cst_130 = arith.constant dense<0.000000e+00> : vector<16x32xf32>
    %293 = tpu.matmul %291, %292, %cst_130 {dimension_numbers = #tpu.dot_dimension_numbers<[1], [0], [0], [1], [0, 0, 1, 1], [], []>} : vector<16x8xbf16>, vector<8x32xbf16>, vector<16x32xf32> -> vector<16x32xf32>
    %294 = arith.addf %271, %293 : vector<16x32xf32>
    %295 = vector.extract_strided_slice %222 {offsets = [0, 24], sizes = [16, 8], strides = [1, 1]} : vector<16x32xbf16> to vector<16x8xbf16>
    %296 = vector.extract_strided_slice %223 {offsets = [0, 24], sizes = [16, 8], strides = [1, 1]} : vector<16x32xbf16> to vector<16x8xbf16>
    %cst_131 = arith.constant dense<0.000000e+00> : vector<16x16xf32>
    %297 = tpu.matmul %295, %296, %cst_131 {dimension_numbers = #tpu.dot_dimension_numbers<[1], [1], [0], [0], [0, 0, 1, 0], [], []>} : vector<16x8xbf16>, vector<16x8xbf16>, vector<16x16xf32> -> vector<16x16xf32>
    %298 = arith.addf %297, %1 : vector<16x16xf32>
    %cst_132 = arith.constant 0.353553385 : f32
    %299 = vector.broadcast %cst_132 : f32 to vector<16x16xf32>
    %300 = arith.mulf %298, %299 : vector<16x16xf32>
    %cst_133 = arith.constant dense<0xFF800000> : vector<16xf32>
    %301 = vector.multi_reduction <maximumf>, %300, %cst_133 [1] : vector<16x16xf32> to vector<16xf32>
    %302 = vector.shape_cast %301 : vector<16xf32> to vector<16x1xf32>
    %303 = vector.broadcast %302 : vector<16x1xf32> to vector<16x16xf32>
    %304 = arith.subf %300, %303 : vector<16x16xf32>
    %305 = math.exp %304 : vector<16x16xf32>
    %cst_134 = arith.constant dense<0.000000e+00> : vector<16xf32>
    %306 = vector.multi_reduction <add>, %305, %cst_134 [1] : vector<16x16xf32> to vector<16xf32>
    %307 = vector.shape_cast %306 : vector<16xf32> to vector<16x1xf32>
    %308 = tpu.reciprocal %307 {approx = true} : vector<16x1xf32> -> vector<16x1xf32>
    %309 = vector.broadcast %308 : vector<16x1xf32> to vector<16x16xf32>
    %310 = arith.mulf %305, %309 : vector<16x16xf32>
    %311 = arith.truncf %310 : vector<16x16xf32> to vector<16x16xbf16>
    %312 = vector.extract_strided_slice %224 {offsets = [0, 24], sizes = [16, 8], strides = [1, 1]} : vector<16x32xbf16> to vector<16x8xbf16>
    %cst_135 = arith.constant dense<0.000000e+00> : vector<16x8xf32>
    %313 = tpu.matmul %311, %312, %cst_135 {dimension_numbers = #tpu.dot_dimension_numbers<[1], [0], [0], [1], [0, 0, 1, 1], [], []>} : vector<16x16xbf16>, vector<16x8xbf16>, vector<16x8xf32> -> vector<16x8xf32>
    %314 = arith.truncf %313 : vector<16x8xf32> to vector<16x8xbf16>
    %315 = vector.extract_strided_slice %226 {offsets = [24, 0], sizes = [8, 32], strides = [1, 1]} : vector<32x32xbf16> to vector<8x32xbf16>
    %cst_136 = arith.constant dense<0.000000e+00> : vector<16x32xf32>
    %316 = tpu.matmul %314, %315, %cst_136 {dimension_numbers = #tpu.dot_dimension_numbers<[1], [0], [0], [1], [0, 0, 1, 1], [], []>} : vector<16x8xbf16>, vector<8x32xbf16>, vector<16x32xf32> -> vector<16x32xf32>
    %317 = arith.addf %294, %316 : vector<16x32xf32>
    %c1_137 = arith.constant 1 : index
    %c0_138 = arith.constant 0 : index
    %c0_139 = arith.constant 0 : index
    %318 = vector.load %arg9[%c1_137, %c0_138, %c0_139] : memref<2x1x32xf32, #tpu.memory_space<vmem>>, vector<1x1x32xf32>
    %319 = vector.shape_cast %318 : vector<1x1x32xf32> to vector<1x32xf32>
    %320 = vector.broadcast %319 : vector<1x32xf32> to vector<16x32xf32>
    %321 = arith.addf %317, %320 : vector<16x32xf32>
    %322 = arith.addf %199, %321 : vector<16x32xf32>
    %cst_140 = arith.constant dense<0.000000e+00> : vector<16xf32>
    %323 = vector.multi_reduction <add>, %322, %cst_140 [1] : vector<16x32xf32> to vector<16xf32>
    %324 = vector.shape_cast %323 : vector<16xf32> to vector<16x1xf32>
    %cst_141 = arith.constant 3.200000e+01 : f32
    %325 = vector.broadcast %cst_141 : f32 to vector<16x1xf32>
    %326 = arith.divf %324, %325 : vector<16x1xf32>
    %327 = vector.broadcast %326 : vector<16x1xf32> to vector<16x32xf32>
    %328 = arith.subf %322, %327 : vector<16x32xf32>
    %329 = vector.broadcast %326 : vector<16x1xf32> to vector<16x32xf32>
    %330 = arith.subf %322, %329 : vector<16x32xf32>
    %331 = arith.mulf %328, %330 : vector<16x32xf32>
    %cst_142 = arith.constant dense<0.000000e+00> : vector<16xf32>
    %332 = vector.multi_reduction <add>, %331, %cst_142 [1] : vector<16x32xf32> to vector<16xf32>
    %333 = vector.shape_cast %332 : vector<16xf32> to vector<16x1xf32>
    %cst_143 = arith.constant 3.200000e+01 : f32
    %334 = vector.broadcast %cst_143 : f32 to vector<16x1xf32>
    %335 = arith.divf %333, %334 : vector<16x1xf32>
    %336 = vector.broadcast %326 : vector<16x1xf32> to vector<16x32xf32>
    %337 = arith.subf %322, %336 : vector<16x32xf32>
    %cst_144 = arith.constant 9.99999974E-6 : f32
    %338 = vector.broadcast %cst_144 : f32 to vector<16x1xf32>
    %339 = arith.addf %335, %338 : vector<16x1xf32>
    %340 = math.rsqrt %339 : vector<16x1xf32>
    %341 = vector.broadcast %340 : vector<16x1xf32> to vector<16x32xf32>
    %342 = arith.mulf %337, %341 : vector<16x32xf32>
    %c1_145 = arith.constant 1 : index
    %c0_146 = arith.constant 0 : index
    %c0_147 = arith.constant 0 : index
    %343 = vector.load %arg10[%c1_145, %c0_146, %c0_147] : memref<2x1x32xf32, #tpu.memory_space<vmem>>, vector<1x1x32xf32>
    %344 = vector.shape_cast %343 : vector<1x1x32xf32> to vector<1x32xf32>
    %345 = vector.broadcast %344 : vector<1x32xf32> to vector<16x32xf32>
    %346 = arith.mulf %342, %345 : vector<16x32xf32>
    %c1_148 = arith.constant 1 : index
    %c0_149 = arith.constant 0 : index
    %c0_150 = arith.constant 0 : index
    %347 = vector.load %arg11[%c1_148, %c0_149, %c0_150] : memref<2x1x32xf32, #tpu.memory_space<vmem>>, vector<1x1x32xf32>
    %348 = vector.shape_cast %347 : vector<1x1x32xf32> to vector<1x32xf32>
    %349 = vector.broadcast %348 : vector<1x32xf32> to vector<16x32xf32>
    %350 = arith.addf %346, %349 : vector<16x32xf32>
    %351 = arith.truncf %350 : vector<16x32xf32> to vector<16x32xbf16>
    %c1_151 = arith.constant 1 : index
    %c0_152 = arith.constant 0 : index
    %c0_153 = arith.constant 0 : index
    %352 = vector.load %arg12[%c1_151, %c0_152, %c0_153] : memref<2x32x64xbf16, #tpu.memory_space<vmem>>, vector<1x32x64xbf16>
    %353 = vector.shape_cast %352 : vector<1x32x64xbf16> to vector<32x64xbf16>
    %cst_154 = arith.constant dense<0.000000e+00> : vector<16x64xf32>
    %354 = tpu.matmul %351, %353, %cst_154 {dimension_numbers = #tpu.dot_dimension_numbers<[1], [0], [0], [1], [0, 0, 1, 1], [], []>} : vector<16x32xbf16>, vector<32x64xbf16>, vector<16x64xf32> -> vector<16x64xf32>
    %c1_155 = arith.constant 1 : index
    %c0_156 = arith.constant 0 : index
    %c0_157 = arith.constant 0 : index
    %355 = vector.load %arg13[%c1_155, %c0_156, %c0_157] : memref<2x1x64xf32, #tpu.memory_space<vmem>>, vector<1x1x64xf32>
    %356 = vector.shape_cast %355 : vector<1x1x64xf32> to vector<1x64xf32>
    %357 = vector.broadcast %356 : vector<1x64xf32> to vector<16x64xf32>
    %358 = arith.addf %354, %357 : vector<16x64xf32>
    %cst_158 = arith.constant 0.000000e+00 : f32
    %359 = vector.broadcast %cst_158 : f32 to vector<16x64xf32>
    %360 = arith.maximumf %358, %359 : vector<16x64xf32>
    %361 = arith.truncf %360 : vector<16x64xf32> to vector<16x64xbf16>
    %c1_159 = arith.constant 1 : index
    %c0_160 = arith.constant 0 : index
    %c0_161 = arith.constant 0 : index
    %362 = vector.load %arg14[%c1_159, %c0_160, %c0_161] : memref<2x64x32xbf16, #tpu.memory_space<vmem>>, vector<1x64x32xbf16>
    %363 = vector.shape_cast %362 : vector<1x64x32xbf16> to vector<64x32xbf16>
    %cst_162 = arith.constant dense<0.000000e+00> : vector<16x32xf32>
    %364 = tpu.matmul %361, %363, %cst_162 {dimension_numbers = #tpu.dot_dimension_numbers<[1], [0], [0], [1], [0, 0, 1, 1], [], []>} : vector<16x64xbf16>, vector<64x32xbf16>, vector<16x32xf32> -> vector<16x32xf32>
    %c1_163 = arith.constant 1 : index
    %c0_164 = arith.constant 0 : index
    %c0_165 = arith.constant 0 : index
    %365 = vector.load %arg15[%c1_163, %c0_164, %c0_165] : memref<2x1x32xf32, #tpu.memory_space<vmem>>, vector<1x1x32xf32>
    %366 = vector.shape_cast %365 : vector<1x1x32xf32> to vector<1x32xf32>
    %367 = vector.broadcast %366 : vector<1x32xf32> to vector<16x32xf32>
    %368 = arith.addf %364, %367 : vector<16x32xf32>
    %369 = arith.addf %350, %368 : vector<16x32xf32>
    %cst_166 = arith.constant dense<0.000000e+00> : vector<16xf32>
    %370 = vector.multi_reduction <add>, %369, %cst_166 [1] : vector<16x32xf32> to vector<16xf32>
    %371 = vector.shape_cast %370 : vector<16xf32> to vector<16x1xf32>
    %cst_167 = arith.constant 3.200000e+01 : f32
    %372 = vector.broadcast %cst_167 : f32 to vector<16x1xf32>
    %373 = arith.divf %371, %372 : vector<16x1xf32>
    %374 = vector.broadcast %373 : vector<16x1xf32> to vector<16x32xf32>
    %375 = arith.subf %369, %374 : vector<16x32xf32>
    %376 = vector.broadcast %373 : vector<16x1xf32> to vector<16x32xf32>
    %377 = arith.subf %369, %376 : vector<16x32xf32>
    %378 = arith.mulf %375, %377 : vector<16x32xf32>
    %cst_168 = arith.constant dense<0.000000e+00> : vector<16xf32>
    %379 = vector.multi_reduction <add>, %378, %cst_168 [1] : vector<16x32xf32> to vector<16xf32>
    %380 = vector.shape_cast %379 : vector<16xf32> to vector<16x1xf32>
    %cst_169 = arith.constant 3.200000e+01 : f32
    %381 = vector.broadcast %cst_169 : f32 to vector<16x1xf32>
    %382 = arith.divf %380, %381 : vector<16x1xf32>
    %383 = vector.broadcast %373 : vector<16x1xf32> to vector<16x32xf32>
    %384 = arith.subf %369, %383 : vector<16x32xf32>
    %cst_170 = arith.constant 9.99999974E-6 : f32
    %385 = vector.broadcast %cst_170 : f32 to vector<16x1xf32>
    %386 = arith.addf %382, %385 : vector<16x1xf32>
    %387 = math.rsqrt %386 : vector<16x1xf32>
    %388 = vector.broadcast %387 : vector<16x1xf32> to vector<16x32xf32>
    %389 = arith.mulf %384, %388 : vector<16x32xf32>
    %c1_171 = arith.constant 1 : index
    %c0_172 = arith.constant 0 : index
    %c0_173 = arith.constant 0 : index
    %390 = vector.load %arg16[%c1_171, %c0_172, %c0_173] : memref<2x1x32xf32, #tpu.memory_space<vmem>>, vector<1x1x32xf32>
    %391 = vector.shape_cast %390 : vector<1x1x32xf32> to vector<1x32xf32>
    %392 = vector.broadcast %391 : vector<1x32xf32> to vector<16x32xf32>
    %393 = arith.mulf %389, %392 : vector<16x32xf32>
    %c1_174 = arith.constant 1 : index
    %c0_175 = arith.constant 0 : index
    %c0_176 = arith.constant 0 : index
    %394 = vector.load %arg17[%c1_174, %c0_175, %c0_176] : memref<2x1x32xf32, #tpu.memory_space<vmem>>, vector<1x1x32xf32>
    %395 = vector.shape_cast %394 : vector<1x1x32xf32> to vector<1x32xf32>
    %396 = vector.broadcast %395 : vector<1x32xf32> to vector<16x32xf32>
    %397 = arith.addf %393, %396 : vector<16x32xf32>
    %c0_177 = arith.constant 0 : index
    %c0_178 = arith.constant 0 : index
    %398 = vector.load %arg18[%c0_177, %c0_178] : memref<16x32xf32, #tpu.memory_space<vmem>>, vector<16x32xf32>
    tpu.vector_store %arg18[%c0_177, %c0_178], %397 {strides = array<i32>} : memref<16x32xf32, #tpu.memory_space<vmem>>, vector<16x32xf32>,
    return
  }
}

</mosaic_0001>

<llo_original>
// kernel: _lambda_.1
$region0: #{_lambda_.1}
  #allocation0 [shape = 'u32[]', space=smem, size = 0x4, offset = 0x4, fixed_abs, tag = 'smem constant byte address 0x4 - core index']
  #allocation1 [shape = 'u32[144,128]{1,0:T(1,128)}', space=vmem, size = 0x12000, scoped, tag = 'internal scratch']
  %s0 = inlined_call_operand.vmem [shape: f32[16,32], index: 0, kind: input, shape index: {}]
  %s1 = inlined_call_operand.vmem [shape: f32[16,16], index: 1, kind: input, shape index: {}]
  %s2 = inlined_call_operand.vmem [shape: bf16[2,32,32], index: 2, kind: input, shape index: {}]
  %s3 = inlined_call_operand.vmem [shape: f32[2,1,32], index: 3, kind: input, shape index: {}]
  %s4 = inlined_call_operand.vmem [shape: bf16[2,32,32], index: 4, kind: input, shape index: {}]
  %s5 = inlined_call_operand.vmem [shape: f32[2,1,32], index: 5, kind: input, shape index: {}]
  %s6 = inlined_call_operand.vmem [shape: bf16[2,32,32], index: 6, kind: input, shape index: {}]
  %s7 = inlined_call_operand.vmem [shape: f32[2,1,32], index: 7, kind: input, shape index: {}]
  %s8 = inlined_call_operand.vmem [shape: bf16[2,32,32], index: 8, kind: input, shape index: {}]
  %s9 = inlined_call_operand.vmem [shape: f32[2,1,32], index: 9, kind: input, shape index: {}]
  %s10 = inlined_call_operand.vmem [shape: f32[2,1,32], index: 10, kind: input, shape index: {}]
  %s11 = inlined_call_operand.vmem [shape: f32[2,1,32], index: 11, kind: input, shape index: {}]
  %s12 = inlined_call_operand.vmem [shape: bf16[2,32,64], index: 12, kind: input, shape index: {}]
  %s13 = inlined_call_operand.vmem [shape: f32[2,1,64], index: 13, kind: input, shape index: {}]
  %s14 = inlined_call_operand.vmem [shape: bf16[2,64,32], index: 14, kind: input, shape index: {}]
  %s15 = inlined_call_operand.vmem [shape: f32[2,1,32], index: 15, kind: input, shape index: {}]
  %s16 = inlined_call_operand.vmem [shape: f32[2,1,32], index: 16, kind: input, shape index: {}]
  %s17 = inlined_call_operand.vmem [shape: f32[2,1,32], index: 17, kind: input, shape index: {}]
  %s18 = inlined_call_operand.hbm [shape: f32[16,32], index: 18, kind: output, shape index: {}]
  %s19 = sld [smem:[#allocation0]]
  $region82: #{_lambda_.1} parent=0
    _
  %s21 = ssub.s32 1, %s19
  %s22 = scalar_select 0, %s21, %s19
  $region1: #{_lambda_.1} parent=0
    #allocation2 [shape = 'u8[8192]{0}', space=vmem, size = 0x2000, scoped, tag = 'output window, operand 0, single buffered']
    #allocation3 [shape = 's32[1]{0}', space=sflag, size = 0x4, scoped, tag = 'scoped memory for _lambda_.1']
    %23 = vsyncpa [#allocation3], 0
    // Predicated region
    $region2: #{_lambda_.1} parent=1 // pred_check
      _
    $region3: #{_lambda_.1} parent=1 // pred_check_branch
      %25 = sbr.rel (0) target = $region5
    $region4: #{_lambda_.1} parent=1 // pred_region
      _
    $region5: #{_lambda_.1} parent=1 // pred_fallthru
      _
    // Predicated region
    $region6: #{_lambda_.1} parent=1 // pred_check
      _
    $region7: #{_lambda_.1} parent=1 // pred_check_branch
      %27 = sbr.rel (0) target = $region9
    $region8: #{_lambda_.1} parent=1 // pred_region
      _
    $region9: #{_lambda_.1} parent=1 // pred_fallthru
      _
    // Predicated region
    $region10: #{_lambda_.1} parent=1 // pred_check
      _
    $region11: #{_lambda_.1} parent=1 // pred_check_branch
      %29 = sbr.rel (0) target = $region13
    $region12: #{_lambda_.1} parent=1 // pred_region
      _
    $region13: #{_lambda_.1} parent=1 // pred_fallthru
      _
    // Predicated region
    $region14: #{_lambda_.1} parent=1 // pred_check
      _
    $region15: #{_lambda_.1} parent=1 // pred_check_branch
      %31 = sbr.rel (0) target = $region17
    $region16: #{_lambda_.1} parent=1 // pred_region
      _
    $region17: #{_lambda_.1} parent=1 // pred_fallthru
      _
    // Predicated region
    $region18: #{_lambda_.1} parent=1 // pred_check
      _
    $region19: #{_lambda_.1} parent=1 // pred_check_branch
      %33 = sbr.rel (0) target = $region21
    $region20: #{_lambda_.1} parent=1 // pred_region
      _
    $region21: #{_lambda_.1} parent=1 // pred_fallthru
      _
    // Predicated region
    $region22: #{_lambda_.1} parent=1 // pred_check
      _
    $region23: #{_lambda_.1} parent=1 // pred_check_branch
      %35 = sbr.rel (0) target = $region25
    $region24: #{_lambda_.1} parent=1 // pred_region
      _
    $region25: #{_lambda_.1} parent=1 // pred_fallthru
      _
    // Predicated region
    $region26: #{_lambda_.1} parent=1 // pred_check
      _
    $region27: #{_lambda_.1} parent=1 // pred_check_branch
      %37 = sbr.rel (0) target = $region29
    $region28: #{_lambda_.1} parent=1 // pred_region
      _
    $region29: #{_lambda_.1} parent=1 // pred_fallthru
      _
    // Predicated region
    $region30: #{_lambda_.1} parent=1 // pred_check
      _
    $region31: #{_lambda_.1} parent=1 // pred_check_branch
      %39 = sbr.rel (0) target = $region33
    $region32: #{_lambda_.1} parent=1 // pred_region
      _
    $region33: #{_lambda_.1} parent=1 // pred_fallthru
      _
    // Predicated region
    $region34: #{_lambda_.1} parent=1 // pred_check
      _
    $region35: #{_lambda_.1} parent=1 // pred_check_branch
      %41 = sbr.rel (0) target = $region37
    $region36: #{_lambda_.1} parent=1 // pred_region
      _
    $region37: #{_lambda_.1} parent=1 // pred_fallthru
      _
    // Predicated region
    $region38: #{_lambda_.1} parent=1 // pred_check
      _
    $region39: #{_lambda_.1} parent=1 // pred_check_branch
      %43 = sbr.rel (0) target = $region41
    $region40: #{_lambda_.1} parent=1 // pred_region
      _
    $region41: #{_lambda_.1} parent=1 // pred_fallthru
      _
    // Predicated region
    $region42: #{_lambda_.1} parent=1 // pred_check
      _
    $region43: #{_lambda_.1} parent=1 // pred_check_branch
      %45 = sbr.rel (0) target = $region45
    $region44: #{_lambda_.1} parent=1 // pred_region
      _
    $region45: #{_lambda_.1} parent=1 // pred_fallthru
      _
    // Predicated region
    $region46: #{_lambda_.1} parent=1 // pred_check
      _
    $region47: #{_lambda_.1} parent=1 // pred_check_branch
      %47 = sbr.rel (0) target = $region49
    $region48: #{_lambda_.1} parent=1 // pred_region
      _
    $region49: #{_lambda_.1} parent=1 // pred_fallthru
      _
    // Predicated region
    $region50: #{_lambda_.1} parent=1 // pred_check
      _
    $region51: #{_lambda_.1} parent=1 // pred_check_branch
      %49 = sbr.rel (0) target = $region53
    $region52: #{_lambda_.1} parent=1 // pred_region
      _
    $region53: #{_lambda_.1} parent=1 // pred_fallthru
      _
    // Predicated region
    $region54: #{_lambda_.1} parent=1 // pred_check
      _
    $region55: #{_lambda_.1} parent=1 // pred_check_branch
      %51 = sbr.rel (0) target = $region57
    $region56: #{_lambda_.1} parent=1 // pred_region
      _
    $region57: #{_lambda_.1} parent=1 // pred_fallthru
      _
    // Predicated region
    $region58: #{_lambda_.1} parent=1 // pred_check
      _
    $region59: #{_lambda_.1} parent=1 // pred_check_branch
      %53 = sbr.rel (0) target = $region61
    $region60: #{_lambda_.1} parent=1 // pred_region
      _
    $region61: #{_lambda_.1} parent=1 // pred_fallthru
      _
    // Predicated region
    $region62: #{_lambda_.1} parent=1 // pred_check
      _
    $region63: #{_lambda_.1} parent=1 // pred_check_branch
      %55 = sbr.rel (0) target = $region65
    $region64: #{_lambda_.1} parent=1 // pred_region
      _
    $region65: #{_lambda_.1} parent=1 // pred_fallthru
      _
    // Predicated region
    $region66: #{_lambda_.1} parent=1 // pred_check
      _
    $region67: #{_lambda_.1} parent=1 // pred_check_branch
      %57 = sbr.rel (0) target = $region69
    $region68: #{_lambda_.1} parent=1 // pred_region
      _
    $region69: #{_lambda_.1} parent=1 // pred_fallthru
      _
    // Predicated region
    $region70: #{_lambda_.1} parent=1 // pred_check
      _
    $region71: #{_lambda_.1} parent=1 // pred_check_branch
      %59 = sbr.rel (0) target = $region73
    $region72: #{_lambda_.1} parent=1 // pred_region
      _
    $region73: #{_lambda_.1} parent=1 // pred_fallthru
      _
    %v61 = vld [vmem:[%s0] sm:$0xff]
    %v62 = vld [vmem:[%s0 + $0x8] sm:$0xff]
    %v63 = vld [vmem:[%s1] sm:$0xff]
    %v64 = vld [vmem:[%s1 + $0x8] sm:$0xff]
    %v65 = vpack.c.bf16 %v62, %v61
    %v66 = vld [vmem:[%s2] sm:$0xf]
    %v67 = vld [vmem:[%s2 + $0x4] sm:$0xf]
    %v68 = vld [vmem:[%s2 + $0x8] sm:$0xf]
    %v69 = vld [vmem:[%s2 + $0xc] sm:$0xf]
    %v70 = vld [vmem:[%s3] sm:$0x1]
    %v72 = vlaneseq
    %v73 = vshrl.u32 %v72, 7
    %v74 = vsub.s32 0, %v73
    %v75 = vrot.slane %v70, %v74
    %v81 = vunpack.c.l.b16 %v66
    %v82 = vunpack.c.l.b16 %v67
    %v83 = vunpack.c.l.b16 %v68
    %v84 = vunpack.c.l.b16 %v69
    %v85 = vpack.c.b16 %v82, %v81
    %v86 = vpack.c.b16 %v84, %v83
    %vm89 = vcmask 261120
    %v91 = vsel %vm89, %v65, 0
    %93 = vmatprep.subr.bf16.mxu0 0
    %94 = vmatpush1.bf16.msra.mxu0 0
    %95 = vmatprep.subr.bf16.mxu0 0
    %96 = vmatpush1.bf16.msra.mxu0 0
    %97 = vmatprep.subr.bf16.mxu0 0
    %98 = vmatpush1.bf16.msra.mxu0 0
    %99 = vmatprep.subr.bf16.mxu0 0
    %100 = vmatpush1.bf16.msra.mxu0 0
    %101 = vmatprep.subr.bf16.mxu0 0
    %102 = vmatpush1.bf16.msra.mxu0 0
    %103 = vmatprep.subr.bf16.mxu0 0
    %104 = vmatpush1.bf16.msra.mxu0 0
    %105 = vmatprep.subr.bf16.mxu0 0
    %106 = vmatpush1.bf16.msra.mxu0 %v86
    %107 = vmatprep.subr.bf16.mxu0 0
    %108 = vmatpush1.bf16.msra.mxu0 %v85
    %109 = vmatprep.subr.bf16.mxu0 0
    %110 = vmatpush2.bf16.msra.mxu0 0
    %111 = vmatprep.subr.bf16.mxu0 0
    %112 = vmatpush2.bf16.msra.mxu0 0
    %113 = vmatprep.subr.bf16.mxu0 0
    %114 = vmatpush2.bf16.msra.mxu0 0
    %115 = vmatprep.subr.bf16.mxu0 0
    %116 = vmatpush2.bf16.msra.mxu0 0
    %117 = vmatprep.subr.bf16.mxu0 0
    %118 = vmatpush2.bf16.msra.mxu0 0
    %119 = vmatprep.subr.bf16.mxu0 0
    %120 = vmatpush2.bf16.msra.mxu0 0
    %121 = vmatprep.subr.bf16.mxu0 0
    %122 = vmatpush2.bf16.msra.mxu0 0
    %123 = vmatprep.subr.bf16.mxu0 0
    %124 = vmatpush2.bf16.msra.mxu0 0
    %125 = vmatprep.mubr.bf16.mxu0 0
    %126 = vmatmul.mubr.bf16.gmra.mxu0 %v91
    %v127 = vpop.f32.mrf.mxu0
    %v128 = vadd.f32 %v75, %v127
    %v129 = vpop.f32.mrf.mxu0
    %v130 = vpop.f32.mrf.mxu0
    %v131 = vadd.f32 %v75, %v130
    %v132 = vpop.f32.mrf.mxu0
    %133 = vdwg.mxu0
    %v134 = vld [vmem:[%s4] sm:$0xf]
    %v135 = vld [vmem:[%s4 + $0x4] sm:$0xf]
    %v136 = vld [vmem:[%s4 + $0x8] sm:$0xf]
    %v137 = vld [vmem:[%s4 + $0xc] sm:$0xf]
    %v138 = vld [vmem:[%s5] sm:$0x1]
    %v140 = vlaneseq
    %v141 = vshrl.u32 %v140, 7
    %v142 = vsub.s32 0, %v141
    %v143 = vrot.slane %v138, %v142
    %v149 = vunpack.c.l.b16 %v134
    %v150 = vunpack.c.l.b16 %v135
    %v151 = vunpack.c.l.b16 %v136
    %v152 = vunpack.c.l.b16 %v137
    %v153 = vpack.c.b16 %v150, %v149
    %v154 = vpack.c.b16 %v152, %v151
    %157 = vmatprep.subr.bf16.mxu0 0
    %158 = vmatpush1.bf16.msra.mxu0 0
    %159 = vmatprep.subr.bf16.mxu0 0
    %160 = vmatpush1.bf16.msra.mxu0 0
    %161 = vmatprep.subr.bf16.mxu0 0
    %162 = vmatpush1.bf16.msra.mxu0 0
    %163 = vmatprep.subr.bf16.mxu0 0
    %164 = vmatpush1.bf16.msra.mxu0 0
    %165 = vmatprep.subr.bf16.mxu0 0
    %166 = vmatpush1.bf16.msra.mxu0 0
    %167 = vmatprep.subr.bf16.mxu0 0
    %168 = vmatpush1.bf16.msra.mxu0 0
    %169 = vmatprep.subr.bf16.mxu0 0
    %170 = vmatpush1.bf16.msra.mxu0 %v154
    %171 = vmatprep.subr.bf16.mxu0 0
    %172 = vmatpush1.bf16.msra.mxu0 %v153
    %173 = vmatprep.subr.bf16.mxu0 0
    %174 = vmatpush2.bf16.msra.mxu0 0
    %175 = vmatprep.subr.bf16.mxu0 0
    %176 = vmatpush2.bf16.msra.mxu0 0
    %177 = vmatprep.subr.bf16.mxu0 0
    %178 = vmatpush2.bf16.msra.mxu0 0
    %179 = vmatprep.subr.bf16.mxu0 0
    %180 = vmatpush2.bf16.msra.mxu0 0
    %181 = vmatprep.subr.bf16.mxu0 0
    %182 = vmatpush2.bf16.msra.mxu0 0
    %183 = vmatprep.subr.bf16.mxu0 0
    %184 = vmatpush2.bf16.msra.mxu0 0
    %185 = vmatprep.subr.bf16.mxu0 0
    %186 = vmatpush2.bf16.msra.mxu0 0
    %187 = vmatprep.subr.bf16.mxu0 0
    %188 = vmatpush2.bf16.msra.mxu0 0
    %189 = vmatprep.mubr.bf16.mxu0 0
    %190 = vmatmul.mubr.bf16.gmra.mxu0 %v91
    %v191 = vpop.f32.mrf.mxu0
    %v192 = vadd.f32 %v143, %v191
    %v193 = vpop.f32.mrf.mxu0
    %v194 = vpop.f32.mrf.mxu0
    %v195 = vadd.f32 %v143, %v194
    %v196 = vpop.f32.mrf.mxu0
    %197 = vdwg.mxu0
    %v198 = vld [vmem:[%s6] sm:$0xf]
    %v199 = vld [vmem:[%s6 + $0x4] sm:$0xf]
    %v200 = vld [vmem:[%s6 + $0x8] sm:$0xf]
    %v201 = vld [vmem:[%s6 + $0xc] sm:$0xf]
    %v202 = vld [vmem:[%s7] sm:$0x1]
    %v204 = vlaneseq
    %v205 = vshrl.u32 %v204, 7
    %v206 = vsub.s32 0, %v205
    %v207 = vrot.slane %v202, %v206
    %v213 = vunpack.c.l.b16 %v198
    %v214 = vunpack.c.l.b16 %v199
    %v215 = vunpack.c.l.b16 %v200
    %v216 = vunpack.c.l.b16 %v201
    %v217 = vpack.c.b16 %v214, %v213
    %v218 = vpack.c.b16 %v216, %v215
    %221 = vmatprep.subr.bf16.mxu0 0
    %222 = vmatpush1.bf16.msra.mxu0 0
    %223 = vmatprep.subr.bf16.mxu0 0
    %224 = vmatpush1.bf16.msra.mxu0 0
    %225 = vmatprep.subr.bf16.mxu0 0
    %226 = vmatpush1.bf16.msra.mxu0 0
    %227 = vmatprep.subr.bf16.mxu0 0
    %228 = vmatpush1.bf16.msra.mxu0 0
    %229 = vmatprep.subr.bf16.mxu0 0
    %230 = vmatpush1.bf16.msra.mxu0 0
    %231 = vmatprep.subr.bf16.mxu0 0
    %232 = vmatpush1.bf16.msra.mxu0 0
    %233 = vmatprep.subr.bf16.mxu0 0
    %234 = vmatpush1.bf16.msra.mxu0 %v218
    %235 = vmatprep.subr.bf16.mxu0 0
    %236 = vmatpush1.bf16.msra.mxu0 %v217
    %237 = vmatprep.subr.bf16.mxu0 0
    %238 = vmatpush2.bf16.msra.mxu0 0
    %239 = vmatprep.subr.bf16.mxu0 0
    %240 = vmatpush2.bf16.msra.mxu0 0
    %241 = vmatprep.subr.bf16.mxu0 0
    %242 = vmatpush2.bf16.msra.mxu0 0
    %243 = vmatprep.subr.bf16.mxu0 0
    %244 = vmatpush2.bf16.msra.mxu0 0
    %245 = vmatprep.subr.bf16.mxu0 0
    %246 = vmatpush2.bf16.msra.mxu0 0
    %247 = vmatprep.subr.bf16.mxu0 0
    %248 = vmatpush2.bf16.msra.mxu0 0
    %249 = vmatprep.subr.bf16.mxu0 0
    %250 = vmatpush2.bf16.msra.mxu0 0
    %251 = vmatprep.subr.bf16.mxu0 0
    %252 = vmatpush2.bf16.msra.mxu0 0
    %253 = vmatprep.mubr.bf16.mxu0 0
    %254 = vmatmul.mubr.bf16.gmra.mxu0 %v91
    %v255 = vpop.f32.mrf.mxu0
    %v256 = vadd.f32 %v207, %v255
    %v257 = vpop.f32.mrf.mxu0
    %v258 = vpop.f32.mrf.mxu0
    %v259 = vadd.f32 %v207, %v258
    %v260 = vpop.f32.mrf.mxu0
    %261 = vdwg.mxu0
    %v262 = vpack.c.bf16 %v131, %v128
    %v263 = vpack.c.bf16 %v195, %v192
    %v264 = vpack.c.bf16 %v259, %v256
    %v265 = vld [vmem:[%s8] sm:$0xf]
    %v266 = vld [vmem:[%s8 + $0x4] sm:$0xf]
    %v267 = vld [vmem:[%s8 + $0x8] sm:$0xf]
    %v268 = vld [vmem:[%s8 + $0xc] sm:$0xf]
    %vm269 = vcmask 64512
    %v271 = vsel %vm269, %v262, 0
    %v274 = vsel %vm269, %v263, 0
    %276 = vmatprep.subr.bf16.mxu0 0
    %277 = vmatpush1.bf16.xpose.msra.mxu0 0
    %278 = vmatprep.subr.bf16.mxu0 0
    %279 = vmatpush1.bf16.xpose.msra.mxu0 0
    %280 = vmatprep.subr.bf16.mxu0 0
    %281 = vmatpush1.bf16.xpose.msra.mxu0 0
    %282 = vmatprep.subr.bf16.mxu0 0
    %283 = vmatpush1.bf16.xpose.msra.mxu0 0
    %284 = vmatprep.subr.bf16.mxu0 0
    %285 = vmatpush1.bf16.xpose.msra.mxu0 0
    %286 = vmatprep.subr.bf16.mxu0 0
    %287 = vmatpush1.bf16.xpose.msra.mxu0 0
    %288 = vmatprep.subr.bf16.mxu0 0
    %289 = vmatpush1.bf16.xpose.msra.mxu0 0
    %290 = vmatprep.subr.bf16.mxu0 0
    %291 = vmatpush1.bf16.xpose.msra.mxu0 %v274
    %292 = vmatprep.subr.bf16.mxu0 0
    %293 = vmatpush2.bf16.xpose.msra.mxu0 0
    %294 = vmatprep.subr.bf16.mxu0 0
    %295 = vmatpush2.bf16.xpose.msra.mxu0 0
    %296 = vmatprep.subr.bf16.mxu0 0
    %297 = vmatpush2.bf16.xpose.msra.mxu0 0
    %298 = vmatprep.subr.bf16.mxu0 0
    %299 = vmatpush2.bf16.xpose.msra.mxu0 0
    %300 = vmatprep.subr.bf16.mxu0 0
    %301 = vmatpush2.bf16.xpose.msra.mxu0 0
    %302 = vmatprep.subr.bf16.mxu0 0
    %303 = vmatpush2.bf16.xpose.msra.mxu0 0
    %304 = vmatprep.subr.bf16.mxu0 0
    %305 = vmatpush2.bf16.xpose.msra.mxu0 0
    %306 = vmatprep.subr.bf16.mxu0 0
    %307 = vmatpush2.bf16.xpose.msra.mxu0 0
    %308 = vmatprep.mubr.bf16.mxu0 0
    %309 = vmatmul.mubr.bf16.gmra.mxu0 %v271
    %v310 = vpop.f32.mrf.mxu0
    %v311 = vadd.f32 %v63, %v310
    %v312 = vpop.f32.mrf.mxu0
    %v313 = vpop.f32.mrf.mxu0
    %v314 = vadd.f32 %v64, %v313
    %v315 = vpop.f32.mrf.mxu0
    %316 = vdwg.mxu0
    %v317 = vmul.f32 %v311, 0.35355338
    %v318 = vmul.f32 %v314, 0.35355338
    %vm319 = vcmask 130048
    %v320 = vsel %vm319, %v317, -inf
    %321 = vmax.xlane.f32.xlu0 %v320
    %v322 = vpop.xlane.xlu0 %321
    %v323 = vsel %vm319, %v318, -inf
    %324 = vmax.xlane.f32.xlu0 %v323
    %v325 = vpop.xlane.xlu0 %324
    %v326 = vsub.f32 %v317, %v322
    %v327 = vsub.f32 %v318, %v325
    %v328 = vmul.f32 %v326, 1.442695
    %v329 = vpow.pop %v328
    %v330 = vmul.f32 %v327, 1.442695
    %v331 = vpow.pop %v330
    %v332 = vsel %vm319, %v329, 0.0
    %333 = vadd.xlane.f32.xlu0 %v332
    %v334 = vpop.xlane.xlu0 %333
    %v335 = vsel %vm319, %v331, 0.0
    %336 = vadd.xlane.f32.xlu0 %v335
    %v337 = vpop.xlane.xlu0 %336
    %v338 = vrcp.pop %v334
    %v339 = vrcp.pop %v337
    %v340 = vmul.f32 %v329, %v338
    %v341 = vmul.f32 %v331, %v339
    %v342 = vpack.c.bf16 %v341, %v340
    %v344 = vsel %vm319, %v342, 0
    %346 = vmatprep.subr.bf16.mxu0 0
    %347 = vmatpush1.bf16.msra.mxu0 0
    %348 = vmatprep.subr.bf16.mxu0 0
    %349 = vmatpush1.bf16.msra.mxu0 0
    %350 = vmatprep.subr.bf16.mxu0 0
    %351 = vmatpush1.bf16.msra.mxu0 0
    %352 = vmatprep.subr.bf16.mxu0 0
    %353 = vmatpush1.bf16.msra.mxu0 0
    %354 = vmatprep.subr.bf16.mxu0 0
    %355 = vmatpush1.bf16.msra.mxu0 0
    %356 = vmatprep.subr.bf16.mxu0 0
    %357 = vmatpush1.bf16.msra.mxu0 0
    %358 = vmatprep.subr.bf16.mxu0 0
    %359 = vmatpush1.bf16.msra.mxu0 0
    %360 = vmatprep.subr.bf16.mxu0 0
    %361 = vmatpush1.bf16.msra.mxu0 %v264
    %362 = vmatprep.subr.bf16.mxu0 0
    %363 = vmatpush2.bf16.msra.mxu0 0
    %364 = vmatprep.subr.bf16.mxu0 0
    %365 = vmatpush2.bf16.msra.mxu0 0
    %366 = vmatprep.subr.bf16.mxu0 0
    %367 = vmatpush2.bf16.msra.mxu0 0
    %368 = vmatprep.subr.bf16.mxu0 0
    %369 = vmatpush2.bf16.msra.mxu0 0
    %370 = vmatprep.subr.bf16.mxu0 0
    %371 = vmatpush2.bf16.msra.mxu0 0
    %372 = vmatprep.subr.bf16.mxu0 0
    %373 = vmatpush2.bf16.msra.mxu0 0
    %374 = vmatprep.subr.bf16.mxu0 0
    %375 = vmatpush2.bf16.msra.mxu0 0
    %376 = vmatprep.subr.bf16.mxu0 0
    %377 = vmatpush2.bf16.msra.mxu0 0
    %378 = vmatprep.mubr.bf16.mxu0 0
    %379 = vmatmul.mubr.bf16.gmra.mxu0 %v344
    %v380 = vpop.f32.mrf.mxu0
    %v381 = vadd.f32 0.0, %v380
    %v382 = vpop.f32.mrf.mxu0
    %v383 = vpop.f32.mrf.mxu0
    %v384 = vadd.f32 0.0, %v383
    %v385 = vpop.f32.mrf.mxu0
    %386 = vdwg.mxu0
    %v387 = vpack.c.bf16 %v384, %v381
    %389 = vrot.lane.b32.xlu0 %v262, 120
    %v390 = vpop.permute.xlu0 %389
    %392 = vrot.lane.b32.xlu0 %v263, 120
    %v393 = vpop.permute.xlu0 %392
    %v395 = vsel %vm269, %v390, 0
    %v398 = vsel %vm269, %v393, 0
    %400 = vmatprep.subr.bf16.mxu0 0
    %401 = vmatpush1.bf16.xpose.msra.mxu0 0
    %402 = vmatprep.subr.bf16.mxu0 0
    %403 = vmatpush1.bf16.xpose.msra.mxu0 0
    %404 = vmatprep.subr.bf16.mxu0 0
    %405 = vmatpush1.bf16.xpose.msra.mxu0 0
    %406 = vmatprep.subr.bf16.mxu0 0
    %407 = vmatpush1.bf16.xpose.msra.mxu0 0
    %408 = vmatprep.subr.bf16.mxu0 0
    %409 = vmatpush1.bf16.xpose.msra.mxu0 0
    %410 = vmatprep.subr.bf16.mxu0 0
    %411 = vmatpush1.bf16.xpose.msra.mxu0 0
    %412 = vmatprep.subr.bf16.mxu0 0
    %413 = vmatpush1.bf16.xpose.msra.mxu0 0
    %414 = vmatprep.subr.bf16.mxu0 0
    %415 = vmatpush1.bf16.xpose.msra.mxu0 %v398
    %416 = vmatprep.subr.bf16.mxu0 0
    %417 = vmatpush2.bf16.xpose.msra.mxu0 0
    %418 = vmatprep.subr.bf16.mxu0 0
    %419 = vmatpush2.bf16.xpose.msra.mxu0 0
    %420 = vmatprep.subr.bf16.mxu0 0
    %421 = vmatpush2.bf16.xpose.msra.mxu0 0
    %422 = vmatprep.subr.bf16.mxu0 0
    %423 = vmatpush2.bf16.xpose.msra.mxu0 0
    %424 = vmatprep.subr.bf16.mxu0 0
    %425 = vmatpush2.bf16.xpose.msra.mxu0 0
    %426 = vmatprep.subr.bf16.mxu0 0
    %427 = vmatpush2.bf16.xpose.msra.mxu0 0
    %428 = vmatprep.subr.bf16.mxu0 0
    %429 = vmatpush2.bf16.xpose.msra.mxu0 0
    %430 = vmatprep.subr.bf16.mxu0 0
    %431 = vmatpush2.bf16.xpose.msra.mxu0 0
    %432 = vmatprep.mubr.bf16.mxu0 0
    %433 = vmatmul.mubr.bf16.gmra.mxu0 %v395
    %v434 = vpop.f32.mrf.mxu0
    %v435 = vadd.f32 %v63, %v434
    %v436 = vpop.f32.mrf.mxu0
    %v437 = vpop.f32.mrf.mxu0
    %v438 = vadd.f32 %v64, %v437
    %v439 = vpop.f32.mrf.mxu0
    %440 = vdwg.mxu0
    %v441 = vmul.f32 %v435, 0.35355338
    %v442 = vmul.f32 %v438, 0.35355338
    %v443 = vsel %vm319, %v441, -inf
    %444 = vmax.xlane.f32.xlu0 %v443
    %v445 = vpop.xlane.xlu0 %444
    %v446 = vsel %vm319, %v442, -inf
    %447 = vmax.xlane.f32.xlu0 %v446
    %v448 = vpop.xlane.xlu0 %447
    %v449 = vsub.f32 %v441, %v445
    %v450 = vsub.f32 %v442, %v448
    %v451 = vmul.f32 %v449, 1.442695
    %v452 = vpow.pop %v451
    %v453 = vmul.f32 %v450, 1.442695
    %v454 = vpow.pop %v453
    %v455 = vsel %vm319, %v452, 0.0
    %456 = vadd.xlane.f32.xlu0 %v455
    %v457 = vpop.xlane.xlu0 %456
    %v458 = vsel %vm319, %v454, 0.0
    %459 = vadd.xlane.f32.xlu0 %v458
    %v460 = vpop.xlane.xlu0 %459
    %v461 = vrcp.pop %v457
    %v462 = vrcp.pop %v460
    %v463 = vmul.f32 %v452, %v461
    %v464 = vmul.f32 %v454, %v462
    %v465 = vpack.c.bf16 %v464, %v463
    %467 = vrot.lane.b32.xlu0 %v264, 120
    %v468 = vpop.permute.xlu0 %467
    %v471 = vsel %vm319, %v465, 0
    %473 = vmatprep.subr.bf16.mxu0 0
    %474 = vmatpush1.bf16.msra.mxu0 0
    %475 = vmatprep.subr.bf16.mxu0 0
    %476 = vmatpush1.bf16.msra.mxu0 0
    %477 = vmatprep.subr.bf16.mxu0 0
    %478 = vmatpush1.bf16.msra.mxu0 0
    %479 = vmatprep.subr.bf16.mxu0 0
    %480 = vmatpush1.bf16.msra.mxu0 0
    %481 = vmatprep.subr.bf16.mxu0 0
    %482 = vmatpush1.bf16.msra.mxu0 0
    %483 = vmatprep.subr.bf16.mxu0 0
    %484 = vmatpush1.bf16.msra.mxu0 0
    %485 = vmatprep.subr.bf16.mxu0 0
    %486 = vmatpush1.bf16.msra.mxu0 0
    %487 = vmatprep.subr.bf16.mxu0 0
    %488 = vmatpush1.bf16.msra.mxu0 %v468
    %489 = vmatprep.subr.bf16.mxu0 0
    %490 = vmatpush2.bf16.msra.mxu0 0
    %491 = vmatprep.subr.bf16.mxu0 0
    %492 = vmatpush2.bf16.msra.mxu0 0
    %493 = vmatprep.subr.bf16.mxu0 0
    %494 = vmatpush2.bf16.msra.mxu0 0
    %495 = vmatprep.subr.bf16.mxu0 0
    %496 = vmatpush2.bf16.msra.mxu0 0
    %497 = vmatprep.subr.bf16.mxu0 0
    %498 = vmatpush2.bf16.msra.mxu0 0
    %499 = vmatprep.subr.bf16.mxu0 0
    %500 = vmatpush2.bf16.msra.mxu0 0
    %501 = vmatprep.subr.bf16.mxu0 0
    %502 = vmatpush2.bf16.msra.mxu0 0
    %503 = vmatprep.subr.bf16.mxu0 0
    %504 = vmatpush2.bf16.msra.mxu0 0
    %505 = vmatprep.mubr.bf16.mxu0 0
    %506 = vmatmul.mubr.bf16.gmra.mxu0 %v471
    %v507 = vpop.f32.mrf.mxu0
    %v508 = vadd.f32 0.0, %v507
    %v509 = vpop.f32.mrf.mxu0
    %v510 = vpop.f32.mrf.mxu0
    %v511 = vadd.f32 0.0, %v510
    %v512 = vpop.f32.mrf.mxu0
    %513 = vdwg.mxu0
    %v514 = vpack.c.bf16 %v511, %v508
    %v516 = vsel %vm269, %v514, 0
    %vm518 = vcmask 1043456
    %v520 = vsel %vm518, %v266, 0
    %522 = vmatprep.subr.bf16.mxu0 0
    %523 = vmatpush1.bf16.msra.mxu0 0
    %524 = vmatprep.subr.bf16.mxu0 0
    %525 = vmatpush1.bf16.msra.mxu0 0
    %526 = vmatprep.subr.bf16.mxu0 0
    %527 = vmatpush1.bf16.msra.mxu0 0
    %528 = vmatprep.subr.bf16.mxu0 0
    %529 = vmatpush1.bf16.msra.mxu0 0
    %530 = vmatprep.subr.bf16.mxu0 0
    %531 = vmatpush1.bf16.msra.mxu0 0
    %532 = vmatprep.subr.bf16.mxu0 0
    %533 = vmatpush1.bf16.msra.mxu0 0
    %534 = vmatprep.subr.bf16.mxu0 0
    %535 = vmatpush1.bf16.msra.mxu0 0
    %536 = vmatprep.subr.bf16.mxu0 0
    %537 = vmatpush1.bf16.msra.mxu0 %v520
    %538 = vmatprep.subr.bf16.mxu0 0
    %539 = vmatpush2.bf16.msra.mxu0 0
    %540 = vmatprep.subr.bf16.mxu0 0
    %541 = vmatpush2.bf16.msra.mxu0 0
    %542 = vmatprep.subr.bf16.mxu0 0
    %543 = vmatpush2.bf16.msra.mxu0 0
    %544 = vmatprep.subr.bf16.mxu0 0
    %545 = vmatpush2.bf16.msra.mxu0 0
    %546 = vmatprep.subr.bf16.mxu0 0
    %547 = vmatpush2.bf16.msra.mxu0 0
    %548 = vmatprep.subr.bf16.mxu0 0
    %549 = vmatpush2.bf16.msra.mxu0 0
    %550 = vmatprep.subr.bf16.mxu0 0
    %551 = vmatpush2.bf16.msra.mxu0 0
    %552 = vmatprep.subr.bf16.mxu0 0
    %553 = vmatpush2.bf16.msra.mxu0 0
    %554 = vmatprep.mubr.bf16.mxu0 0
    %555 = vmatmul.mubr.bf16.gmra.mxu0 %v516
    %v556 = vpop.f32.mrf.mxu0
    %v557 = vadd.f32 0.0, %v556
    %v558 = vpop.f32.mrf.mxu0
    %v559 = vpop.f32.mrf.mxu0
    %v560 = vadd.f32 0.0, %v559
    %v561 = vpop.f32.mrf.mxu0
    %562 = vdwg.mxu0
    %v564 = vsel %vm269, %v387, 0
    %v567 = vsel %vm518, %v265, 0
    %569 = vmatprep.subr.bf16.mxu0 0
    %570 = vmatpush1.bf16.msra.mxu0 0
    %571 = vmatprep.subr.bf16.mxu0 0
    %572 = vmatpush1.bf16.msra.mxu0 0
    %573 = vmatprep.subr.bf16.mxu0 0
    %574 = vmatpush1.bf16.msra.mxu0 0
    %575 = vmatprep.subr.bf16.mxu0 0
    %576 = vmatpush1.bf16.msra.mxu0 0
    %577 = vmatprep.subr.bf16.mxu0 0
    %578 = vmatpush1.bf16.msra.mxu0 0
    %579 = vmatprep.subr.bf16.mxu0 0
    %580 = vmatpush1.bf16.msra.mxu0 0
    %581 = vmatprep.subr.bf16.mxu0 0
    %582 = vmatpush1.bf16.msra.mxu0 0
    %583 = vmatprep.subr.bf16.mxu0 0
    %584 = vmatpush1.bf16.msra.mxu0 %v567
    %585 = vmatprep.subr.bf16.mxu0 0
    %586 = vmatpush2.bf16.msra.mxu0 0
    %587 = vmatprep.subr.bf16.mxu0 0
    %588 = vmatpush2.bf16.msra.mxu0 0
    %589 = vmatprep.subr.bf16.mxu0 0
    %590 = vmatpush2.bf16.msra.mxu0 0
    %591 = vmatprep.subr.bf16.mxu0 0
    %592 = vmatpush2.bf16.msra.mxu0 0
    %593 = vmatprep.subr.bf16.mxu0 0
    %594 = vmatpush2.bf16.msra.mxu0 0
    %595 = vmatprep.subr.bf16.mxu0 0
    %596 = vmatpush2.bf16.msra.mxu0 0
    %597 = vmatprep.subr.bf16.mxu0 0
    %598 = vmatpush2.bf16.msra.mxu0 0
    %599 = vmatprep.subr.bf16.mxu0 0
    %600 = vmatpush2.bf16.msra.mxu0 0
    %601 = vmatprep.mubr.bf16.mxu0 0
    %602 = vmatmul.mubr.bf16.gmra.mxu0 %v564
    %v603 = vpop.f32.mrf.mxu0
    %v604 = vadd.f32 %v557, %v603
    %v605 = vpop.f32.mrf.mxu0
    %v606 = vpop.f32.mrf.mxu0
    %v607 = vadd.f32 %v560, %v606
    %v608 = vpop.f32.mrf.mxu0
    %609 = vdwg.mxu0
    %610 = vrot.lane.b32.xlu0 %v262, 112
    %v611 = vpop.permute.xlu0 %610
    %612 = vrot.lane.b32.xlu0 %v263, 112
    %v613 = vpop.permute.xlu0 %612
    %v615 = vsel %vm269, %v611, 0
    %v618 = vsel %vm269, %v613, 0
    %620 = vmatprep.subr.bf16.mxu0 0
    %621 = vmatpush1.bf16.xpose.msra.mxu0 0
    %622 = vmatprep.subr.bf16.mxu0 0
    %623 = vmatpush1.bf16.xpose.msra.mxu0 0
    %624 = vmatprep.subr.bf16.mxu0 0
    %625 = vmatpush1.bf16.xpose.msra.mxu0 0
    %626 = vmatprep.subr.bf16.mxu0 0
    %627 = vmatpush1.bf16.xpose.msra.mxu0 0
    %628 = vmatprep.subr.bf16.mxu0 0
    %629 = vmatpush1.bf16.xpose.msra.mxu0 0
    %630 = vmatprep.subr.bf16.mxu0 0
    %631 = vmatpush1.bf16.xpose.msra.mxu0 0
    %632 = vmatprep.subr.bf16.mxu0 0
    %633 = vmatpush1.bf16.xpose.msra.mxu0 0
    %634 = vmatprep.subr.bf16.mxu0 0
    %635 = vmatpush1.bf16.xpose.msra.mxu0 %v618
    %636 = vmatprep.subr.bf16.mxu0 0
    %637 = vmatpush2.bf16.xpose.msra.mxu0 0
    %638 = vmatprep.subr.bf16.mxu0 0
    %639 = vmatpush2.bf16.xpose.msra.mxu0 0
    %640 = vmatprep.subr.bf16.mxu0 0
    %641 = vmatpush2.bf16.xpose.msra.mxu0 0
    %642 = vmatprep.subr.bf16.mxu0 0
    %643 = vmatpush2.bf16.xpose.msra.mxu0 0
    %644 = vmatprep.subr.bf16.mxu0 0
    %645 = vmatpush2.bf16.xpose.msra.mxu0 0
    %646 = vmatprep.subr.bf16.mxu0 0
    %647 = vmatpush2.bf16.xpose.msra.mxu0 0
    %648 = vmatprep.subr.bf16.mxu0 0
    %649 = vmatpush2.bf16.xpose.msra.mxu0 0
    %650 = vmatprep.subr.bf16.mxu0 0
    %651 = vmatpush2.bf16.xpose.msra.mxu0 0
    %652 = vmatprep.mubr.bf16.mxu0 0
    %653 = vmatmul.mubr.bf16.gmra.mxu0 %v615
    %v654 = vpop.f32.mrf.mxu0
    %v655 = vadd.f32 %v63, %v654
    %v656 = vpop.f32.mrf.mxu0
    %v657 = vpop.f32.mrf.mxu0
    %v658 = vadd.f32 %v64, %v657
    %v659 = vpop.f32.mrf.mxu0
    %660 = vdwg.mxu0
    %v661 = vmul.f32 %v655, 0.35355338
    %v662 = vmul.f32 %v658, 0.35355338
    %v663 = vsel %vm319, %v661, -inf
    %664 = vmax.xlane.f32.xlu0 %v663
    %v665 = vpop.xlane.xlu0 %664
    %v666 = vsel %vm319, %v662, -inf
    %667 = vmax.xlane.f32.xlu0 %v666
    %v668 = vpop.xlane.xlu0 %667
    %v669 = vsub.f32 %v661, %v665
    %v670 = vsub.f32 %v662, %v668
    %v671 = vmul.f32 %v669, 1.442695
    %v672 = vpow.pop %v671
    %v673 = vmul.f32 %v670, 1.442695
    %v674 = vpow.pop %v673
    %v675 = vsel %vm319, %v672, 0.0
    %676 = vadd.xlane.f32.xlu0 %v675
    %v677 = vpop.xlane.xlu0 %676
    %v678 = vsel %vm319, %v674, 0.0
    %679 = vadd.xlane.f32.xlu0 %v678
    %v680 = vpop.xlane.xlu0 %679
    %v681 = vrcp.pop %v677
    %v682 = vrcp.pop %v680
    %v683 = vmul.f32 %v672, %v681
    %v684 = vmul.f32 %v674, %v682
    %v685 = vpack.c.bf16 %v684, %v683
    %686 = vrot.lane.b32.xlu0 %v264, 112
    %v687 = vpop.permute.xlu0 %686
    %v690 = vsel %vm319, %v685, 0
    %692 = vmatprep.subr.bf16.mxu0 0
    %693 = vmatpush1.bf16.msra.mxu0 0
    %694 = vmatprep.subr.bf16.mxu0 0
    %695 = vmatpush1.bf16.msra.mxu0 0
    %696 = vmatprep.subr.bf16.mxu0 0
    %697 = vmatpush1.bf16.msra.mxu0 0
    %698 = vmatprep.subr.bf16.mxu0 0
    %699 = vmatpush1.bf16.msra.mxu0 0
    %700 = vmatprep.subr.bf16.mxu0 0
    %701 = vmatpush1.bf16.msra.mxu0 0
    %702 = vmatprep.subr.bf16.mxu0 0
    %703 = vmatpush1.bf16.msra.mxu0 0
    %704 = vmatprep.subr.bf16.mxu0 0
    %705 = vmatpush1.bf16.msra.mxu0 0
    %706 = vmatprep.subr.bf16.mxu0 0
    %707 = vmatpush1.bf16.msra.mxu0 %v687
    %708 = vmatprep.subr.bf16.mxu0 0
    %709 = vmatpush2.bf16.msra.mxu0 0
    %710 = vmatprep.subr.bf16.mxu0 0
    %711 = vmatpush2.bf16.msra.mxu0 0
    %712 = vmatprep.subr.bf16.mxu0 0
    %713 = vmatpush2.bf16.msra.mxu0 0
    %714 = vmatprep.subr.bf16.mxu0 0
    %715 = vmatpush2.bf16.msra.mxu0 0
    %716 = vmatprep.subr.bf16.mxu0 0
    %717 = vmatpush2.bf16.msra.mxu0 0
    %718 = vmatprep.subr.bf16.mxu0 0
    %719 = vmatpush2.bf16.msra.mxu0 0
    %720 = vmatprep.subr.bf16.mxu0 0
    %721 = vmatpush2.bf16.msra.mxu0 0
    %722 = vmatprep.subr.bf16.mxu0 0
    %723 = vmatpush2.bf16.msra.mxu0 0
    %724 = vmatprep.mubr.bf16.mxu0 0
    %725 = vmatmul.mubr.bf16.gmra.mxu0 %v690
    %v726 = vpop.f32.mrf.mxu0
    %v727 = vadd.f32 0.0, %v726
    %v728 = vpop.f32.mrf.mxu0
    %v729 = vpop.f32.mrf.mxu0
    %v730 = vadd.f32 0.0, %v729
    %v731 = vpop.f32.mrf.mxu0
    %732 = vdwg.mxu0
    %v733 = vpack.c.bf16 %v730, %v727
    %v735 = vsel %vm269, %v733, 0
    %v738 = vsel %vm518, %v267, 0
    %740 = vmatprep.subr.bf16.mxu0 0
    %741 = vmatpush1.bf16.msra.mxu0 0
    %742 = vmatprep.subr.bf16.mxu0 0
    %743 = vmatpush1.bf16.msra.mxu0 0
    %744 = vmatprep.subr.bf16.mxu0 0
    %745 = vmatpush1.bf16.msra.mxu0 0
    %746 = vmatprep.subr.bf16.mxu0 0
    %747 = vmatpush1.bf16.msra.mxu0 0
    %748 = vmatprep.subr.bf16.mxu0 0
    %749 = vmatpush1.bf16.msra.mxu0 0
    %750 = vmatprep.subr.bf16.mxu0 0
    %751 = vmatpush1.bf16.msra.mxu0 0
    %752 = vmatprep.subr.bf16.mxu0 0
    %753 = vmatpush1.bf16.msra.mxu0 0
    %754 = vmatprep.subr.bf16.mxu0 0
    %755 = vmatpush1.bf16.msra.mxu0 %v738
    %756 = vmatprep.subr.bf16.mxu0 0
    %757 = vmatpush2.bf16.msra.mxu0 0
    %758 = vmatprep.subr.bf16.mxu0 0
    %759 = vmatpush2.bf16.msra.mxu0 0
    %760 = vmatprep.subr.bf16.mxu0 0
    %761 = vmatpush2.bf16.msra.mxu0 0
    %762 = vmatprep.subr.bf16.mxu0 0
    %763 = vmatpush2.bf16.msra.mxu0 0
    %764 = vmatprep.subr.bf16.mxu0 0
    %765 = vmatpush2.bf16.msra.mxu0 0
    %766 = vmatprep.subr.bf16.mxu0 0
    %767 = vmatpush2.bf16.msra.mxu0 0
    %768 = vmatprep.subr.bf16.mxu0 0
    %769 = vmatpush2.bf16.msra.mxu0 0
    %770 = vmatprep.subr.bf16.mxu0 0
    %771 = vmatpush2.bf16.msra.mxu0 0
    %772 = vmatprep.mubr.bf16.mxu0 0
    %773 = vmatmul.mubr.bf16.gmra.mxu0 %v735
    %v774 = vpop.f32.mrf.mxu0
    %v775 = vadd.f32 0.0, %v774
    %v776 = vpop.f32.mrf.mxu0
    %v777 = vpop.f32.mrf.mxu0
    %v778 = vadd.f32 0.0, %v777
    %v779 = vpop.f32.mrf.mxu0
    %780 = vdwg.mxu0
    %v781 = vadd.f32 %v604, %v775
    %v782 = vadd.f32 %v607, %v778
    %783 = vrot.lane.b32.xlu0 %v262, 104
    %v784 = vpop.permute.xlu0 %783
    %785 = vrot.lane.b32.xlu0 %v263, 104
    %v786 = vpop.permute.xlu0 %785
    %v788 = vsel %vm269, %v784, 0
    %v791 = vsel %vm269, %v786, 0
    %793 = vmatprep.subr.bf16.mxu0 0
    %794 = vmatpush1.bf16.xpose.msra.mxu0 0
    %795 = vmatprep.subr.bf16.mxu0 0
    %796 = vmatpush1.bf16.xpose.msra.mxu0 0
    %797 = vmatprep.subr.bf16.mxu0 0
    %798 = vmatpush1.bf16.xpose.msra.mxu0 0
    %799 = vmatprep.subr.bf16.mxu0 0
    %800 = vmatpush1.bf16.xpose.msra.mxu0 0
    %801 = vmatprep.subr.bf16.mxu0 0
    %802 = vmatpush1.bf16.xpose.msra.mxu0 0
    %803 = vmatprep.subr.bf16.mxu0 0
    %804 = vmatpush1.bf16.xpose.msra.mxu0 0
    %805 = vmatprep.subr.bf16.mxu0 0
    %806 = vmatpush1.bf16.xpose.msra.mxu0 0
    %807 = vmatprep.subr.bf16.mxu0 0
    %808 = vmatpush1.bf16.xpose.msra.mxu0 %v791
    %809 = vmatprep.subr.bf16.mxu0 0
    %810 = vmatpush2.bf16.xpose.msra.mxu0 0
    %811 = vmatprep.subr.bf16.mxu0 0
    %812 = vmatpush2.bf16.xpose.msra.mxu0 0
    %813 = vmatprep.subr.bf16.mxu0 0
    %814 = vmatpush2.bf16.xpose.msra.mxu0 0
    %815 = vmatprep.subr.bf16.mxu0 0
    %816 = vmatpush2.bf16.xpose.msra.mxu0 0
    %817 = vmatprep.subr.bf16.mxu0 0
    %818 = vmatpush2.bf16.xpose.msra.mxu0 0
    %819 = vmatprep.subr.bf16.mxu0 0
    %820 = vmatpush2.bf16.xpose.msra.mxu0 0
    %821 = vmatprep.subr.bf16.mxu0 0
    %822 = vmatpush2.bf16.xpose.msra.mxu0 0
    %823 = vmatprep.subr.bf16.mxu0 0
    %824 = vmatpush2.bf16.xpose.msra.mxu0 0
    %825 = vmatprep.mubr.bf16.mxu0 0
    %826 = vmatmul.mubr.bf16.gmra.mxu0 %v788
    %v827 = vpop.f32.mrf.mxu0
    %v828 = vadd.f32 %v63, %v827
    %v829 = vpop.f32.mrf.mxu0
    %v830 = vpop.f32.mrf.mxu0
    %v831 = vadd.f32 %v64, %v830
    %v832 = vpop.f32.mrf.mxu0
    %833 = vdwg.mxu0
    %v834 = vmul.f32 %v828, 0.35355338
    %v835 = vmul.f32 %v831, 0.35355338
    %v836 = vsel %vm319, %v834, -inf
    %837 = vmax.xlane.f32.xlu0 %v836
    %v838 = vpop.xlane.xlu0 %837
    %v839 = vsel %vm319, %v835, -inf
    %840 = vmax.xlane.f32.xlu0 %v839
    %v841 = vpop.xlane.xlu0 %840
    %v842 = vsub.f32 %v834, %v838
    %v843 = vsub.f32 %v835, %v841
    %v844 = vmul.f32 %v842, 1.442695
    %v845 = vpow.pop %v844
    %v846 = vmul.f32 %v843, 1.442695
    %v847 = vpow.pop %v846
    %v848 = vsel %vm319, %v845, 0.0
    %849 = vadd.xlane.f32.xlu0 %v848
    %v850 = vpop.xlane.xlu0 %849
    %v851 = vsel %vm319, %v847, 0.0
    %852 = vadd.xlane.f32.xlu0 %v851
    %v853 = vpop.xlane.xlu0 %852
    %v854 = vrcp.pop %v850
    %v855 = vrcp.pop %v853
    %v856 = vmul.f32 %v845, %v854
    %v857 = vmul.f32 %v847, %v855
    %v858 = vpack.c.bf16 %v857, %v856
    %859 = vrot.lane.b32.xlu0 %v264, 104
    %v860 = vpop.permute.xlu0 %859
    %v863 = vsel %vm319, %v858, 0
    %865 = vmatprep.subr.bf16.mxu0 0
    %866 = vmatpush1.bf16.msra.mxu0 0
    %867 = vmatprep.subr.bf16.mxu0 0
    %868 = vmatpush1.bf16.msra.mxu0 0
    %869 = vmatprep.subr.bf16.mxu0 0
    %870 = vmatpush1.bf16.msra.mxu0 0
    %871 = vmatprep.subr.bf16.mxu0 0
    %872 = vmatpush1.bf16.msra.mxu0 0
    %873 = vmatprep.subr.bf16.mxu0 0
    %874 = vmatpush1.bf16.msra.mxu0 0
    %875 = vmatprep.subr.bf16.mxu0 0
    %876 = vmatpush1.bf16.msra.mxu0 0
    %877 = vmatprep.subr.bf16.mxu0 0
    %878 = vmatpush1.bf16.msra.mxu0 0
    %879 = vmatprep.subr.bf16.mxu0 0
    %880 = vmatpush1.bf16.msra.mxu0 %v860
    %881 = vmatprep.subr.bf16.mxu0 0
    %882 = vmatpush2.bf16.msra.mxu0 0
    %883 = vmatprep.subr.bf16.mxu0 0
    %884 = vmatpush2.bf16.msra.mxu0 0
    %885 = vmatprep.subr.bf16.mxu0 0
    %886 = vmatpush2.bf16.msra.mxu0 0
    %887 = vmatprep.subr.bf16.mxu0 0
    %888 = vmatpush2.bf16.msra.mxu0 0
    %889 = vmatprep.subr.bf16.mxu0 0
    %890 = vmatpush2.bf16.msra.mxu0 0
    %891 = vmatprep.subr.bf16.mxu0 0
    %892 = vmatpush2.bf16.msra.mxu0 0
    %893 = vmatprep.subr.bf16.mxu0 0
    %894 = vmatpush2.bf16.msra.mxu0 0
    %895 = vmatprep.subr.bf16.mxu0 0
    %896 = vmatpush2.bf16.msra.mxu0 0
    %897 = vmatprep.mubr.bf16.mxu0 0
    %898 = vmatmul.mubr.bf16.gmra.mxu0 %v863
    %v899 = vpop.f32.mrf.mxu0
    %v900 = vadd.f32 0.0, %v899
    %v901 = vpop.f32.mrf.mxu0
    %v902 = vpop.f32.mrf.mxu0
    %v903 = vadd.f32 0.0, %v902
    %v904 = vpop.f32.mrf.mxu0
    %905 = vdwg.mxu0
    %v906 = vpack.c.bf16 %v903, %v900
    %v908 = vsel %vm269, %v906, 0
    %v911 = vsel %vm518, %v268, 0
    %913 = vmatprep.subr.bf16.mxu0 0
    %914 = vmatpush1.bf16.msra.mxu0 0
    %915 = vmatprep.subr.bf16.mxu0 0
    %916 = vmatpush1.bf16.msra.mxu0 0
    %917 = vmatprep.subr.bf16.mxu0 0
    %918 = vmatpush1.bf16.msra.mxu0 0
    %919 = vmatprep.subr.bf16.mxu0 0
    %920 = vmatpush1.bf16.msra.mxu0 0
    %921 = vmatprep.subr.bf16.mxu0 0
    %922 = vmatpush1.bf16.msra.mxu0 0
    %923 = vmatprep.subr.bf16.mxu0 0
    %924 = vmatpush1.bf16.msra.mxu0 0
    %925 = vmatprep.subr.bf16.mxu0 0
    %926 = vmatpush1.bf16.msra.mxu0 0
    %927 = vmatprep.subr.bf16.mxu0 0
    %928 = vmatpush1.bf16.msra.mxu0 %v911
    %929 = vmatprep.subr.bf16.mxu0 0
    %930 = vmatpush2.bf16.msra.mxu0 0
    %931 = vmatprep.subr.bf16.mxu0 0
    %932 = vmatpush2.bf16.msra.mxu0 0
    %933 = vmatprep.subr.bf16.mxu0 0
    %934 = vmatpush2.bf16.msra.mxu0 0
    %935 = vmatprep.subr.bf16.mxu0 0
    %936 = vmatpush2.bf16.msra.mxu0 0
    %937 = vmatprep.subr.bf16.mxu0 0
    %938 = vmatpush2.bf16.msra.mxu0 0
    %939 = vmatprep.subr.bf16.mxu0 0
    %940 = vmatpush2.bf16.msra.mxu0 0
    %941 = vmatprep.subr.bf16.mxu0 0
    %942 = vmatpush2.bf16.msra.mxu0 0
    %943 = vmatprep.subr.bf16.mxu0 0
    %944 = vmatpush2.bf16.msra.mxu0 0
    %945 = vmatprep.mubr.bf16.mxu0 0
    %946 = vmatmul.mubr.bf16.gmra.mxu0 %v908
    %v947 = vpop.f32.mrf.mxu0
    %v948 = vadd.f32 0.0, %v947
    %v949 = vpop.f32.mrf.mxu0
    %v950 = vpop.f32.mrf.mxu0
    %v951 = vadd.f32 0.0, %v950
    %v952 = vpop.f32.mrf.mxu0
    %953 = vdwg.mxu0
    %v954 = vadd.f32 %v781, %v948
    %v955 = vadd.f32 %v782, %v951
    %v956 = vld [vmem:[%s9] sm:$0x1]
    %v958 = vlaneseq
    %v959 = vshrl.u32 %v958, 7
    %v960 = vsub.s32 0, %v959
    %v961 = vrot.slane %v956, %v960
    %v963 = vadd.f32 %v954, %v961
    %v964 = vadd.f32 %v955, %v961
    %v965 = vadd.f32 %v61, %v963
    %v966 = vadd.f32 %v62, %v964
    %v967 = vsel %vm89, %v965, 0.0
    %968 = vadd.xlane.f32.xlu0 %v967
    %v969 = vpop.xlane.xlu0 %968
    %v970 = vsel %vm89, %v966, 0.0
    %971 = vadd.xlane.f32.xlu0 %v970
    %v972 = vpop.xlane.xlu0 %971
    %v973 = vrcp.pop 32.0
    %v974 = vmul.f32 %v969, %v973
    %v975 = vmul.f32 %v972, %v973
    %v976 = vsub.f32 %v965, %v974
    %v977 = vsub.f32 %v966, %v975
    %v978 = vmul.f32 %v976, %v976
    %v979 = vmul.f32 %v977, %v977
    %v980 = vsel %vm89, %v978, 0.0
    %981 = vadd.xlane.f32.xlu0 %v980
    %v982 = vpop.xlane.xlu0 %981
    %v983 = vsel %vm89, %v979, 0.0
    %984 = vadd.xlane.f32.xlu0 %v983
    %v985 = vpop.xlane.xlu0 %984
    %v986 = vmul.f32 %v982, %v973
    %v987 = vmul.f32 %v985, %v973
    %v988 = vadd.f32 %v986, 1e-05
    %v989 = vadd.f32 %v987, 1e-05
    %v990 = vrsqrt.pop %v988
    %v991 = vrsqrt.pop %v989
    %v992 = vmul.f32 %v976, %v990
    %v993 = vmul.f32 %v977, %v991
    %v994 = vld [vmem:[%s10] sm:$0x1]
    %v996 = vlaneseq
    %v997 = vshrl.u32 %v996, 7
    %v998 = vsub.s32 0, %v997
    %v999 = vrot.slane %v994, %v998
    %v1001 = vmul.f32 %v992, %v999
    %v1002 = vmul.f32 %v993, %v999
    %v1003 = vld [vmem:[%s11] sm:$0x1]
    %v1005 = vlaneseq
    %v1006 = vshrl.u32 %v1005, 7
    %v1007 = vsub.s32 0, %v1006
    %v1008 = vrot.slane %v1003, %v1007
    %v1010 = vadd.f32 %v1001, %v1008
    %v1011 = vadd.f32 %v1002, %v1008
    %v1012 = vpack.c.bf16 %v1011, %v1010
    %v1013 = vld [vmem:[%s12] sm:$0xf]
    %v1014 = vld [vmem:[%s12 + $0x4] sm:$0xf]
    %v1015 = vld [vmem:[%s12 + $0x8] sm:$0xf]
    %v1016 = vld [vmem:[%s12 + $0xc] sm:$0xf]
    %v1017 = vld [vmem:[%s13] sm:$0x1]
    %v1019 = vlaneseq
    %v1020 = vshrl.u32 %v1019, 7
    %v1021 = vsub.s32 0, %v1020
    %v1022 = vrot.slane %v1017, %v1021
    %v1028 = vunpack.c.l.b16 %v1013
    %v1029 = vunpack.c.l.b16 %v1014
    %v1030 = vunpack.c.l.b16 %v1015
    %v1031 = vunpack.c.l.b16 %v1016
    %v1032 = vpack.c.b16 %v1029, %v1028
    %v1033 = vpack.c.b16 %v1031, %v1030
    %v1037 = vsel %vm89, %v1012, 0
    %1039 = vmatprep.subr.bf16.mxu0 0
    %1040 = vmatpush1.bf16.msra.mxu0 0
    %1041 = vmatprep.subr.bf16.mxu0 0
    %1042 = vmatpush1.bf16.msra.mxu0 0
    %1043 = vmatprep.subr.bf16.mxu0 0
    %1044 = vmatpush1.bf16.msra.mxu0 0
    %1045 = vmatprep.subr.bf16.mxu0 0
    %1046 = vmatpush1.bf16.msra.mxu0 0
    %1047 = vmatprep.subr.bf16.mxu0 0
    %1048 = vmatpush1.bf16.msra.mxu0 0
    %1049 = vmatprep.subr.bf16.mxu0 0
    %1050 = vmatpush1.bf16.msra.mxu0 0
    %1051 = vmatprep.subr.bf16.mxu0 0
    %1052 = vmatpush1.bf16.msra.mxu0 %v1033
    %1053 = vmatprep.subr.bf16.mxu0 0
    %1054 = vmatpush1.bf16.msra.mxu0 %v1032
    %1055 = vmatprep.subr.bf16.mxu0 0
    %1056 = vmatpush2.bf16.msra.mxu0 0
    %1057 = vmatprep.subr.bf16.mxu0 0
    %1058 = vmatpush2.bf16.msra.mxu0 0
    %1059 = vmatprep.subr.bf16.mxu0 0
    %1060 = vmatpush2.bf16.msra.mxu0 0
    %1061 = vmatprep.subr.bf16.mxu0 0
    %1062 = vmatpush2.bf16.msra.mxu0 0
    %1063 = vmatprep.subr.bf16.mxu0 0
    %1064 = vmatpush2.bf16.msra.mxu0 0
    %1065 = vmatprep.subr.bf16.mxu0 0
    %1066 = vmatpush2.bf16.msra.mxu0 0
    %1067 = vmatprep.subr.bf16.mxu0 0
    %1068 = vmatpush2.bf16.msra.mxu0 0
    %1069 = vmatprep.subr.bf16.mxu0 0
    %1070 = vmatpush2.bf16.msra.mxu0 0
    %1071 = vmatprep.mubr.bf16.mxu0 0
    %1072 = vmatmul.mubr.bf16.gmra.mxu0 %v1037
    %v1073 = vpop.f32.mrf.mxu0
    %v1074 = vadd.f32 %v1022, %v1073
    %v1075 = vpop.f32.mrf.mxu0
    %v1076 = vpop.f32.mrf.mxu0
    %v1077 = vadd.f32 %v1022, %v1076
    %v1078 = vpop.f32.mrf.mxu0
    %1079 = vdwg.mxu0
    %v1080 = vmax.f32 %v1074, 0.0
    %v1081 = vmax.f32 %v1077, 0.0
    %v1082 = vpack.c.bf16 %v1081, %v1080
    %v1083 = vld [vmem:[%s14] sm:$0xf]
    %v1084 = vld [vmem:[%s14 + $0x4] sm:$0xf]
    %v1085 = vld [vmem:[%s14 + $0x8] sm:$0xf]
    %v1086 = vld [vmem:[%s14 + $0xc] sm:$0xf]
    %v1087 = vld [vmem:[%s14 + $0x10] sm:$0xf]
    %v1088 = vld [vmem:[%s14 + $0x14] sm:$0xf]
    %v1089 = vld [vmem:[%s14 + $0x18] sm:$0xf]
    %v1090 = vld [vmem:[%s14 + $0x1c] sm:$0xf]
    %v1091 = vld [vmem:[%s15] sm:$0x1]
    %v1093 = vlaneseq
    %v1094 = vshrl.u32 %v1093, 7
    %v1095 = vsub.s32 0, %v1094
    %v1096 = vrot.slane %v1091, %v1095
    %v1106 = vunpack.c.l.b16 %v1083
    %v1107 = vunpack.c.l.b16 %v1084
    %v1108 = vunpack.c.l.b16 %v1085
    %v1109 = vunpack.c.l.b16 %v1086
    %v1110 = vunpack.c.l.b16 %v1087
    %v1111 = vunpack.c.l.b16 %v1088
    %v1112 = vunpack.c.l.b16 %v1089
    %v1113 = vunpack.c.l.b16 %v1090
    %v1114 = vpack.c.b16 %v1107, %v1106
    %v1115 = vpack.c.b16 %v1109, %v1108
    %v1116 = vpack.c.b16 %v1111, %v1110
    %v1117 = vpack.c.b16 %v1113, %v1112
    %vm1122 = vcmask 523264
    %v1124 = vsel %vm1122, %v1082, 0
    %1126 = vmatprep.subr.bf16.mxu0 0
    %1127 = vmatpush1.bf16.msra.mxu0 0
    %1128 = vmatprep.subr.bf16.mxu0 0
    %1129 = vmatpush1.bf16.msra.mxu0 0
    %1130 = vmatprep.subr.bf16.mxu0 0
    %1131 = vmatpush1.bf16.msra.mxu0 0
    %1132 = vmatprep.subr.bf16.mxu0 0
    %1133 = vmatpush1.bf16.msra.mxu0 0
    %1134 = vmatprep.subr.bf16.mxu0 0
    %1135 = vmatpush1.bf16.msra.mxu0 %v1117
    %1136 = vmatprep.subr.bf16.mxu0 0
    %1137 = vmatpush1.bf16.msra.mxu0 %v1116
    %1138 = vmatprep.subr.bf16.mxu0 0
    %1139 = vmatpush1.bf16.msra.mxu0 %v1115
    %1140 = vmatprep.subr.bf16.mxu0 0
    %1141 = vmatpush1.bf16.msra.mxu0 %v1114
    %1142 = vmatprep.subr.bf16.mxu0 0
    %1143 = vmatpush2.bf16.msra.mxu0 0
    %1144 = vmatprep.subr.bf16.mxu0 0
    %1145 = vmatpush2.bf16.msra.mxu0 0
    %1146 = vmatprep.subr.bf16.mxu0 0
    %1147 = vmatpush2.bf16.msra.mxu0 0
    %1148 = vmatprep.subr.bf16.mxu0 0
    %1149 = vmatpush2.bf16.msra.mxu0 0
    %1150 = vmatprep.subr.bf16.mxu0 0
    %1151 = vmatpush2.bf16.msra.mxu0 0
    %1152 = vmatprep.subr.bf16.mxu0 0
    %1153 = vmatpush2.bf16.msra.mxu0 0
    %1154 = vmatprep.subr.bf16.mxu0 0
    %1155 = vmatpush2.bf16.msra.mxu0 0
    %1156 = vmatprep.subr.bf16.mxu0 0
    %1157 = vmatpush2.bf16.msra.mxu0 0
    %1158 = vmatprep.mubr.bf16.mxu0 0
    %1159 = vmatmul.mubr.bf16.gmra.mxu0 %v1124
    %v1160 = vpop.f32.mrf.mxu0
    %v1161 = vadd.f32 %v1096, %v1160
    %v1162 = vpop.f32.mrf.mxu0
    %v1163 = vpop.f32.mrf.mxu0
    %v1164 = vadd.f32 %v1096, %v1163
    %v1165 = vpop.f32.mrf.mxu0
    %1166 = vdwg.mxu0
    %v1167 = vadd.f32 %v1010, %v1161
    %v1168 = vadd.f32 %v1011, %v1164
    %v1169 = vsel %vm89, %v1167, 0.0
    %1170 = vadd.xlane.f32.xlu0 %v1169
    %v1171 = vpop.xlane.xlu0 %1170
    %v1172 = vsel %vm89, %v1168, 0.0
    %1173 = vadd.xlane.f32.xlu0 %v1172
    %v1174 = vpop.xlane.xlu0 %1173
    %v1175 = vmul.f32 %v1171, %v973
    %v1176 = vmul.f32 %v1174, %v973
    %v1177 = vsub.f32 %v1167, %v1175
    %v1178 = vsub.f32 %v1168, %v1176
    %v1179 = vmul.f32 %v1177, %v1177
    %v1180 = vmul.f32 %v1178, %v1178
    %v1181 = vsel %vm89, %v1179, 0.0
    %1182 = vadd.xlane.f32.xlu0 %v1181
    %v1183 = vpop.xlane.xlu0 %1182
    %v1184 = vsel %vm89, %v1180, 0.0
    %1185 = vadd.xlane.f32.xlu0 %v1184
    %v1186 = vpop.xlane.xlu0 %1185
    %v1187 = vmul.f32 %v1183, %v973
    %v1188 = vmul.f32 %v1186, %v973
    %v1189 = vadd.f32 %v1187, 1e-05
    %v1190 = vadd.f32 %v1188, 1e-05
    %v1191 = vrsqrt.pop %v1189
    %v1192 = vrsqrt.pop %v1190
    %v1193 = vmul.f32 %v1177, %v1191
    %v1194 = vmul.f32 %v1178, %v1192
    %v1195 = vld [vmem:[%s16] sm:$0x1]
    %v1197 = vlaneseq
    %v1198 = vshrl.u32 %v1197, 7
    %v1199 = vsub.s32 0, %v1198
    %v1200 = vrot.slane %v1195, %v1199
    %v1202 = vmul.f32 %v1193, %v1200
    %v1203 = vmul.f32 %v1194, %v1200
    %v1204 = vld [vmem:[%s17] sm:$0x1]
    %v1206 = vlaneseq
    %v1207 = vshrl.u32 %v1206, 7
    %v1208 = vsub.s32 0, %v1207
    %v1209 = vrot.slane %v1204, %v1208
    %v1211 = vadd.f32 %v1202, %v1209
    %v1212 = vadd.f32 %v1203, %v1209
    %v1213 = vpack.c.bf16 %v1212, %v1211
    %s1214 = scalar_lea.vmem %s2, 16
    %v1215 = vld [vmem:[%s1214] sm:$0xf]
    %v1216 = vld [vmem:[%s1214 + $0x4] sm:$0xf]
    %v1217 = vld [vmem:[%s1214 + $0x8] sm:$0xf]
    %v1218 = vld [vmem:[%s1214 + $0xc] sm:$0xf]
    %s1219 = scalar_lea.vmem %s3, 1
    %v1220 = vld [vmem:[%s1219] sm:$0x1]
    %v1222 = vlaneseq
    %v1223 = vshrl.u32 %v1222, 7
    %v1224 = vsub.s32 0, %v1223
    %v1225 = vrot.slane %v1220, %v1224
    %v1231 = vunpack.c.l.b16 %v1215
    %v1232 = vunpack.c.l.b16 %v1216
    %v1233 = vunpack.c.l.b16 %v1217
    %v1234 = vunpack.c.l.b16 %v1218
    %v1235 = vpack.c.b16 %v1232, %v1231
    %v1236 = vpack.c.b16 %v1234, %v1233
    %v1240 = vsel %vm89, %v1213, 0
    %1242 = vmatprep.subr.bf16.mxu0 0
    %1243 = vmatpush1.bf16.msra.mxu0 0
    %1244 = vmatprep.subr.bf16.mxu0 0
    %1245 = vmatpush1.bf16.msra.mxu0 0
    %1246 = vmatprep.subr.bf16.mxu0 0
    %1247 = vmatpush1.bf16.msra.mxu0 0
    %1248 = vmatprep.subr.bf16.mxu0 0
    %1249 = vmatpush1.bf16.msra.mxu0 0
    %1250 = vmatprep.subr.bf16.mxu0 0
    %1251 = vmatpush1.bf16.msra.mxu0 0
    %1252 = vmatprep.subr.bf16.mxu0 0
    %1253 = vmatpush1.bf16.msra.mxu0 0
    %1254 = vmatprep.subr.bf16.mxu0 0
    %1255 = vmatpush1.bf16.msra.mxu0 %v1236
    %1256 = vmatprep.subr.bf16.mxu0 0
    %1257 = vmatpush1.bf16.msra.mxu0 %v1235
    %1258 = vmatprep.subr.bf16.mxu0 0
    %1259 = vmatpush2.bf16.msra.mxu0 0
    %1260 = vmatprep.subr.bf16.mxu0 0
    %1261 = vmatpush2.bf16.msra.mxu0 0
    %1262 = vmatprep.subr.bf16.mxu0 0
    %1263 = vmatpush2.bf16.msra.mxu0 0
    %1264 = vmatprep.subr.bf16.mxu0 0
    %1265 = vmatpush2.bf16.msra.mxu0 0
    %1266 = vmatprep.subr.bf16.mxu0 0
    %1267 = vmatpush2.bf16.msra.mxu0 0
    %1268 = vmatprep.subr.bf16.mxu0 0
    %1269 = vmatpush2.bf16.msra.mxu0 0
    %1270 = vmatprep.subr.bf16.mxu0 0
    %1271 = vmatpush2.bf16.msra.mxu0 0
    %1272 = vmatprep.subr.bf16.mxu0 0
    %1273 = vmatpush2.bf16.msra.mxu0 0
    %1274 = vmatprep.mubr.bf16.mxu0 0
    %1275 = vmatmul.mubr.bf16.gmra.mxu0 %v1240
    %v1276 = vpop.f32.mrf.mxu0
    %v1277 = vadd.f32 %v1225, %v1276
    %v1278 = vpop.f32.mrf.mxu0
    %v1279 = vpop.f32.mrf.mxu0
    %v1280 = vadd.f32 %v1225, %v1279
    %v1281 = vpop.f32.mrf.mxu0
    %1282 = vdwg.mxu0
    %s1283 = scalar_lea.vmem %s4, 16
    %v1284 = vld [vmem:[%s1283] sm:$0xf]
    %v1285 = vld [vmem:[%s1283 + $0x4] sm:$0xf]
    %v1286 = vld [vmem:[%s1283 + $0x8] sm:$0xf]
    %v1287 = vld [vmem:[%s1283 + $0xc] sm:$0xf]
    %s1288 = scalar_lea.vmem %s5, 1
    %v1289 = vld [vmem:[%s1288] sm:$0x1]
    %v1291 = vlaneseq
    %v1292 = vshrl.u32 %v1291, 7
    %v1293 = vsub.s32 0, %v1292
    %v1294 = vrot.slane %v1289, %v1293
    %v1300 = vunpack.c.l.b16 %v1284
    %v1301 = vunpack.c.l.b16 %v1285
    %v1302 = vunpack.c.l.b16 %v1286
    %v1303 = vunpack.c.l.b16 %v1287
    %v1304 = vpack.c.b16 %v1301, %v1300
    %v1305 = vpack.c.b16 %v1303, %v1302
    %1308 = vmatprep.subr.bf16.mxu0 0
    %1309 = vmatpush1.bf16.msra.mxu0 0
    %1310 = vmatprep.subr.bf16.mxu0 0
    %1311 = vmatpush1.bf16.msra.mxu0 0
    %1312 = vmatprep.subr.bf16.mxu0 0
    %1313 = vmatpush1.bf16.msra.mxu0 0
    %1314 = vmatprep.subr.bf16.mxu0 0
    %1315 = vmatpush1.bf16.msra.mxu0 0
    %1316 = vmatprep.subr.bf16.mxu0 0
    %1317 = vmatpush1.bf16.msra.mxu0 0
    %1318 = vmatprep.subr.bf16.mxu0 0
    %1319 = vmatpush1.bf16.msra.mxu0 0
    %1320 = vmatprep.subr.bf16.mxu0 0
    %1321 = vmatpush1.bf16.msra.mxu0 %v1305
    %1322 = vmatprep.subr.bf16.mxu0 0
    %1323 = vmatpush1.bf16.msra.mxu0 %v1304
    %1324 = vmatprep.subr.bf16.mxu0 0
    %1325 = vmatpush2.bf16.msra.mxu0 0
    %1326 = vmatprep.subr.bf16.mxu0 0
    %1327 = vmatpush2.bf16.msra.mxu0 0
    %1328 = vmatprep.subr.bf16.mxu0 0
    %1329 = vmatpush2.bf16.msra.mxu0 0
    %1330 = vmatprep.subr.bf16.mxu0 0
    %1331 = vmatpush2.bf16.msra.mxu0 0
    %1332 = vmatprep.subr.bf16.mxu0 0
    %1333 = vmatpush2.bf16.msra.mxu0 0
    %1334 = vmatprep.subr.bf16.mxu0 0
    %1335 = vmatpush2.bf16.msra.mxu0 0
    %1336 = vmatprep.subr.bf16.mxu0 0
    %1337 = vmatpush2.bf16.msra.mxu0 0
    %1338 = vmatprep.subr.bf16.mxu0 0
    %1339 = vmatpush2.bf16.msra.mxu0 0
    %1340 = vmatprep.mubr.bf16.mxu0 0
    %1341 = vmatmul.mubr.bf16.gmra.mxu0 %v1240
    %v1342 = vpop.f32.mrf.mxu0
    %v1343 = vadd.f32 %v1294, %v1342
    %v1344 = vpop.f32.mrf.mxu0
    %v1345 = vpop.f32.mrf.mxu0
    %v1346 = vadd.f32 %v1294, %v1345
    %v1347 = vpop.f32.mrf.mxu0
    %1348 = vdwg.mxu0
    %s1349 = scalar_lea.vmem %s6, 16
    %v1350 = vld [vmem:[%s1349] sm:$0xf]
    %v1351 = vld [vmem:[%s1349 + $0x4] sm:$0xf]
    %v1352 = vld [vmem:[%s1349 + $0x8] sm:$0xf]
    %v1353 = vld [vmem:[%s1349 + $0xc] sm:$0xf]
    %s1354 = scalar_lea.vmem %s7, 1
    %v1355 = vld [vmem:[%s1354] sm:$0x1]
    %v1357 = vlaneseq
    %v1358 = vshrl.u32 %v1357, 7
    %v1359 = vsub.s32 0, %v1358
    %v1360 = vrot.slane %v1355, %v1359
    %v1366 = vunpack.c.l.b16 %v1350
    %v1367 = vunpack.c.l.b16 %v1351
    %v1368 = vunpack.c.l.b16 %v1352
    %v1369 = vunpack.c.l.b16 %v1353
    %v1370 = vpack.c.b16 %v1367, %v1366
    %v1371 = vpack.c.b16 %v1369, %v1368
    %1374 = vmatprep.subr.bf16.mxu0 0
    %1375 = vmatpush1.bf16.msra.mxu0 0
    %1376 = vmatprep.subr.bf16.mxu0 0
    %1377 = vmatpush1.bf16.msra.mxu0 0
    %1378 = vmatprep.subr.bf16.mxu0 0
    %1379 = vmatpush1.bf16.msra.mxu0 0
    %1380 = vmatprep.subr.bf16.mxu0 0
    %1381 = vmatpush1.bf16.msra.mxu0 0
    %1382 = vmatprep.subr.bf16.mxu0 0
    %1383 = vmatpush1.bf16.msra.mxu0 0
    %1384 = vmatprep.subr.bf16.mxu0 0
    %1385 = vmatpush1.bf16.msra.mxu0 0
    %1386 = vmatprep.subr.bf16.mxu0 0
    %1387 = vmatpush1.bf16.msra.mxu0 %v1371
    %1388 = vmatprep.subr.bf16.mxu0 0
    %1389 = vmatpush1.bf16.msra.mxu0 %v1370
    %1390 = vmatprep.subr.bf16.mxu0 0
    %1391 = vmatpush2.bf16.msra.mxu0 0
    %1392 = vmatprep.subr.bf16.mxu0 0
    %1393 = vmatpush2.bf16.msra.mxu0 0
    %1394 = vmatprep.subr.bf16.mxu0 0
    %1395 = vmatpush2.bf16.msra.mxu0 0
    %1396 = vmatprep.subr.bf16.mxu0 0
    %1397 = vmatpush2.bf16.msra.mxu0 0
    %1398 = vmatprep.subr.bf16.mxu0 0
    %1399 = vmatpush2.bf16.msra.mxu0 0
    %1400 = vmatprep.subr.bf16.mxu0 0
    %1401 = vmatpush2.bf16.msra.mxu0 0
    %1402 = vmatprep.subr.bf16.mxu0 0
    %1403 = vmatpush2.bf16.msra.mxu0 0
    %1404 = vmatprep.subr.bf16.mxu0 0
    %1405 = vmatpush2.bf16.msra.mxu0 0
    %1406 = vmatprep.mubr.bf16.mxu0 0
    %1407 = vmatmul.mubr.bf16.gmra.mxu0 %v1240
    %v1408 = vpop.f32.mrf.mxu0
    %v1409 = vadd.f32 %v1360, %v1408
    %v1410 = vpop.f32.mrf.mxu0
    %v1411 = vpop.f32.mrf.mxu0
    %v1412 = vadd.f32 %v1360, %v1411
    %v1413 = vpop.f32.mrf.mxu0
    %1414 = vdwg.mxu0
    %v1415 = vpack.c.bf16 %v1280, %v1277
    %v1416 = vpack.c.bf16 %v1346, %v1343
    %v1417 = vpack.c.bf16 %v1412, %v1409
    %s1418 = scalar_lea.vmem %s8, 16
    %v1419 = vld [vmem:[%s1418] sm:$0xf]
    %v1420 = vld [vmem:[%s1418 + $0x4] sm:$0xf]
    %v1421 = vld [vmem:[%s1418 + $0x8] sm:$0xf]
    %v1422 = vld [vmem:[%s1418 + $0xc] sm:$0xf]
    %v1424 = vsel %vm269, %v1415, 0
    %v1427 = vsel %vm269, %v1416, 0
    %1429 = vmatprep.subr.bf16.mxu0 0
    %1430 = vmatpush1.bf16.xpose.msra.mxu0 0
    %1431 = vmatprep.subr.bf16.mxu0 0
    %1432 = vmatpush1.bf16.xpose.msra.mxu0 0
    %1433 = vmatprep.subr.bf16.mxu0 0
    %1434 = vmatpush1.bf16.xpose.msra.mxu0 0
    %1435 = vmatprep.subr.bf16.mxu0 0
    %1436 = vmatpush1.bf16.xpose.msra.mxu0 0
    %1437 = vmatprep.subr.bf16.mxu0 0
    %1438 = vmatpush1.bf16.xpose.msra.mxu0 0
    %1439 = vmatprep.subr.bf16.mxu0 0
    %1440 = vmatpush1.bf16.xpose.msra.mxu0 0
    %1441 = vmatprep.subr.bf16.mxu0 0
    %1442 = vmatpush1.bf16.xpose.msra.mxu0 0
    %1443 = vmatprep.subr.bf16.mxu0 0
    %1444 = vmatpush1.bf16.xpose.msra.mxu0 %v1427
    %1445 = vmatprep.subr.bf16.mxu0 0
    %1446 = vmatpush2.bf16.xpose.msra.mxu0 0
    %1447 = vmatprep.subr.bf16.mxu0 0
    %1448 = vmatpush2.bf16.xpose.msra.mxu0 0
    %1449 = vmatprep.subr.bf16.mxu0 0
    %1450 = vmatpush2.bf16.xpose.msra.mxu0 0
    %1451 = vmatprep.subr.bf16.mxu0 0
    %1452 = vmatpush2.bf16.xpose.msra.mxu0 0
    %1453 = vmatprep.subr.bf16.mxu0 0
    %1454 = vmatpush2.bf16.xpose.msra.mxu0 0
    %1455 = vmatprep.subr.bf16.mxu0 0
    %1456 = vmatpush2.bf16.xpose.msra.mxu0 0
    %1457 = vmatprep.subr.bf16.mxu0 0
    %1458 = vmatpush2.bf16.xpose.msra.mxu0 0
    %1459 = vmatprep.subr.bf16.mxu0 0
    %1460 = vmatpush2.bf16.xpose.msra.mxu0 0
    %1461 = vmatprep.mubr.bf16.mxu0 0
    %1462 = vmatmul.mubr.bf16.gmra.mxu0 %v1424
    %v1463 = vpop.f32.mrf.mxu0
    %v1464 = vadd.f32 %v63, %v1463
    %v1465 = vpop.f32.mrf.mxu0
    %v1466 = vpop.f32.mrf.mxu0
    %v1467 = vadd.f32 %v64, %v1466
    %v1468 = vpop.f32.mrf.mxu0
    %1469 = vdwg.mxu0
    %v1470 = vmul.f32 %v1464, 0.35355338
    %v1471 = vmul.f32 %v1467, 0.35355338
    %v1472 = vsel %vm319, %v1470, -inf
    %1473 = vmax.xlane.f32.xlu0 %v1472
    %v1474 = vpop.xlane.xlu0 %1473
    %v1475 = vsel %vm319, %v1471, -inf
    %1476 = vmax.xlane.f32.xlu0 %v1475
    %v1477 = vpop.xlane.xlu0 %1476
    %v1478 = vsub.f32 %v1470, %v1474
    %v1479 = vsub.f32 %v1471, %v1477
    %v1480 = vmul.f32 %v1478, 1.442695
    %v1481 = vpow.pop %v1480
    %v1482 = vmul.f32 %v1479, 1.442695
    %v1483 = vpow.pop %v1482
    %v1484 = vsel %vm319, %v1481, 0.0
    %1485 = vadd.xlane.f32.xlu0 %v1484
    %v1486 = vpop.xlane.xlu0 %1485
    %v1487 = vsel %vm319, %v1483, 0.0
    %1488 = vadd.xlane.f32.xlu0 %v1487
    %v1489 = vpop.xlane.xlu0 %1488
    %v1490 = vrcp.pop %v1486
    %v1491 = vrcp.pop %v1489
    %v1492 = vmul.f32 %v1481, %v1490
    %v1493 = vmul.f32 %v1483, %v1491
    %v1494 = vpack.c.bf16 %v1493, %v1492
    %v1496 = vsel %vm319, %v1494, 0
    %1498 = vmatprep.subr.bf16.mxu0 0
    %1499 = vmatpush1.bf16.msra.mxu0 0
    %1500 = vmatprep.subr.bf16.mxu0 0
    %1501 = vmatpush1.bf16.msra.mxu0 0
    %1502 = vmatprep.subr.bf16.mxu0 0
    %1503 = vmatpush1.bf16.msra.mxu0 0
    %1504 = vmatprep.subr.bf16.mxu0 0
    %1505 = vmatpush1.bf16.msra.mxu0 0
    %1506 = vmatprep.subr.bf16.mxu0 0
    %1507 = vmatpush1.bf16.msra.mxu0 0
    %1508 = vmatprep.subr.bf16.mxu0 0
    %1509 = vmatpush1.bf16.msra.mxu0 0
    %1510 = vmatprep.subr.bf16.mxu0 0
    %1511 = vmatpush1.bf16.msra.mxu0 0
    %1512 = vmatprep.subr.bf16.mxu0 0
    %1513 = vmatpush1.bf16.msra.mxu0 %v1417
    %1514 = vmatprep.subr.bf16.mxu0 0
    %1515 = vmatpush2.bf16.msra.mxu0 0
    %1516 = vmatprep.subr.bf16.mxu0 0
    %1517 = vmatpush2.bf16.msra.mxu0 0
    %1518 = vmatprep.subr.bf16.mxu0 0
    %1519 = vmatpush2.bf16.msra.mxu0 0
    %1520 = vmatprep.subr.bf16.mxu0 0
    %1521 = vmatpush2.bf16.msra.mxu0 0
    %1522 = vmatprep.subr.bf16.mxu0 0
    %1523 = vmatpush2.bf16.msra.mxu0 0
    %1524 = vmatprep.subr.bf16.mxu0 0
    %1525 = vmatpush2.bf16.msra.mxu0 0
    %1526 = vmatprep.subr.bf16.mxu0 0
    %1527 = vmatpush2.bf16.msra.mxu0 0
    %1528 = vmatprep.subr.bf16.mxu0 0
    %1529 = vmatpush2.bf16.msra.mxu0 0
    %1530 = vmatprep.mubr.bf16.mxu0 0
    %1531 = vmatmul.mubr.bf16.gmra.mxu0 %v1496
    %v1532 = vpop.f32.mrf.mxu0
    %v1533 = vadd.f32 0.0, %v1532
    %v1534 = vpop.f32.mrf.mxu0
    %v1535 = vpop.f32.mrf.mxu0
    %v1536 = vadd.f32 0.0, %v1535
    %v1537 = vpop.f32.mrf.mxu0
    %1538 = vdwg.mxu0
    %v1539 = vpack.c.bf16 %v1536, %v1533
    %1541 = vrot.lane.b32.xlu0 %v1415, 120
    %v1542 = vpop.permute.xlu0 %1541
    %1544 = vrot.lane.b32.xlu0 %v1416, 120
    %v1545 = vpop.permute.xlu0 %1544
    %v1547 = vsel %vm269, %v1542, 0
    %v1550 = vsel %vm269, %v1545, 0
    %1552 = vmatprep.subr.bf16.mxu0 0
    %1553 = vmatpush1.bf16.xpose.msra.mxu0 0
    %1554 = vmatprep.subr.bf16.mxu0 0
    %1555 = vmatpush1.bf16.xpose.msra.mxu0 0
    %1556 = vmatprep.subr.bf16.mxu0 0
    %1557 = vmatpush1.bf16.xpose.msra.mxu0 0
    %1558 = vmatprep.subr.bf16.mxu0 0
    %1559 = vmatpush1.bf16.xpose.msra.mxu0 0
    %1560 = vmatprep.subr.bf16.mxu0 0
    %1561 = vmatpush1.bf16.xpose.msra.mxu0 0
    %1562 = vmatprep.subr.bf16.mxu0 0
    %1563 = vmatpush1.bf16.xpose.msra.mxu0 0
    %1564 = vmatprep.subr.bf16.mxu0 0
    %1565 = vmatpush1.bf16.xpose.msra.mxu0 0
    %1566 = vmatprep.subr.bf16.mxu0 0
    %1567 = vmatpush1.bf16.xpose.msra.mxu0 %v1550
    %1568 = vmatprep.subr.bf16.mxu0 0
    %1569 = vmatpush2.bf16.xpose.msra.mxu0 0
    %1570 = vmatprep.subr.bf16.mxu0 0
    %1571 = vmatpush2.bf16.xpose.msra.mxu0 0
    %1572 = vmatprep.subr.bf16.mxu0 0
    %1573 = vmatpush2.bf16.xpose.msra.mxu0 0
    %1574 = vmatprep.subr.bf16.mxu0 0
    %1575 = vmatpush2.bf16.xpose.msra.mxu0 0
    %1576 = vmatprep.subr.bf16.mxu0 0
    %1577 = vmatpush2.bf16.xpose.msra.mxu0 0
    %1578 = vmatprep.subr.bf16.mxu0 0
    %1579 = vmatpush2.bf16.xpose.msra.mxu0 0
    %1580 = vmatprep.subr.bf16.mxu0 0
    %1581 = vmatpush2.bf16.xpose.msra.mxu0 0
    %1582 = vmatprep.subr.bf16.mxu0 0
    %1583 = vmatpush2.bf16.xpose.msra.mxu0 0
    %1584 = vmatprep.mubr.bf16.mxu0 0
    %1585 = vmatmul.mubr.bf16.gmra.mxu0 %v1547
    %v1586 = vpop.f32.mrf.mxu0
    %v1587 = vadd.f32 %v63, %v1586
    %v1588 = vpop.f32.mrf.mxu0
    %v1589 = vpop.f32.mrf.mxu0
    %v1590 = vadd.f32 %v64, %v1589
    %v1591 = vpop.f32.mrf.mxu0
    %1592 = vdwg.mxu0
    %v1593 = vmul.f32 %v1587, 0.35355338
    %v1594 = vmul.f32 %v1590, 0.35355338
    %v1595 = vsel %vm319, %v1593, -inf
    %1596 = vmax.xlane.f32.xlu0 %v1595
    %v1597 = vpop.xlane.xlu0 %1596
    %v1598 = vsel %vm319, %v1594, -inf
    %1599 = vmax.xlane.f32.xlu0 %v1598
    %v1600 = vpop.xlane.xlu0 %1599
    %v1601 = vsub.f32 %v1593, %v1597
    %v1602 = vsub.f32 %v1594, %v1600
    %v1603 = vmul.f32 %v1601, 1.442695
    %v1604 = vpow.pop %v1603
    %v1605 = vmul.f32 %v1602, 1.442695
    %v1606 = vpow.pop %v1605
    %v1607 = vsel %vm319, %v1604, 0.0
    %1608 = vadd.xlane.f32.xlu0 %v1607
    %v1609 = vpop.xlane.xlu0 %1608
    %v1610 = vsel %vm319, %v1606, 0.0
    %1611 = vadd.xlane.f32.xlu0 %v1610
    %v1612 = vpop.xlane.xlu0 %1611
    %v1613 = vrcp.pop %v1609
    %v1614 = vrcp.pop %v1612
    %v1615 = vmul.f32 %v1604, %v1613
    %v1616 = vmul.f32 %v1606, %v1614
    %v1617 = vpack.c.bf16 %v1616, %v1615
    %1619 = vrot.lane.b32.xlu0 %v1417, 120
    %v1620 = vpop.permute.xlu0 %1619
    %v1623 = vsel %vm319, %v1617, 0
    %1625 = vmatprep.subr.bf16.mxu0 0
    %1626 = vmatpush1.bf16.msra.mxu0 0
    %1627 = vmatprep.subr.bf16.mxu0 0
    %1628 = vmatpush1.bf16.msra.mxu0 0
    %1629 = vmatprep.subr.bf16.mxu0 0
    %1630 = vmatpush1.bf16.msra.mxu0 0
    %1631 = vmatprep.subr.bf16.mxu0 0
    %1632 = vmatpush1.bf16.msra.mxu0 0
    %1633 = vmatprep.subr.bf16.mxu0 0
    %1634 = vmatpush1.bf16.msra.mxu0 0
    %1635 = vmatprep.subr.bf16.mxu0 0
    %1636 = vmatpush1.bf16.msra.mxu0 0
    %1637 = vmatprep.subr.bf16.mxu0 0
    %1638 = vmatpush1.bf16.msra.mxu0 0
    %1639 = vmatprep.subr.bf16.mxu0 0
    %1640 = vmatpush1.bf16.msra.mxu0 %v1620
    %1641 = vmatprep.subr.bf16.mxu0 0
    %1642 = vmatpush2.bf16.msra.mxu0 0
    %1643 = vmatprep.subr.bf16.mxu0 0
    %1644 = vmatpush2.bf16.msra.mxu0 0
    %1645 = vmatprep.subr.bf16.mxu0 0
    %1646 = vmatpush2.bf16.msra.mxu0 0
    %1647 = vmatprep.subr.bf16.mxu0 0
    %1648 = vmatpush2.bf16.msra.mxu0 0
    %1649 = vmatprep.subr.bf16.mxu0 0
    %1650 = vmatpush2.bf16.msra.mxu0 0
    %1651 = vmatprep.subr.bf16.mxu0 0
    %1652 = vmatpush2.bf16.msra.mxu0 0
    %1653 = vmatprep.subr.bf16.mxu0 0
    %1654 = vmatpush2.bf16.msra.mxu0 0
    %1655 = vmatprep.subr.bf16.mxu0 0
    %1656 = vmatpush2.bf16.msra.mxu0 0
    %1657 = vmatprep.mubr.bf16.mxu0 0
    %1658 = vmatmul.mubr.bf16.gmra.mxu0 %v1623
    %v1659 = vpop.f32.mrf.mxu0
    %v1660 = vadd.f32 0.0, %v1659
    %v1661 = vpop.f32.mrf.mxu0
    %v1662 = vpop.f32.mrf.mxu0
    %v1663 = vadd.f32 0.0, %v1662
    %v1664 = vpop.f32.mrf.mxu0
    %1665 = vdwg.mxu0
    %v1666 = vpack.c.bf16 %v1663, %v1660
    %v1668 = vsel %vm269, %v1666, 0
    %v1671 = vsel %vm518, %v1420, 0
    %1673 = vmatprep.subr.bf16.mxu0 0
    %1674 = vmatpush1.bf16.msra.mxu0 0
    %1675 = vmatprep.subr.bf16.mxu0 0
    %1676 = vmatpush1.bf16.msra.mxu0 0
    %1677 = vmatprep.subr.bf16.mxu0 0
    %1678 = vmatpush1.bf16.msra.mxu0 0
    %1679 = vmatprep.subr.bf16.mxu0 0
    %1680 = vmatpush1.bf16.msra.mxu0 0
    %1681 = vmatprep.subr.bf16.mxu0 0
    %1682 = vmatpush1.bf16.msra.mxu0 0
    %1683 = vmatprep.subr.bf16.mxu0 0
    %1684 = vmatpush1.bf16.msra.mxu0 0
    %1685 = vmatprep.subr.bf16.mxu0 0
    %1686 = vmatpush1.bf16.msra.mxu0 0
    %1687 = vmatprep.subr.bf16.mxu0 0
    %1688 = vmatpush1.bf16.msra.mxu0 %v1671
    %1689 = vmatprep.subr.bf16.mxu0 0
    %1690 = vmatpush2.bf16.msra.mxu0 0
    %1691 = vmatprep.subr.bf16.mxu0 0
    %1692 = vmatpush2.bf16.msra.mxu0 0
    %1693 = vmatprep.subr.bf16.mxu0 0
    %1694 = vmatpush2.bf16.msra.mxu0 0
    %1695 = vmatprep.subr.bf16.mxu0 0
    %1696 = vmatpush2.bf16.msra.mxu0 0
    %1697 = vmatprep.subr.bf16.mxu0 0
    %1698 = vmatpush2.bf16.msra.mxu0 0
    %1699 = vmatprep.subr.bf16.mxu0 0
    %1700 = vmatpush2.bf16.msra.mxu0 0
    %1701 = vmatprep.subr.bf16.mxu0 0
    %1702 = vmatpush2.bf16.msra.mxu0 0
    %1703 = vmatprep.subr.bf16.mxu0 0
    %1704 = vmatpush2.bf16.msra.mxu0 0
    %1705 = vmatprep.mubr.bf16.mxu0 0
    %1706 = vmatmul.mubr.bf16.gmra.mxu0 %v1668
    %v1707 = vpop.f32.mrf.mxu0
    %v1708 = vadd.f32 0.0, %v1707
    %v1709 = vpop.f32.mrf.mxu0
    %v1710 = vpop.f32.mrf.mxu0
    %v1711 = vadd.f32 0.0, %v1710
    %v1712 = vpop.f32.mrf.mxu0
    %1713 = vdwg.mxu0
    %v1715 = vsel %vm269, %v1539, 0
    %v1718 = vsel %vm518, %v1419, 0
    %1720 = vmatprep.subr.bf16.mxu0 0
    %1721 = vmatpush1.bf16.msra.mxu0 0
    %1722 = vmatprep.subr.bf16.mxu0 0
    %1723 = vmatpush1.bf16.msra.mxu0 0
    %1724 = vmatprep.subr.bf16.mxu0 0
    %1725 = vmatpush1.bf16.msra.mxu0 0
    %1726 = vmatprep.subr.bf16.mxu0 0
    %1727 = vmatpush1.bf16.msra.mxu0 0
    %1728 = vmatprep.subr.bf16.mxu0 0
    %1729 = vmatpush1.bf16.msra.mxu0 0
    %1730 = vmatprep.subr.bf16.mxu0 0
    %1731 = vmatpush1.bf16.msra.mxu0 0
    %1732 = vmatprep.subr.bf16.mxu0 0
    %1733 = vmatpush1.bf16.msra.mxu0 0
    %1734 = vmatprep.subr.bf16.mxu0 0
    %1735 = vmatpush1.bf16.msra.mxu0 %v1718
    %1736 = vmatprep.subr.bf16.mxu0 0
    %1737 = vmatpush2.bf16.msra.mxu0 0
    %1738 = vmatprep.subr.bf16.mxu0 0
    %1739 = vmatpush2.bf16.msra.mxu0 0
    %1740 = vmatprep.subr.bf16.mxu0 0
    %1741 = vmatpush2.bf16.msra.mxu0 0
    %1742 = vmatprep.subr.bf16.mxu0 0
    %1743 = vmatpush2.bf16.msra.mxu0 0
    %1744 = vmatprep.subr.bf16.mxu0 0
    %1745 = vmatpush2.bf16.msra.mxu0 0
    %1746 = vmatprep.subr.bf16.mxu0 0
    %1747 = vmatpush2.bf16.msra.mxu0 0
    %1748 = vmatprep.subr.bf16.mxu0 0
    %1749 = vmatpush2.bf16.msra.mxu0 0
    %1750 = vmatprep.subr.bf16.mxu0 0
    %1751 = vmatpush2.bf16.msra.mxu0 0
    %1752 = vmatprep.mubr.bf16.mxu0 0
    %1753 = vmatmul.mubr.bf16.gmra.mxu0 %v1715
    %v1754 = vpop.f32.mrf.mxu0
    %v1755 = vadd.f32 %v1708, %v1754
    %v1756 = vpop.f32.mrf.mxu0
    %v1757 = vpop.f32.mrf.mxu0
    %v1758 = vadd.f32 %v1711, %v1757
    %v1759 = vpop.f32.mrf.mxu0
    %1760 = vdwg.mxu0
    %1761 = vrot.lane.b32.xlu0 %v1415, 112
    %v1762 = vpop.permute.xlu0 %1761
    %1763 = vrot.lane.b32.xlu0 %v1416, 112
    %v1764 = vpop.permute.xlu0 %1763
    %v1766 = vsel %vm269, %v1762, 0
    %v1769 = vsel %vm269, %v1764, 0
    %1771 = vmatprep.subr.bf16.mxu0 0
    %1772 = vmatpush1.bf16.xpose.msra.mxu0 0
    %1773 = vmatprep.subr.bf16.mxu0 0
    %1774 = vmatpush1.bf16.xpose.msra.mxu0 0
    %1775 = vmatprep.subr.bf16.mxu0 0
    %1776 = vmatpush1.bf16.xpose.msra.mxu0 0
    %1777 = vmatprep.subr.bf16.mxu0 0
    %1778 = vmatpush1.bf16.xpose.msra.mxu0 0
    %1779 = vmatprep.subr.bf16.mxu0 0
    %1780 = vmatpush1.bf16.xpose.msra.mxu0 0
    %1781 = vmatprep.subr.bf16.mxu0 0
    %1782 = vmatpush1.bf16.xpose.msra.mxu0 0
    %1783 = vmatprep.subr.bf16.mxu0 0
    %1784 = vmatpush1.bf16.xpose.msra.mxu0 0
    %1785 = vmatprep.subr.bf16.mxu0 0
    %1786 = vmatpush1.bf16.xpose.msra.mxu0 %v1769
    %1787 = vmatprep.subr.bf16.mxu0 0
    %1788 = vmatpush2.bf16.xpose.msra.mxu0 0
    %1789 = vmatprep.subr.bf16.mxu0 0
    %1790 = vmatpush2.bf16.xpose.msra.mxu0 0
    %1791 = vmatprep.subr.bf16.mxu0 0
    %1792 = vmatpush2.bf16.xpose.msra.mxu0 0
    %1793 = vmatprep.subr.bf16.mxu0 0
    %1794 = vmatpush2.bf16.xpose.msra.mxu0 0
    %1795 = vmatprep.subr.bf16.mxu0 0
    %1796 = vmatpush2.bf16.xpose.msra.mxu0 0
    %1797 = vmatprep.subr.bf16.mxu0 0
    %1798 = vmatpush2.bf16.xpose.msra.mxu0 0
    %1799 = vmatprep.subr.bf16.mxu0 0
    %1800 = vmatpush2.bf16.xpose.msra.mxu0 0
    %1801 = vmatprep.subr.bf16.mxu0 0
    %1802 = vmatpush2.bf16.xpose.msra.mxu0 0
    %1803 = vmatprep.mubr.bf16.mxu0 0
    %1804 = vmatmul.mubr.bf16.gmra.mxu0 %v1766
    %v1805 = vpop.f32.mrf.mxu0
    %v1806 = vadd.f32 %v63, %v1805
    %v1807 = vpop.f32.mrf.mxu0
    %v1808 = vpop.f32.mrf.mxu0
    %v1809 = vadd.f32 %v64, %v1808
    %v1810 = vpop.f32.mrf.mxu0
    %1811 = vdwg.mxu0
    %v1812 = vmul.f32 %v1806, 0.35355338
    %v1813 = vmul.f32 %v1809, 0.35355338
    %v1814 = vsel %vm319, %v1812, -inf
    %1815 = vmax.xlane.f32.xlu0 %v1814
    %v1816 = vpop.xlane.xlu0 %1815
    %v1817 = vsel %vm319, %v1813, -inf
    %1818 = vmax.xlane.f32.xlu0 %v1817
    %v1819 = vpop.xlane.xlu0 %1818
    %v1820 = vsub.f32 %v1812, %v1816
    %v1821 = vsub.f32 %v1813, %v1819
    %v1822 = vmul.f32 %v1820, 1.442695
    %v1823 = vpow.pop %v1822
    %v1824 = vmul.f32 %v1821, 1.442695
    %v1825 = vpow.pop %v1824
    %v1826 = vsel %vm319, %v1823, 0.0
    %1827 = vadd.xlane.f32.xlu0 %v1826
    %v1828 = vpop.xlane.xlu0 %1827
    %v1829 = vsel %vm319, %v1825, 0.0
    %1830 = vadd.xlane.f32.xlu0 %v1829
    %v1831 = vpop.xlane.xlu0 %1830
    %v1832 = vrcp.pop %v1828
    %v1833 = vrcp.pop %v1831
    %v1834 = vmul.f32 %v1823, %v1832
    %v1835 = vmul.f32 %v1825, %v1833
    %v1836 = vpack.c.bf16 %v1835, %v1834
    %1837 = vrot.lane.b32.xlu0 %v1417, 112
    %v1838 = vpop.permute.xlu0 %1837
    %v1841 = vsel %vm319, %v1836, 0
    %1843 = vmatprep.subr.bf16.mxu0 0
    %1844 = vmatpush1.bf16.msra.mxu0 0
    %1845 = vmatprep.subr.bf16.mxu0 0
    %1846 = vmatpush1.bf16.msra.mxu0 0
    %1847 = vmatprep.subr.bf16.mxu0 0
    %1848 = vmatpush1.bf16.msra.mxu0 0
    %1849 = vmatprep.subr.bf16.mxu0 0
    %1850 = vmatpush1.bf16.msra.mxu0 0
    %1851 = vmatprep.subr.bf16.mxu0 0
    %1852 = vmatpush1.bf16.msra.mxu0 0
    %1853 = vmatprep.subr.bf16.mxu0 0
    %1854 = vmatpush1.bf16.msra.mxu0 0
    %1855 = vmatprep.subr.bf16.mxu0 0
    %1856 = vmatpush1.bf16.msra.mxu0 0
    %1857 = vmatprep.subr.bf16.mxu0 0
    %1858 = vmatpush1.bf16.msra.mxu0 %v1838
    %1859 = vmatprep.subr.bf16.mxu0 0
    %1860 = vmatpush2.bf16.msra.mxu0 0
    %1861 = vmatprep.subr.bf16.mxu0 0
    %1862 = vmatpush2.bf16.msra.mxu0 0
    %1863 = vmatprep.subr.bf16.mxu0 0
    %1864 = vmatpush2.bf16.msra.mxu0 0
    %1865 = vmatprep.subr.bf16.mxu0 0
    %1866 = vmatpush2.bf16.msra.mxu0 0
    %1867 = vmatprep.subr.bf16.mxu0 0
    %1868 = vmatpush2.bf16.msra.mxu0 0
    %1869 = vmatprep.subr.bf16.mxu0 0
    %1870 = vmatpush2.bf16.msra.mxu0 0
    %1871 = vmatprep.subr.bf16.mxu0 0
    %1872 = vmatpush2.bf16.msra.mxu0 0
    %1873 = vmatprep.subr.bf16.mxu0 0
    %1874 = vmatpush2.bf16.msra.mxu0 0
    %1875 = vmatprep.mubr.bf16.mxu0 0
    %1876 = vmatmul.mubr.bf16.gmra.mxu0 %v1841
    %v1877 = vpop.f32.mrf.mxu0
    %v1878 = vadd.f32 0.0, %v1877
    %v1879 = vpop.f32.mrf.mxu0
    %v1880 = vpop.f32.mrf.mxu0
    %v1881 = vadd.f32 0.0, %v1880
    %v1882 = vpop.f32.mrf.mxu0
    %1883 = vdwg.mxu0
    %v1884 = vpack.c.bf16 %v1881, %v1878
    %v1886 = vsel %vm269, %v1884, 0
    %v1889 = vsel %vm518, %v1421, 0
    %1891 = vmatprep.subr.bf16.mxu0 0
    %1892 = vmatpush1.bf16.msra.mxu0 0
    %1893 = vmatprep.subr.bf16.mxu0 0
    %1894 = vmatpush1.bf16.msra.mxu0 0
    %1895 = vmatprep.subr.bf16.mxu0 0
    %1896 = vmatpush1.bf16.msra.mxu0 0
    %1897 = vmatprep.subr.bf16.mxu0 0
    %1898 = vmatpush1.bf16.msra.mxu0 0
    %1899 = vmatprep.subr.bf16.mxu0 0
    %1900 = vmatpush1.bf16.msra.mxu0 0
    %1901 = vmatprep.subr.bf16.mxu0 0
    %1902 = vmatpush1.bf16.msra.mxu0 0
    %1903 = vmatprep.subr.bf16.mxu0 0
    %1904 = vmatpush1.bf16.msra.mxu0 0
    %1905 = vmatprep.subr.bf16.mxu0 0
    %1906 = vmatpush1.bf16.msra.mxu0 %v1889
    %1907 = vmatprep.subr.bf16.mxu0 0
    %1908 = vmatpush2.bf16.msra.mxu0 0
    %1909 = vmatprep.subr.bf16.mxu0 0
    %1910 = vmatpush2.bf16.msra.mxu0 0
    %1911 = vmatprep.subr.bf16.mxu0 0
    %1912 = vmatpush2.bf16.msra.mxu0 0
    %1913 = vmatprep.subr.bf16.mxu0 0
    %1914 = vmatpush2.bf16.msra.mxu0 0
    %1915 = vmatprep.subr.bf16.mxu0 0
    %1916 = vmatpush2.bf16.msra.mxu0 0
    %1917 = vmatprep.subr.bf16.mxu0 0
    %1918 = vmatpush2.bf16.msra.mxu0 0
    %1919 = vmatprep.subr.bf16.mxu0 0
    %1920 = vmatpush2.bf16.msra.mxu0 0
    %1921 = vmatprep.subr.bf16.mxu0 0
    %1922 = vmatpush2.bf16.msra.mxu0 0
    %1923 = vmatprep.mubr.bf16.mxu0 0
    %1924 = vmatmul.mubr.bf16.gmra.mxu0 %v1886
    %v1925 = vpop.f32.mrf.mxu0
    %v1926 = vadd.f32 0.0, %v1925
    %v1927 = vpop.f32.mrf.mxu0
    %v1928 = vpop.f32.mrf.mxu0
    %v1929 = vadd.f32 0.0, %v1928
    %v1930 = vpop.f32.mrf.mxu0
    %1931 = vdwg.mxu0
    %v1932 = vadd.f32 %v1755, %v1926
    %v1933 = vadd.f32 %v1758, %v1929
    %1934 = vrot.lane.b32.xlu0 %v1415, 104
    %v1935 = vpop.permute.xlu0 %1934
    %1936 = vrot.lane.b32.xlu0 %v1416, 104
    %v1937 = vpop.permute.xlu0 %1936
    %v1939 = vsel %vm269, %v1935, 0
    %v1942 = vsel %vm269, %v1937, 0
    %1944 = vmatprep.subr.bf16.mxu0 0
    %1945 = vmatpush1.bf16.xpose.msra.mxu0 0
    %1946 = vmatprep.subr.bf16.mxu0 0
    %1947 = vmatpush1.bf16.xpose.msra.mxu0 0
    %1948 = vmatprep.subr.bf16.mxu0 0
    %1949 = vmatpush1.bf16.xpose.msra.mxu0 0
    %1950 = vmatprep.subr.bf16.mxu0 0
    %1951 = vmatpush1.bf16.xpose.msra.mxu0 0
    %1952 = vmatprep.subr.bf16.mxu0 0
    %1953 = vmatpush1.bf16.xpose.msra.mxu0 0
    %1954 = vmatprep.subr.bf16.mxu0 0
    %1955 = vmatpush1.bf16.xpose.msra.mxu0 0
    %1956 = vmatprep.subr.bf16.mxu0 0
    %1957 = vmatpush1.bf16.xpose.msra.mxu0 0
    %1958 = vmatprep.subr.bf16.mxu0 0
    %1959 = vmatpush1.bf16.xpose.msra.mxu0 %v1942
    %1960 = vmatprep.subr.bf16.mxu0 0
    %1961 = vmatpush2.bf16.xpose.msra.mxu0 0
    %1962 = vmatprep.subr.bf16.mxu0 0
    %1963 = vmatpush2.bf16.xpose.msra.mxu0 0
    %1964 = vmatprep.subr.bf16.mxu0 0
    %1965 = vmatpush2.bf16.xpose.msra.mxu0 0
    %1966 = vmatprep.subr.bf16.mxu0 0
    %1967 = vmatpush2.bf16.xpose.msra.mxu0 0
    %1968 = vmatprep.subr.bf16.mxu0 0
    %1969 = vmatpush2.bf16.xpose.msra.mxu0 0
    %1970 = vmatprep.subr.bf16.mxu0 0
    %1971 = vmatpush2.bf16.xpose.msra.mxu0 0
    %1972 = vmatprep.subr.bf16.mxu0 0
    %1973 = vmatpush2.bf16.xpose.msra.mxu0 0
    %1974 = vmatprep.subr.bf16.mxu0 0
    %1975 = vmatpush2.bf16.xpose.msra.mxu0 0
    %1976 = vmatprep.mubr.bf16.mxu0 0
    %1977 = vmatmul.mubr.bf16.gmra.mxu0 %v1939
    %v1978 = vpop.f32.mrf.mxu0
    %v1979 = vadd.f32 %v63, %v1978
    %v1980 = vpop.f32.mrf.mxu0
    %v1981 = vpop.f32.mrf.mxu0
    %v1982 = vadd.f32 %v64, %v1981
    %v1983 = vpop.f32.mrf.mxu0
    %1984 = vdwg.mxu0
    %v1985 = vmul.f32 %v1979, 0.35355338
    %v1986 = vmul.f32 %v1982, 0.35355338
    %v1987 = vsel %vm319, %v1985, -inf
    %1988 = vmax.xlane.f32.xlu0 %v1987
    %v1989 = vpop.xlane.xlu0 %1988
    %v1990 = vsel %vm319, %v1986, -inf
    %1991 = vmax.xlane.f32.xlu0 %v1990
    %v1992 = vpop.xlane.xlu0 %1991
    %v1993 = vsub.f32 %v1985, %v1989
    %v1994 = vsub.f32 %v1986, %v1992
    %v1995 = vmul.f32 %v1993, 1.442695
    %v1996 = vpow.pop %v1995
    %v1997 = vmul.f32 %v1994, 1.442695
    %v1998 = vpow.pop %v1997
    %v1999 = vsel %vm319, %v1996, 0.0
    %2000 = vadd.xlane.f32.xlu0 %v1999
    %v2001 = vpop.xlane.xlu0 %2000
    %v2002 = vsel %vm319, %v1998, 0.0
    %2003 = vadd.xlane.f32.xlu0 %v2002
    %v2004 = vpop.xlane.xlu0 %2003
    %v2005 = vrcp.pop %v2001
    %v2006 = vrcp.pop %v2004
    %v2007 = vmul.f32 %v1996, %v2005
    %v2008 = vmul.f32 %v1998, %v2006
    %v2009 = vpack.c.bf16 %v2008, %v2007
    %2010 = vrot.lane.b32.xlu0 %v1417, 104
    %v2011 = vpop.permute.xlu0 %2010
    %v2014 = vsel %vm319, %v2009, 0
    %2016 = vmatprep.subr.bf16.mxu0 0
    %2017 = vmatpush1.bf16.msra.mxu0 0
    %2018 = vmatprep.subr.bf16.mxu0 0
    %2019 = vmatpush1.bf16.msra.mxu0 0
    %2020 = vmatprep.subr.bf16.mxu0 0
    %2021 = vmatpush1.bf16.msra.mxu0 0
    %2022 = vmatprep.subr.bf16.mxu0 0
    %2023 = vmatpush1.bf16.msra.mxu0 0
    %2024 = vmatprep.subr.bf16.mxu0 0
    %2025 = vmatpush1.bf16.msra.mxu0 0
    %2026 = vmatprep.subr.bf16.mxu0 0
    %2027 = vmatpush1.bf16.msra.mxu0 0
    %2028 = vmatprep.subr.bf16.mxu0 0
    %2029 = vmatpush1.bf16.msra.mxu0 0
    %2030 = vmatprep.subr.bf16.mxu0 0
    %2031 = vmatpush1.bf16.msra.mxu0 %v2011
    %2032 = vmatprep.subr.bf16.mxu0 0
    %2033 = vmatpush2.bf16.msra.mxu0 0
    %2034 = vmatprep.subr.bf16.mxu0 0
    %2035 = vmatpush2.bf16.msra.mxu0 0
    %2036 = vmatprep.subr.bf16.mxu0 0
    %2037 = vmatpush2.bf16.msra.mxu0 0
    %2038 = vmatprep.subr.bf16.mxu0 0
    %2039 = vmatpush2.bf16.msra.mxu0 0
    %2040 = vmatprep.subr.bf16.mxu0 0
    %2041 = vmatpush2.bf16.msra.mxu0 0
    %2042 = vmatprep.subr.bf16.mxu0 0
    %2043 = vmatpush2.bf16.msra.mxu0 0
    %2044 = vmatprep.subr.bf16.mxu0 0
    %2045 = vmatpush2.bf16.msra.mxu0 0
    %2046 = vmatprep.subr.bf16.mxu0 0
    %2047 = vmatpush2.bf16.msra.mxu0 0
    %2048 = vmatprep.mubr.bf16.mxu0 0
    %2049 = vmatmul.mubr.bf16.gmra.mxu0 %v2014
    %v2050 = vpop.f32.mrf.mxu0
    %v2051 = vadd.f32 0.0, %v2050
    %v2052 = vpop.f32.mrf.mxu0
    %v2053 = vpop.f32.mrf.mxu0
    %v2054 = vadd.f32 0.0, %v2053
    %v2055 = vpop.f32.mrf.mxu0
    %2056 = vdwg.mxu0
    %v2057 = vpack.c.bf16 %v2054, %v2051
    %v2059 = vsel %vm269, %v2057, 0
    %v2062 = vsel %vm518, %v1422, 0
    %2064 = vmatprep.subr.bf16.mxu0 0
    %2065 = vmatpush1.bf16.msra.mxu0 0
    %2066 = vmatprep.subr.bf16.mxu0 0
    %2067 = vmatpush1.bf16.msra.mxu0 0
    %2068 = vmatprep.subr.bf16.mxu0 0
    %2069 = vmatpush1.bf16.msra.mxu0 0
    %2070 = vmatprep.subr.bf16.mxu0 0
    %2071 = vmatpush1.bf16.msra.mxu0 0
    %2072 = vmatprep.subr.bf16.mxu0 0
    %2073 = vmatpush1.bf16.msra.mxu0 0
    %2074 = vmatprep.subr.bf16.mxu0 0
    %2075 = vmatpush1.bf16.msra.mxu0 0
    %2076 = vmatprep.subr.bf16.mxu0 0
    %2077 = vmatpush1.bf16.msra.mxu0 0
    %2078 = vmatprep.subr.bf16.mxu0 0
    %2079 = vmatpush1.bf16.msra.mxu0 %v2062
    %2080 = vmatprep.subr.bf16.mxu0 0
    %2081 = vmatpush2.bf16.msra.mxu0 0
    %2082 = vmatprep.subr.bf16.mxu0 0
    %2083 = vmatpush2.bf16.msra.mxu0 0
    %2084 = vmatprep.subr.bf16.mxu0 0
    %2085 = vmatpush2.bf16.msra.mxu0 0
    %2086 = vmatprep.subr.bf16.mxu0 0
    %2087 = vmatpush2.bf16.msra.mxu0 0
    %2088 = vmatprep.subr.bf16.mxu0 0
    %2089 = vmatpush2.bf16.msra.mxu0 0
    %2090 = vmatprep.subr.bf16.mxu0 0
    %2091 = vmatpush2.bf16.msra.mxu0 0
    %2092 = vmatprep.subr.bf16.mxu0 0
    %2093 = vmatpush2.bf16.msra.mxu0 0
    %2094 = vmatprep.subr.bf16.mxu0 0
    %2095 = vmatpush2.bf16.msra.mxu0 0
    %2096 = vmatprep.mubr.bf16.mxu0 0
    %2097 = vmatmul.mubr.bf16.gmra.mxu0 %v2059
    %v2098 = vpop.f32.mrf.mxu0
    %v2099 = vadd.f32 0.0, %v2098
    %v2100 = vpop.f32.mrf.mxu0
    %v2101 = vpop.f32.mrf.mxu0
    %v2102 = vadd.f32 0.0, %v2101
    %v2103 = vpop.f32.mrf.mxu0
    %2104 = vdwg.mxu0
    %v2105 = vadd.f32 %v1932, %v2099
    %v2106 = vadd.f32 %v1933, %v2102
    %s2107 = scalar_lea.vmem %s9, 1
    %v2108 = vld [vmem:[%s2107] sm:$0x1]
    %v2110 = vlaneseq
    %v2111 = vshrl.u32 %v2110, 7
    %v2112 = vsub.s32 0, %v2111
    %v2113 = vrot.slane %v2108, %v2112
    %v2115 = vadd.f32 %v2105, %v2113
    %v2116 = vadd.f32 %v2106, %v2113
    %v2117 = vadd.f32 %v1211, %v2115
    %v2118 = vadd.f32 %v1212, %v2116
    %v2119 = vsel %vm89, %v2117, 0.0
    %2120 = vadd.xlane.f32.xlu0 %v2119
    %v2121 = vpop.xlane.xlu0 %2120
    %v2122 = vsel %vm89, %v2118, 0.0
    %2123 = vadd.xlane.f32.xlu0 %v2122
    %v2124 = vpop.xlane.xlu0 %2123
    %v2125 = vmul.f32 %v2121, %v973
    %v2126 = vmul.f32 %v2124, %v973
    %v2127 = vsub.f32 %v2117, %v2125
    %v2128 = vsub.f32 %v2118, %v2126
    %v2129 = vmul.f32 %v2127, %v2127
    %v2130 = vmul.f32 %v2128, %v2128
    %v2131 = vsel %vm89, %v2129, 0.0
    %2132 = vadd.xlane.f32.xlu0 %v2131
    %v2133 = vpop.xlane.xlu0 %2132
    %v2134 = vsel %vm89, %v2130, 0.0
    %2135 = vadd.xlane.f32.xlu0 %v2134
    %v2136 = vpop.xlane.xlu0 %2135
    %v2137 = vmul.f32 %v2133, %v973
    %v2138 = vmul.f32 %v2136, %v973
    %v2139 = vadd.f32 %v2137, 1e-05
    %v2140 = vadd.f32 %v2138, 1e-05
    %v2141 = vrsqrt.pop %v2139
    %v2142 = vrsqrt.pop %v2140
    %v2143 = vmul.f32 %v2127, %v2141
    %v2144 = vmul.f32 %v2128, %v2142
    %s2145 = scalar_lea.vmem %s10, 1
    %v2146 = vld [vmem:[%s2145] sm:$0x1]
    %v2148 = vlaneseq
    %v2149 = vshrl.u32 %v2148, 7
    %v2150 = vsub.s32 0, %v2149
    %v2151 = vrot.slane %v2146, %v2150
    %v2153 = vmul.f32 %v2143, %v2151
    %v2154 = vmul.f32 %v2144, %v2151
    %s2155 = scalar_lea.vmem %s11, 1
    %v2156 = vld [vmem:[%s2155] sm:$0x1]
    %v2158 = vlaneseq
    %v2159 = vshrl.u32 %v2158, 7
    %v2160 = vsub.s32 0, %v2159
    %v2161 = vrot.slane %v2156, %v2160
    %v2163 = vadd.f32 %v2153, %v2161
    %v2164 = vadd.f32 %v2154, %v2161
    %v2165 = vpack.c.bf16 %v2164, %v2163
    %s2166 = scalar_lea.vmem %s12, 16
    %v2167 = vld [vmem:[%s2166] sm:$0xf]
    %v2168 = vld [vmem:[%s2166 + $0x4] sm:$0xf]
    %v2169 = vld [vmem:[%s2166 + $0x8] sm:$0xf]
    %v2170 = vld [vmem:[%s2166 + $0xc] sm:$0xf]
    %s2171 = scalar_lea.vmem %s13, 1
    %v2172 = vld [vmem:[%s2171] sm:$0x1]
    %v2174 = vlaneseq
    %v2175 = vshrl.u32 %v2174, 7
    %v2176 = vsub.s32 0, %v2175
    %v2177 = vrot.slane %v2172, %v2176
    %v2183 = vunpack.c.l.b16 %v2167
    %v2184 = vunpack.c.l.b16 %v2168
    %v2185 = vunpack.c.l.b16 %v2169
    %v2186 = vunpack.c.l.b16 %v2170
    %v2187 = vpack.c.b16 %v2184, %v2183
    %v2188 = vpack.c.b16 %v2186, %v2185
    %v2192 = vsel %vm89, %v2165, 0
    %2194 = vmatprep.subr.bf16.mxu0 0
    %2195 = vmatpush1.bf16.msra.mxu0 0
    %2196 = vmatprep.subr.bf16.mxu0 0
    %2197 = vmatpush1.bf16.msra.mxu0 0
    %2198 = vmatprep.subr.bf16.mxu0 0
    %2199 = vmatpush1.bf16.msra.mxu0 0
    %2200 = vmatprep.subr.bf16.mxu0 0
    %2201 = vmatpush1.bf16.msra.mxu0 0
    %2202 = vmatprep.subr.bf16.mxu0 0
    %2203 = vmatpush1.bf16.msra.mxu0 0
    %2204 = vmatprep.subr.bf16.mxu0 0
    %2205 = vmatpush1.bf16.msra.mxu0 0
    %2206 = vmatprep.subr.bf16.mxu0 0
    %2207 = vmatpush1.bf16.msra.mxu0 %v2188
    %2208 = vmatprep.subr.bf16.mxu0 0
    %2209 = vmatpush1.bf16.msra.mxu0 %v2187
    %2210 = vmatprep.subr.bf16.mxu0 0
    %2211 = vmatpush2.bf16.msra.mxu0 0
    %2212 = vmatprep.subr.bf16.mxu0 0
    %2213 = vmatpush2.bf16.msra.mxu0 0
    %2214 = vmatprep.subr.bf16.mxu0 0
    %2215 = vmatpush2.bf16.msra.mxu0 0
    %2216 = vmatprep.subr.bf16.mxu0 0
    %2217 = vmatpush2.bf16.msra.mxu0 0
    %2218 = vmatprep.subr.bf16.mxu0 0
    %2219 = vmatpush2.bf16.msra.mxu0 0
    %2220 = vmatprep.subr.bf16.mxu0 0
    %2221 = vmatpush2.bf16.msra.mxu0 0
    %2222 = vmatprep.subr.bf16.mxu0 0
    %2223 = vmatpush2.bf16.msra.mxu0 0
    %2224 = vmatprep.subr.bf16.mxu0 0
    %2225 = vmatpush2.bf16.msra.mxu0 0
    %2226 = vmatprep.mubr.bf16.mxu0 0
    %2227 = vmatmul.mubr.bf16.gmra.mxu0 %v2192
    %v2228 = vpop.f32.mrf.mxu0
    %v2229 = vadd.f32 %v2177, %v2228
    %v2230 = vpop.f32.mrf.mxu0
    %v2231 = vpop.f32.mrf.mxu0
    %v2232 = vadd.f32 %v2177, %v2231
    %v2233 = vpop.f32.mrf.mxu0
    %2234 = vdwg.mxu0
    %v2235 = vmax.f32 %v2229, 0.0
    %v2236 = vmax.f32 %v2232, 0.0
    %v2237 = vpack.c.bf16 %v2236, %v2235
    %s2238 = scalar_lea.vmem %s14, 32
    %v2239 = vld [vmem:[%s2238] sm:$0xf]
    %v2240 = vld [vmem:[%s2238 + $0x4] sm:$0xf]
    %v2241 = vld [vmem:[%s2238 + $0x8] sm:$0xf]
    %v2242 = vld [vmem:[%s2238 + $0xc] sm:$0xf]
    %v2243 = vld [vmem:[%s2238 + $0x10] sm:$0xf]
    %v2244 = vld [vmem:[%s2238 + $0x14] sm:$0xf]
    %v2245 = vld [vmem:[%s2238 + $0x18] sm:$0xf]
    %v2246 = vld [vmem:[%s2238 + $0x1c] sm:$0xf]
    %s2247 = scalar_lea.vmem %s15, 1
    %v2248 = vld [vmem:[%s2247] sm:$0x1]
    %v2250 = vlaneseq
    %v2251 = vshrl.u32 %v2250, 7
    %v2252 = vsub.s32 0, %v2251
    %v2253 = vrot.slane %v2248, %v2252
    %v2263 = vunpack.c.l.b16 %v2239
    %v2264 = vunpack.c.l.b16 %v2240
    %v2265 = vunpack.c.l.b16 %v2241
    %v2266 = vunpack.c.l.b16 %v2242
    %v2267 = vunpack.c.l.b16 %v2243
    %v2268 = vunpack.c.l.b16 %v2244
    %v2269 = vunpack.c.l.b16 %v2245
    %v2270 = vunpack.c.l.b16 %v2246
    %v2271 = vpack.c.b16 %v2264, %v2263
    %v2272 = vpack.c.b16 %v2266, %v2265
    %v2273 = vpack.c.b16 %v2268, %v2267
    %v2274 = vpack.c.b16 %v2270, %v2269
    %v2280 = vsel %vm1122, %v2237, 0
    %2282 = vmatprep.subr.bf16.mxu0 0
    %2283 = vmatpush1.bf16.msra.mxu0 0
    %2284 = vmatprep.subr.bf16.mxu0 0
    %2285 = vmatpush1.bf16.msra.mxu0 0
    %2286 = vmatprep.subr.bf16.mxu0 0
    %2287 = vmatpush1.bf16.msra.mxu0 0
    %2288 = vmatprep.subr.bf16.mxu0 0
    %2289 = vmatpush1.bf16.msra.mxu0 0
    %2290 = vmatprep.subr.bf16.mxu0 0
    %2291 = vmatpush1.bf16.msra.mxu0 %v2274
    %2292 = vmatprep.subr.bf16.mxu0 0
    %2293 = vmatpush1.bf16.msra.mxu0 %v2273
    %2294 = vmatprep.subr.bf16.mxu0 0
    %2295 = vmatpush1.bf16.msra.mxu0 %v2272
    %2296 = vmatprep.subr.bf16.mxu0 0
    %2297 = vmatpush1.bf16.msra.mxu0 %v2271
    %2298 = vmatprep.subr.bf16.mxu0 0
    %2299 = vmatpush2.bf16.msra.mxu0 0
    %2300 = vmatprep.subr.bf16.mxu0 0
    %2301 = vmatpush2.bf16.msra.mxu0 0
    %2302 = vmatprep.subr.bf16.mxu0 0
    %2303 = vmatpush2.bf16.msra.mxu0 0
    %2304 = vmatprep.subr.bf16.mxu0 0
    %2305 = vmatpush2.bf16.msra.mxu0 0
    %2306 = vmatprep.subr.bf16.mxu0 0
    %2307 = vmatpush2.bf16.msra.mxu0 0
    %2308 = vmatprep.subr.bf16.mxu0 0
    %2309 = vmatpush2.bf16.msra.mxu0 0
    %2310 = vmatprep.subr.bf16.mxu0 0
    %2311 = vmatpush2.bf16.msra.mxu0 0
    %2312 = vmatprep.subr.bf16.mxu0 0
    %2313 = vmatpush2.bf16.msra.mxu0 0
    %2314 = vmatprep.mubr.bf16.mxu0 0
    %2315 = vmatmul.mubr.bf16.gmra.mxu0 %v2280
    %v2316 = vpop.f32.mrf.mxu0
    %v2317 = vadd.f32 %v2253, %v2316
    %v2318 = vpop.f32.mrf.mxu0
    %v2319 = vpop.f32.mrf.mxu0
    %v2320 = vadd.f32 %v2253, %v2319
    %v2321 = vpop.f32.mrf.mxu0
    %2322 = vdwg.mxu0
    %v2323 = vadd.f32 %v2163, %v2317
    %v2324 = vadd.f32 %v2164, %v2320
    %v2325 = vsel %vm89, %v2323, 0.0
    %2326 = vadd.xlane.f32.xlu0 %v2325
    %v2327 = vpop.xlane.xlu0 %2326
    %v2328 = vsel %vm89, %v2324, 0.0
    %2329 = vadd.xlane.f32.xlu0 %v2328
    %v2330 = vpop.xlane.xlu0 %2329
    %v2331 = vmul.f32 %v2327, %v973
    %v2332 = vmul.f32 %v2330, %v973
    %v2333 = vsub.f32 %v2323, %v2331
    %v2334 = vsub.f32 %v2324, %v2332
    %v2335 = vmul.f32 %v2333, %v2333
    %v2336 = vmul.f32 %v2334, %v2334
    %v2337 = vsel %vm89, %v2335, 0.0
    %2338 = vadd.xlane.f32.xlu0 %v2337
    %v2339 = vpop.xlane.xlu0 %2338
    %v2340 = vsel %vm89, %v2336, 0.0
    %2341 = vadd.xlane.f32.xlu0 %v2340
    %v2342 = vpop.xlane.xlu0 %2341
    %v2343 = vmul.f32 %v2339, %v973
    %v2344 = vmul.f32 %v2342, %v973
    %v2345 = vadd.f32 %v2343, 1e-05
    %v2346 = vadd.f32 %v2344, 1e-05
    %v2347 = vrsqrt.pop %v2345
    %v2348 = vrsqrt.pop %v2346
    %v2349 = vmul.f32 %v2333, %v2347
    %v2350 = vmul.f32 %v2334, %v2348
    %s2351 = scalar_lea.vmem %s16, 1
    %v2352 = vld [vmem:[%s2351] sm:$0x1]
    %v2354 = vlaneseq
    %v2355 = vshrl.u32 %v2354, 7
    %v2356 = vsub.s32 0, %v2355
    %v2357 = vrot.slane %v2352, %v2356
    %v2359 = vmul.f32 %v2349, %v2357
    %v2360 = vmul.f32 %v2350, %v2357
    %s2361 = scalar_lea.vmem %s17, 1
    %v2362 = vld [vmem:[%s2361] sm:$0x1]
    %v2364 = vlaneseq
    %v2365 = vshrl.u32 %v2364, 7
    %v2366 = vsub.s32 0, %v2365
    %v2367 = vrot.slane %v2362, %v2366
    %v2369 = vadd.f32 %v2359, %v2367
    %v2370 = vadd.f32 %v2360, %v2367
    %2371 = vst.msk [vmem:[#allocation2] sm:$0xff] %vm89, %v2369
    %2372 = vst.msk [vmem:[#allocation2 + $0x8] sm:$0xff] %vm89, %v2370
    // Predicated region
    $region74: #{_lambda_.1} parent=1 // pred_check
      _
    $region75: #{_lambda_.1} parent=1 // pred_check_branch
      %2374 = sbr.rel (0) target = $region77
    $region76: #{_lambda_.1} parent=1 // pred_region
      %s2376 = ssub.s32 256, 256
      %2377 = vsyncadd [#allocation3], %s2376
      %s2378 = sshll.u32 [#allocation2], 4
      %s2379 = int_to_ptr.vmem [resolvable:$true] %s2378
      %2384 = dma.vmem_to_hbm [thread:$0]  %s2379, 256, %s18, [#allocation3], 128, 128, 8
    $region77: #{_lambda_.1} parent=1 // pred_fallthru
      _
    // Predicated region
    $region78: #{_lambda_.1} parent=1 // pred_check
      _
    $region79: #{_lambda_.1} parent=1 // pred_check_branch
      %2386 = sbr.rel (0) target = $region81
    $region80: #{_lambda_.1} parent=1 // pred_region
      %2387 = dma.done [#allocation3], 256
    $region81: #{_lambda_.1} parent=1 // pred_fallthru
      _
    %2388 = vsyncpa [#allocation3], 1

</llo_original>
